<compile_context>
chip_gen: v5e
topology: v5e:2x2
jax: 0.10.0
libtpu: 0.0.40
codegen_flags: <defaults>
</compile_context>

<pallas_src>
import functools
import math

import jax
import jax.numpy as jnp
import numpy as np
from jax import lax
from jax.experimental import pallas as pl
from jax.experimental.pallas import tpu as pltpu

NUM_BASE = 20                       # number of base family relations
NUM_RELATIONS = 21                  # len(relation_id_map) incl. 'nothing'
NUM_TRANSITIVES = NUM_BASE ** 3     # 8000 possible (a, b, c) transitive rules
LANES = 128
ROWS = 64                           # 64 * 128 = 8192 >= 8000 (padded)
IDX_BITS = 13                       # 2**13 = 8192 index slots
IDX_MASK = (1 << IDX_BITS) - 1      # 8191
INT32_MIN = -(1 << 31)              # sentinel for removed / invalid entries


def _sample_kernel(sample_ct, train, probs_ref, noise_ref, idx_ref):
    """Top-`sample_ct` selection over the padded transitivity-prob tile.

    probs_ref : VMEM (ROWS, LANES) f32 zero-padded transitivity probs.
    noise_ref : VMEM (ROWS, LANES) f32 Gumbel noise (ignored when not train).
    idx_ref   : VMEM (out_rows, LANES) i32; selected flat indices occupy
                positions 0..sample_ct-1 of the row-major flattened tile.
    """
    row = lax.broadcasted_iota(jnp.int32, (ROWS, LANES), 0)
    col = lax.broadcasted_iota(jnp.int32, (ROWS, LANES), 1)
    flat_idx = row * LANES + col
    valid = flat_idx < NUM_TRANSITIVES

    # torch.clamp(self.transitivity_probs, 0, 1)
    p = jnp.clip(probs_ref[...], 0.0, 1.0)

    if train:
        # torch.multinomial(p, k) w/o replacement == Gumbel-top-k on log p
        keys = jnp.log(jnp.maximum(p, 1e-30)) + noise_ref[...]
    else:
        # test: torch.topk(p, k)
        keys = p

    # Fused (max-key, min-index tie-break) reduction:
    # f32 keys -> order-preserving int32, clear the low 13 mantissa bits and
    # pack (8191 - flat_idx) there, so a single max reduction yields both the
    # winning key and its index.
    kb = lax.bitcast_convert_type(keys, jnp.int32)
    sortable = jnp.where(kb < 0, kb ^ 0x7FFFFFFF, kb)
    packed = (sortable & ~IDX_MASK) | (IDX_MASK - flat_idx)
    packed = jnp.where(valid, packed, jnp.int32(INT32_MIN))

    out_rows = idx_ref.shape[0]
    pos = (lax.broadcasted_iota(jnp.int32, (out_rows, LANES), 0) * LANES
           + lax.broadcasted_iota(jnp.int32, (out_rows, LANES), 1))

    def body(i, carry):
        packed_keys, out_acc = carry
        # single reduction -> (1, 1) packed winner
        pm = jnp.max(jnp.max(packed_keys, axis=1, keepdims=True),
                     axis=0, keepdims=True)
        sel_idx = IDX_MASK - (pm & IDX_MASK)                     # (1, 1)
        # record the winner at output slot i (single-vreg accumulator)
        out_acc = jnp.where(pos == i,
                            jnp.broadcast_to(sel_idx, (out_rows, LANES)),
                            out_acc)
        # remove the chosen element (sampling WITHOUT replacement)
        packed_keys = jnp.where(flat_idx == sel_idx,
                                jnp.int32(INT32_MIN), packed_keys)
        return packed_keys, out_acc

    _, out_acc = lax.fori_loop(
        0, sample_ct, body,
        (packed, jnp.zeros((out_rows, LANES), jnp.int32)),
        unroll=True)
    idx_ref[...] = out_acc                                       # one store


def _postprocess_kernel(scallop_softmax, res_ref, out_ref):
    x = res_ref[...].astype(jnp.float32)
    if scallop_softmax:                                  # static flag
        m = jnp.max(x, axis=1, keepdims=True)
        e = jnp.exp(x - m)
        x = e / jnp.sum(e, axis=1, keepdims=True)        # torch.softmax(., 1)
    out_ref[...] = jnp.clip(x, 0.0, 1.0)                 # torch.clamp(., 0, 1)


@functools.partial(jax.jit, static_argnames=("train", "sample_ct"))
def sample_transitives(transitivity_probs, seed, *, train, sample_ct):
    """clamp + (multinomial | topk) sampling of `sample_ct` transitive rules."""
    assert sample_ct <= NUM_TRANSITIVES
    n = transitivity_probs.shape[0]
    padded = (jnp.zeros((ROWS * LANES,), jnp.float32)
              .at[:n].set(transitivity_probs.astype(jnp.float32))
              .reshape(ROWS, LANES))
    if train:
        noise = jax.random.gumbel(jax.random.PRNGKey(seed), (ROWS, LANES),
                                  dtype=jnp.float32)
    else:
        noise = jnp.zeros((ROWS, LANES), jnp.float32)

    out_rows = max(8, ((math.ceil(sample_ct / LANES) + 7) // 8) * 8)
    kernel = functools.partial(_sample_kernel, sample_ct, bool(train))
    idx_tile = pl.pallas_call(
        kernel,
        out_shape=jax.ShapeDtypeStruct((out_rows, LANES), jnp.int32),
        in_specs=[pl.BlockSpec(memory_space=pltpu.MemorySpace.VMEM),
                  pl.BlockSpec(memory_space=pltpu.MemorySpace.VMEM)],
        out_specs=pl.BlockSpec(memory_space=pltpu.MemorySpace.VMEM),
    )(padded, noise)

    idx = idx_tile.reshape(-1)[:sample_ct]
    # prob gather + triple decode: tiny integer/gather glue -> plain XLA
    # (also keeps gradients flowing through transitivity_probs like torch).
    probs = jnp.clip(transitivity_probs[idx].astype(jnp.float32), 0.0, 1.0)
    a = idx // (NUM_BASE * NUM_BASE)
    b = (idx // NUM_BASE) % NUM_BASE
    c = idx % NUM_BASE
    return idx, probs, jnp.stack([a, b, c], axis=1)


@functools.partial(jax.jit, static_argnames=("scallop_softmax",))
def postprocess_result(result, *, scallop_softmax):
    kernel = functools.partial(_postprocess_kernel, bool(scallop_softmax))
    return pl.pallas_call(
        kernel,
        out_shape=jax.ShapeDtypeStruct(result.shape, jnp.float32),
        in_specs=[pl.BlockSpec(memory_space=pltpu.MemorySpace.VMEM)],
        out_specs=pl.BlockSpec(memory_space=pltpu.MemorySpace.VMEM),
    )(result.astype(jnp.float32))


class CLUTRRModelPallas:
    """Pallas/JAX port of CLUTRRModel.forward (training-graph tensor math)."""

    def __init__(self, sample_ct=32, scallop_softmax=True):
        self.sample_ct = sample_ct
        self.scallop_softmax = scallop_softmax
        # torch.tensor(np.ones(8000) / 10) -- deterministic init
        self.transitivity_probs = jnp.full((NUM_TRANSITIVES,), 0.1, jnp.float32)

    def forward(self, x, phase='train', seed=0):
        relations, queries = x
        batch = len(relations)

        idx, probs, triples = sample_transitives(
            self.transitivity_probs, seed,
            train=(phase == 'train'), sample_ct=self.sample_ct)

        # The (prob, (a, b, c)) transitive fact list is consumed only by the
        # Scallop symbolic reasoner; idx/probs/triples stay on device so the
        # forward pass does not force a device->host sync.
        # TODO(synk): scallopy.ScallopContext.forward_function('answer') is
        # symbolic differentiable-Datalog reasoning over (context, transitive,
        # question) facts and has no Pallas equivalent; a deterministic
        # placeholder (batch, 21) tensor stands in for `self.reason(...)`.
        reason_out = jax.random.normal(
            jax.random.PRNGKey(42), (batch, NUM_RELATIONS), jnp.float32)

        result = postprocess_result(reason_out,
                                    scallop_softmax=self.scallop_softmax)
        return result, idx, probs, triples


if __name__ == "__main__":
    batch = 2
    # synthetic CLUTRR symbolic inputs: context facts (sub, obj, rel) + queries
    relations = [[(0, 1, 4), (1, 2, 9)], [(0, 1, 12), (1, 2, 2)]]
    queries = [(0, 2), (0, 2)]

    model = CLUTRRModelPallas(sample_ct=32, scallop_softmax=True)

    out_tr, idx_tr, probs_tr, trip_tr = model.forward(
        (relations, queries), phase='train', seed=0)
    out_te, idx_te, probs_te, trip_te = model.forward(
        (relations, queries), phase='test', seed=0)
    jax.block_until_ready((out_tr, out_te, idx_tr, idx_te, probs_tr, probs_te))

    idx_tr_np = np.asarray(idx_tr)
    idx_te_np = np.asarray(idx_te)

    # multinomial without replacement: unique, in-range indices
    assert len(np.unique(idx_tr_np)) == model.sample_ct
    assert (idx_tr_np >= 0).all() and (idx_tr_np < NUM_TRANSITIVES).all()
    # gathered clamped probs are all 0.1 (uniform init)
    assert np.allclose(np.asarray(probs_tr), 0.1, atol=1e-6)
    # test phase: top-k over uniform probs with min-index tie-break
    assert np.array_equal(idx_te_np, np.arange(model.sample_ct))
    # decoded triples match index arithmetic
    t = np.asarray(trip_tr)
    assert np.array_equal(t[:, 0] * 400 + t[:, 1] * 20 + t[:, 2], idx_tr_np)
    # postprocess kernel == softmax then clamp reference
    placeholder = jax.random.normal(
        jax.random.PRNGKey(42), (batch, NUM_RELATIONS), jnp.float32)
    ref = np.clip(np.asarray(jax.nn.softmax(placeholder, axis=1)), 0.0, 1.0)
    assert np.allclose(np.asarray(out_tr), ref, atol=1e-5)
    assert (np.asarray(out_te) >= 0).all() and (np.asarray(out_te) <= 1).all()

    print("KERNEL_OK")
</pallas_src>

<mosaic_0001>
module attributes {stable_mosaic.version = 11 : i64} {
  func.func @_sample_kernel(%arg0: memref<64x128xf32, #tpu.memory_space<vmem>>, %arg1: memref<64x128xf32, #tpu.memory_space<vmem>>, %arg2: memref<8x128xi32, #tpu.memory_space<vmem>>) attributes {dimension_semantics = [], scalar_prefetch = 0 : i64, scratch_operands = 0 : i64, tpu.core_type = #tpu.core_type<tc>} {
    %0 = tpu.iota {dimensions = array<i32: 0>} : vector<64x128xi32>
    %1 = tpu.iota {dimensions = array<i32: 1>} : vector<64x128xi32>
    %c128_i32 = arith.constant 128 : i32
    %2 = vector.broadcast %c128_i32 : i32 to vector<64x128xi32>
    %3 = arith.muli %0, %2 : vector<64x128xi32>
    %4 = arith.addi %3, %1 : vector<64x128xi32>
    %c8000_i32 = arith.constant 8000 : i32
    %5 = vector.broadcast %c8000_i32 : i32 to vector<64x128xi32>
    %6 = arith.cmpi slt, %4, %5 : vector<64x128xi32>
    %c0 = arith.constant 0 : index
    %c0_0 = arith.constant 0 : index
    %7 = vector.load %arg0[%c0, %c0_0] : memref<64x128xf32, #tpu.memory_space<vmem>>, vector<64x128xf32>
    %cst = arith.constant 0.000000e+00 : f32
    %cst_1 = arith.constant 1.000000e+00 : f32
    %8 = vector.broadcast %cst : f32 to vector<64x128xf32>
    %9 = arith.maximumf %8, %7 : vector<64x128xf32>
    %10 = vector.broadcast %cst_1 : f32 to vector<64x128xf32>
    %11 = arith.minimumf %10, %9 : vector<64x128xf32>
    %cst_2 = arith.constant 1.000000e-30 : f32
    %12 = vector.broadcast %cst_2 : f32 to vector<64x128xf32>
    %13 = arith.maximumf %11, %12 : vector<64x128xf32>
    %14 = math.log %13 : vector<64x128xf32>
    %c0_3 = arith.constant 0 : index
    %c0_4 = arith.constant 0 : index
    %15 = vector.load %arg1[%c0_3, %c0_4] : memref<64x128xf32, #tpu.memory_space<vmem>>, vector<64x128xf32>
    %16 = arith.addf %14, %15 : vector<64x128xf32>
    %17 = tpu.bitcast %16 : vector<64x128xf32> -> vector<64x128xi32>
    %c0_i32 = arith.constant 0 : i32
    %18 = vector.broadcast %c0_i32 : i32 to vector<64x128xi32>
    %19 = arith.cmpi slt, %17, %18 : vector<64x128xi32>
    %c2147483647_i32 = arith.constant 2147483647 : i32
    %20 = vector.broadcast %c2147483647_i32 : i32 to vector<64x128xi32>
    %21 = arith.xori %17, %20 : vector<64x128xi32>
    %22 = arith.select %19, %21, %17 : vector<64x128xi1>, vector<64x128xi32>
    %c-8192_i32 = arith.constant -8192 : i32
    %23 = vector.broadcast %c-8192_i32 : i32 to vector<64x128xi32>
    %24 = arith.andi %22, %23 : vector<64x128xi32>
    %c8191_i32 = arith.constant 8191 : i32
    %25 = vector.broadcast %c8191_i32 : i32 to vector<64x128xi32>
    %26 = arith.subi %25, %4 : vector<64x128xi32>
    %27 = arith.ori %24, %26 : vector<64x128xi32>
    %c-2147483648_i32 = arith.constant -2147483648 : i32
    %28 = vector.broadcast %c-2147483648_i32 : i32 to vector<64x128xi32>
    %29 = arith.select %6, %27, %28 : vector<64x128xi1>, vector<64x128xi32>
    %30 = tpu.iota {dimensions = array<i32: 0>} : vector<8x128xi32>
    %c128_i32_5 = arith.constant 128 : i32
    %31 = vector.broadcast %c128_i32_5 : i32 to vector<8x128xi32>
    %32 = arith.muli %30, %31 : vector<8x128xi32>
    %33 = tpu.iota {dimensions = array<i32: 1>} : vector<8x128xi32>
    %34 = arith.addi %32, %33 : vector<8x128xi32>
    %c0_i32_6 = arith.constant 0 : i32
    %35 = vector.broadcast %c0_i32_6 : i32 to vector<8x128xi32>
    %c0_i32_7 = arith.constant 0 : i32
    %cst_8 = arith.constant dense<-2147483648> : vector<64xi32>
    %36 = vector.multi_reduction <maxsi>, %29, %cst_8 [1] : vector<64x128xi32> to vector<64xi32>
    %37 = vector.shape_cast %36 : vector<64xi32> to vector<64x1xi32>
    %cst_9 = arith.constant dense<-2147483648> : vector<1xi32>
    %38 = vector.multi_reduction <maxsi>, %37, %cst_9 [0] : vector<64x1xi32> to vector<1xi32>
    %39 = vector.shape_cast %38 : vector<1xi32> to vector<1x1xi32>
    %c8191_i32_10 = arith.constant 8191 : i32
    %40 = vector.broadcast %c8191_i32_10 : i32 to vector<1x1xi32>
    %41 = arith.andi %39, %40 : vector<1x1xi32>
    %c8191_i32_11 = arith.constant 8191 : i32
    %42 = vector.broadcast %c8191_i32_11 : i32 to vector<1x1xi32>
    %43 = arith.subi %42, %41 : vector<1x1xi32>
    %44 = vector.broadcast %c0_i32_7 : i32 to vector<8x128xi32>
    %45 = arith.cmpi eq, %34, %44 : vector<8x128xi32>
    %46 = vector.shape_cast %43 : vector<1x1xi32> to vector<1x1xi32>
    %47 = vector.broadcast %46 : vector<1x1xi32> to vector<8x128xi32>
    %48 = arith.select %45, %47, %35 : vector<8x128xi1>, vector<8x128xi32>
    %49 = vector.broadcast %43 : vector<1x1xi32> to vector<64x128xi32>
    %50 = arith.cmpi eq, %4, %49 : vector<64x128xi32>
    %c-2147483648_i32_12 = arith.constant -2147483648 : i32
    %51 = vector.broadcast %c-2147483648_i32_12 : i32 to vector<64x128xi32>
    %52 = arith.select %50, %51, %29 : vector<64x128xi1>, vector<64x128xi32>
    %c1_i32 = arith.constant 1 : i32
    %cst_13 = arith.constant dense<-2147483648> : vector<64xi32>
    %53 = vector.multi_reduction <maxsi>, %52, %cst_13 [1] : vector<64x128xi32> to vector<64xi32>
    %54 = vector.shape_cast %53 : vector<64xi32> to vector<64x1xi32>
    %cst_14 = arith.constant dense<-2147483648> : vector<1xi32>
    %55 = vector.multi_reduction <maxsi>, %54, %cst_14 [0] : vector<64x1xi32> to vector<1xi32>
    %56 = vector.shape_cast %55 : vector<1xi32> to vector<1x1xi32>
    %c8191_i32_15 = arith.constant 8191 : i32
    %57 = vector.broadcast %c8191_i32_15 : i32 to vector<1x1xi32>
    %58 = arith.andi %56, %57 : vector<1x1xi32>
    %c8191_i32_16 = arith.constant 8191 : i32
    %59 = vector.broadcast %c8191_i32_16 : i32 to vector<1x1xi32>
    %60 = arith.subi %59, %58 : vector<1x1xi32>
    %61 = vector.broadcast %c1_i32 : i32 to vector<8x128xi32>
    %62 = arith.cmpi eq, %34, %61 : vector<8x128xi32>
    %63 = vector.shape_cast %60 : vector<1x1xi32> to vector<1x1xi32>
    %64 = vector.broadcast %63 : vector<1x1xi32> to vector<8x128xi32>
    %65 = arith.select %62, %64, %48 : vector<8x128xi1>, vector<8x128xi32>
    %66 = vector.broadcast %60 : vector<1x1xi32> to vector<64x128xi32>
    %67 = arith.cmpi eq, %4, %66 : vector<64x128xi32>
    %c-2147483648_i32_17 = arith.constant -2147483648 : i32
    %68 = vector.broadcast %c-2147483648_i32_17 : i32 to vector<64x128xi32>
    %69 = arith.select %67, %68, %52 : vector<64x128xi1>, vector<64x128xi32>
    %c2_i32 = arith.constant 2 : i32
    %cst_18 = arith.constant dense<-2147483648> : vector<64xi32>
    %70 = vector.multi_reduction <maxsi>, %69, %cst_18 [1] : vector<64x128xi32> to vector<64xi32>
    %71 = vector.shape_cast %70 : vector<64xi32> to vector<64x1xi32>
    %cst_19 = arith.constant dense<-2147483648> : vector<1xi32>
    %72 = vector.multi_reduction <maxsi>, %71, %cst_19 [0] : vector<64x1xi32> to vector<1xi32>
    %73 = vector.shape_cast %72 : vector<1xi32> to vector<1x1xi32>
    %c8191_i32_20 = arith.constant 8191 : i32
    %74 = vector.broadcast %c8191_i32_20 : i32 to vector<1x1xi32>
    %75 = arith.andi %73, %74 : vector<1x1xi32>
    %c8191_i32_21 = arith.constant 8191 : i32
    %76 = vector.broadcast %c8191_i32_21 : i32 to vector<1x1xi32>
    %77 = arith.subi %76, %75 : vector<1x1xi32>
    %78 = vector.broadcast %c2_i32 : i32 to vector<8x128xi32>
    %79 = arith.cmpi eq, %34, %78 : vector<8x128xi32>
    %80 = vector.shape_cast %77 : vector<1x1xi32> to vector<1x1xi32>
    %81 = vector.broadcast %80 : vector<1x1xi32> to vector<8x128xi32>
    %82 = arith.select %79, %81, %65 : vector<8x128xi1>, vector<8x128xi32>
    %83 = vector.broadcast %77 : vector<1x1xi32> to vector<64x128xi32>
    %84 = arith.cmpi eq, %4, %83 : vector<64x128xi32>
    %c-2147483648_i32_22 = arith.constant -2147483648 : i32
    %85 = vector.broadcast %c-2147483648_i32_22 : i32 to vector<64x128xi32>
    %86 = arith.select %84, %85, %69 : vector<64x128xi1>, vector<64x128xi32>
    %c3_i32 = arith.constant 3 : i32
    %cst_23 = arith.constant dense<-2147483648> : vector<64xi32>
    %87 = vector.multi_reduction <maxsi>, %86, %cst_23 [1] : vector<64x128xi32> to vector<64xi32>
    %88 = vector.shape_cast %87 : vector<64xi32> to vector<64x1xi32>
    %cst_24 = arith.constant dense<-2147483648> : vector<1xi32>
    %89 = vector.multi_reduction <maxsi>, %88, %cst_24 [0] : vector<64x1xi32> to vector<1xi32>
    %90 = vector.shape_cast %89 : vector<1xi32> to vector<1x1xi32>
    %c8191_i32_25 = arith.constant 8191 : i32
    %91 = vector.broadcast %c8191_i32_25 : i32 to vector<1x1xi32>
    %92 = arith.andi %90, %91 : vector<1x1xi32>
    %c8191_i32_26 = arith.constant 8191 : i32
    %93 = vector.broadcast %c8191_i32_26 : i32 to vector<1x1xi32>
    %94 = arith.subi %93, %92 : vector<1x1xi32>
    %95 = vector.broadcast %c3_i32 : i32 to vector<8x128xi32>
    %96 = arith.cmpi eq, %34, %95 : vector<8x128xi32>
    %97 = vector.shape_cast %94 : vector<1x1xi32> to vector<1x1xi32>
    %98 = vector.broadcast %97 : vector<1x1xi32> to vector<8x128xi32>
    %99 = arith.select %96, %98, %82 : vector<8x128xi1>, vector<8x128xi32>
    %100 = vector.broadcast %94 : vector<1x1xi32> to vector<64x128xi32>
    %101 = arith.cmpi eq, %4, %100 : vector<64x128xi32>
    %c-2147483648_i32_27 = arith.constant -2147483648 : i32
    %102 = vector.broadcast %c-2147483648_i32_27 : i32 to vector<64x128xi32>
    %103 = arith.select %101, %102, %86 : vector<64x128xi1>, vector<64x128xi32>
    %c4_i32 = arith.constant 4 : i32
    %cst_28 = arith.constant dense<-2147483648> : vector<64xi32>
    %104 = vector.multi_reduction <maxsi>, %103, %cst_28 [1] : vector<64x128xi32> to vector<64xi32>
    %105 = vector.shape_cast %104 : vector<64xi32> to vector<64x1xi32>
    %cst_29 = arith.constant dense<-2147483648> : vector<1xi32>
    %106 = vector.multi_reduction <maxsi>, %105, %cst_29 [0] : vector<64x1xi32> to vector<1xi32>
    %107 = vector.shape_cast %106 : vector<1xi32> to vector<1x1xi32>
    %c8191_i32_30 = arith.constant 8191 : i32
    %108 = vector.broadcast %c8191_i32_30 : i32 to vector<1x1xi32>
    %109 = arith.andi %107, %108 : vector<1x1xi32>
    %c8191_i32_31 = arith.constant 8191 : i32
    %110 = vector.broadcast %c8191_i32_31 : i32 to vector<1x1xi32>
    %111 = arith.subi %110, %109 : vector<1x1xi32>
    %112 = vector.broadcast %c4_i32 : i32 to vector<8x128xi32>
    %113 = arith.cmpi eq, %34, %112 : vector<8x128xi32>
    %114 = vector.shape_cast %111 : vector<1x1xi32> to vector<1x1xi32>
    %115 = vector.broadcast %114 : vector<1x1xi32> to vector<8x128xi32>
    %116 = arith.select %113, %115, %99 : vector<8x128xi1>, vector<8x128xi32>
    %117 = vector.broadcast %111 : vector<1x1xi32> to vector<64x128xi32>
    %118 = arith.cmpi eq, %4, %117 : vector<64x128xi32>
    %c-2147483648_i32_32 = arith.constant -2147483648 : i32
    %119 = vector.broadcast %c-2147483648_i32_32 : i32 to vector<64x128xi32>
    %120 = arith.select %118, %119, %103 : vector<64x128xi1>, vector<64x128xi32>
    %c5_i32 = arith.constant 5 : i32
    %cst_33 = arith.constant dense<-2147483648> : vector<64xi32>
    %121 = vector.multi_reduction <maxsi>, %120, %cst_33 [1] : vector<64x128xi32> to vector<64xi32>
    %122 = vector.shape_cast %121 : vector<64xi32> to vector<64x1xi32>
    %cst_34 = arith.constant dense<-2147483648> : vector<1xi32>
    %123 = vector.multi_reduction <maxsi>, %122, %cst_34 [0] : vector<64x1xi32> to vector<1xi32>
    %124 = vector.shape_cast %123 : vector<1xi32> to vector<1x1xi32>
    %c8191_i32_35 = arith.constant 8191 : i32
    %125 = vector.broadcast %c8191_i32_35 : i32 to vector<1x1xi32>
    %126 = arith.andi %124, %125 : vector<1x1xi32>
    %c8191_i32_36 = arith.constant 8191 : i32
    %127 = vector.broadcast %c8191_i32_36 : i32 to vector<1x1xi32>
    %128 = arith.subi %127, %126 : vector<1x1xi32>
    %129 = vector.broadcast %c5_i32 : i32 to vector<8x128xi32>
    %130 = arith.cmpi eq, %34, %129 : vector<8x128xi32>
    %131 = vector.shape_cast %128 : vector<1x1xi32> to vector<1x1xi32>
    %132 = vector.broadcast %131 : vector<1x1xi32> to vector<8x128xi32>
    %133 = arith.select %130, %132, %116 : vector<8x128xi1>, vector<8x128xi32>
    %134 = vector.broadcast %128 : vector<1x1xi32> to vector<64x128xi32>
    %135 = arith.cmpi eq, %4, %134 : vector<64x128xi32>
    %c-2147483648_i32_37 = arith.constant -2147483648 : i32
    %136 = vector.broadcast %c-2147483648_i32_37 : i32 to vector<64x128xi32>
    %137 = arith.select %135, %136, %120 : vector<64x128xi1>, vector<64x128xi32>
    %c6_i32 = arith.constant 6 : i32
    %cst_38 = arith.constant dense<-2147483648> : vector<64xi32>
    %138 = vector.multi_reduction <maxsi>, %137, %cst_38 [1] : vector<64x128xi32> to vector<64xi32>
    %139 = vector.shape_cast %138 : vector<64xi32> to vector<64x1xi32>
    %cst_39 = arith.constant dense<-2147483648> : vector<1xi32>
    %140 = vector.multi_reduction <maxsi>, %139, %cst_39 [0] : vector<64x1xi32> to vector<1xi32>
    %141 = vector.shape_cast %140 : vector<1xi32> to vector<1x1xi32>
    %c8191_i32_40 = arith.constant 8191 : i32
    %142 = vector.broadcast %c8191_i32_40 : i32 to vector<1x1xi32>
    %143 = arith.andi %141, %142 : vector<1x1xi32>
    %c8191_i32_41 = arith.constant 8191 : i32
    %144 = vector.broadcast %c8191_i32_41 : i32 to vector<1x1xi32>
    %145 = arith.subi %144, %143 : vector<1x1xi32>
    %146 = vector.broadcast %c6_i32 : i32 to vector<8x128xi32>
    %147 = arith.cmpi eq, %34, %146 : vector<8x128xi32>
    %148 = vector.shape_cast %145 : vector<1x1xi32> to vector<1x1xi32>
    %149 = vector.broadcast %148 : vector<1x1xi32> to vector<8x128xi32>
    %150 = arith.select %147, %149, %133 : vector<8x128xi1>, vector<8x128xi32>
    %151 = vector.broadcast %145 : vector<1x1xi32> to vector<64x128xi32>
    %152 = arith.cmpi eq, %4, %151 : vector<64x128xi32>
    %c-2147483648_i32_42 = arith.constant -2147483648 : i32
    %153 = vector.broadcast %c-2147483648_i32_42 : i32 to vector<64x128xi32>
    %154 = arith.select %152, %153, %137 : vector<64x128xi1>, vector<64x128xi32>
    %c7_i32 = arith.constant 7 : i32
    %cst_43 = arith.constant dense<-2147483648> : vector<64xi32>
    %155 = vector.multi_reduction <maxsi>, %154, %cst_43 [1] : vector<64x128xi32> to vector<64xi32>
    %156 = vector.shape_cast %155 : vector<64xi32> to vector<64x1xi32>
    %cst_44 = arith.constant dense<-2147483648> : vector<1xi32>
    %157 = vector.multi_reduction <maxsi>, %156, %cst_44 [0] : vector<64x1xi32> to vector<1xi32>
    %158 = vector.shape_cast %157 : vector<1xi32> to vector<1x1xi32>
    %c8191_i32_45 = arith.constant 8191 : i32
    %159 = vector.broadcast %c8191_i32_45 : i32 to vector<1x1xi32>
    %160 = arith.andi %158, %159 : vector<1x1xi32>
    %c8191_i32_46 = arith.constant 8191 : i32
    %161 = vector.broadcast %c8191_i32_46 : i32 to vector<1x1xi32>
    %162 = arith.subi %161, %160 : vector<1x1xi32>
    %163 = vector.broadcast %c7_i32 : i32 to vector<8x128xi32>
    %164 = arith.cmpi eq, %34, %163 : vector<8x128xi32>
    %165 = vector.shape_cast %162 : vector<1x1xi32> to vector<1x1xi32>
    %166 = vector.broadcast %165 : vector<1x1xi32> to vector<8x128xi32>
    %167 = arith.select %164, %166, %150 : vector<8x128xi1>, vector<8x128xi32>
    %168 = vector.broadcast %162 : vector<1x1xi32> to vector<64x128xi32>
    %169 = arith.cmpi eq, %4, %168 : vector<64x128xi32>
    %c-2147483648_i32_47 = arith.constant -2147483648 : i32
    %170 = vector.broadcast %c-2147483648_i32_47 : i32 to vector<64x128xi32>
    %171 = arith.select %169, %170, %154 : vector<64x128xi1>, vector<64x128xi32>
    %c8_i32 = arith.constant 8 : i32
    %cst_48 = arith.constant dense<-2147483648> : vector<64xi32>
    %172 = vector.multi_reduction <maxsi>, %171, %cst_48 [1] : vector<64x128xi32> to vector<64xi32>
    %173 = vector.shape_cast %172 : vector<64xi32> to vector<64x1xi32>
    %cst_49 = arith.constant dense<-2147483648> : vector<1xi32>
    %174 = vector.multi_reduction <maxsi>, %173, %cst_49 [0] : vector<64x1xi32> to vector<1xi32>
    %175 = vector.shape_cast %174 : vector<1xi32> to vector<1x1xi32>
    %c8191_i32_50 = arith.constant 8191 : i32
    %176 = vector.broadcast %c8191_i32_50 : i32 to vector<1x1xi32>
    %177 = arith.andi %175, %176 : vector<1x1xi32>
    %c8191_i32_51 = arith.constant 8191 : i32
    %178 = vector.broadcast %c8191_i32_51 : i32 to vector<1x1xi32>
    %179 = arith.subi %178, %177 : vector<1x1xi32>
    %180 = vector.broadcast %c8_i32 : i32 to vector<8x128xi32>
    %181 = arith.cmpi eq, %34, %180 : vector<8x128xi32>
    %182 = vector.shape_cast %179 : vector<1x1xi32> to vector<1x1xi32>
    %183 = vector.broadcast %182 : vector<1x1xi32> to vector<8x128xi32>
    %184 = arith.select %181, %183, %167 : vector<8x128xi1>, vector<8x128xi32>
    %185 = vector.broadcast %179 : vector<1x1xi32> to vector<64x128xi32>
    %186 = arith.cmpi eq, %4, %185 : vector<64x128xi32>
    %c-2147483648_i32_52 = arith.constant -2147483648 : i32
    %187 = vector.broadcast %c-2147483648_i32_52 : i32 to vector<64x128xi32>
    %188 = arith.select %186, %187, %171 : vector<64x128xi1>, vector<64x128xi32>
    %c9_i32 = arith.constant 9 : i32
    %cst_53 = arith.constant dense<-2147483648> : vector<64xi32>
    %189 = vector.multi_reduction <maxsi>, %188, %cst_53 [1] : vector<64x128xi32> to vector<64xi32>
    %190 = vector.shape_cast %189 : vector<64xi32> to vector<64x1xi32>
    %cst_54 = arith.constant dense<-2147483648> : vector<1xi32>
    %191 = vector.multi_reduction <maxsi>, %190, %cst_54 [0] : vector<64x1xi32> to vector<1xi32>
    %192 = vector.shape_cast %191 : vector<1xi32> to vector<1x1xi32>
    %c8191_i32_55 = arith.constant 8191 : i32
    %193 = vector.broadcast %c8191_i32_55 : i32 to vector<1x1xi32>
    %194 = arith.andi %192, %193 : vector<1x1xi32>
    %c8191_i32_56 = arith.constant 8191 : i32
    %195 = vector.broadcast %c8191_i32_56 : i32 to vector<1x1xi32>
    %196 = arith.subi %195, %194 : vector<1x1xi32>
    %197 = vector.broadcast %c9_i32 : i32 to vector<8x128xi32>
    %198 = arith.cmpi eq, %34, %197 : vector<8x128xi32>
    %199 = vector.shape_cast %196 : vector<1x1xi32> to vector<1x1xi32>
    %200 = vector.broadcast %199 : vector<1x1xi32> to vector<8x128xi32>
    %201 = arith.select %198, %200, %184 : vector<8x128xi1>, vector<8x128xi32>
    %202 = vector.broadcast %196 : vector<1x1xi32> to vector<64x128xi32>
    %203 = arith.cmpi eq, %4, %202 : vector<64x128xi32>
    %c-2147483648_i32_57 = arith.constant -2147483648 : i32
    %204 = vector.broadcast %c-2147483648_i32_57 : i32 to vector<64x128xi32>
    %205 = arith.select %203, %204, %188 : vector<64x128xi1>, vector<64x128xi32>
    %c10_i32 = arith.constant 10 : i32
    %cst_58 = arith.constant dense<-2147483648> : vector<64xi32>
    %206 = vector.multi_reduction <maxsi>, %205, %cst_58 [1] : vector<64x128xi32> to vector<64xi32>
    %207 = vector.shape_cast %206 : vector<64xi32> to vector<64x1xi32>
    %cst_59 = arith.constant dense<-2147483648> : vector<1xi32>
    %208 = vector.multi_reduction <maxsi>, %207, %cst_59 [0] : vector<64x1xi32> to vector<1xi32>
    %209 = vector.shape_cast %208 : vector<1xi32> to vector<1x1xi32>
    %c8191_i32_60 = arith.constant 8191 : i32
    %210 = vector.broadcast %c8191_i32_60 : i32 to vector<1x1xi32>
    %211 = arith.andi %209, %210 : vector<1x1xi32>
    %c8191_i32_61 = arith.constant 8191 : i32
    %212 = vector.broadcast %c8191_i32_61 : i32 to vector<1x1xi32>
    %213 = arith.subi %212, %211 : vector<1x1xi32>
    %214 = vector.broadcast %c10_i32 : i32 to vector<8x128xi32>
    %215 = arith.cmpi eq, %34, %214 : vector<8x128xi32>
    %216 = vector.shape_cast %213 : vector<1x1xi32> to vector<1x1xi32>
    %217 = vector.broadcast %216 : vector<1x1xi32> to vector<8x128xi32>
    %218 = arith.select %215, %217, %201 : vector<8x128xi1>, vector<8x128xi32>
    %219 = vector.broadcast %213 : vector<1x1xi32> to vector<64x128xi32>
    %220 = arith.cmpi eq, %4, %219 : vector<64x128xi32>
    %c-2147483648_i32_62 = arith.constant -2147483648 : i32
    %221 = vector.broadcast %c-2147483648_i32_62 : i32 to vector<64x128xi32>
    %222 = arith.select %220, %221, %205 : vector<64x128xi1>, vector<64x128xi32>
    %c11_i32 = arith.constant 11 : i32
    %cst_63 = arith.constant dense<-2147483648> : vector<64xi32>
    %223 = vector.multi_reduction <maxsi>, %222, %cst_63 [1] : vector<64x128xi32> to vector<64xi32>
    %224 = vector.shape_cast %223 : vector<64xi32> to vector<64x1xi32>
    %cst_64 = arith.constant dense<-2147483648> : vector<1xi32>
    %225 = vector.multi_reduction <maxsi>, %224, %cst_64 [0] : vector<64x1xi32> to vector<1xi32>
    %226 = vector.shape_cast %225 : vector<1xi32> to vector<1x1xi32>
    %c8191_i32_65 = arith.constant 8191 : i32
    %227 = vector.broadcast %c8191_i32_65 : i32 to vector<1x1xi32>
    %228 = arith.andi %226, %227 : vector<1x1xi32>
    %c8191_i32_66 = arith.constant 8191 : i32
    %229 = vector.broadcast %c8191_i32_66 : i32 to vector<1x1xi32>
    %230 = arith.subi %229, %228 : vector<1x1xi32>
    %231 = vector.broadcast %c11_i32 : i32 to vector<8x128xi32>
    %232 = arith.cmpi eq, %34, %231 : vector<8x128xi32>
    %233 = vector.shape_cast %230 : vector<1x1xi32> to vector<1x1xi32>
    %234 = vector.broadcast %233 : vector<1x1xi32> to vector<8x128xi32>
    %235 = arith.select %232, %234, %218 : vector<8x128xi1>, vector<8x128xi32>
    %236 = vector.broadcast %230 : vector<1x1xi32> to vector<64x128xi32>
    %237 = arith.cmpi eq, %4, %236 : vector<64x128xi32>
    %c-2147483648_i32_67 = arith.constant -2147483648 : i32
    %238 = vector.broadcast %c-2147483648_i32_67 : i32 to vector<64x128xi32>
    %239 = arith.select %237, %238, %222 : vector<64x128xi1>, vector<64x128xi32>
    %c12_i32 = arith.constant 12 : i32
    %cst_68 = arith.constant dense<-2147483648> : vector<64xi32>
    %240 = vector.multi_reduction <maxsi>, %239, %cst_68 [1] : vector<64x128xi32> to vector<64xi32>
    %241 = vector.shape_cast %240 : vector<64xi32> to vector<64x1xi32>
    %cst_69 = arith.constant dense<-2147483648> : vector<1xi32>
    %242 = vector.multi_reduction <maxsi>, %241, %cst_69 [0] : vector<64x1xi32> to vector<1xi32>
    %243 = vector.shape_cast %242 : vector<1xi32> to vector<1x1xi32>
    %c8191_i32_70 = arith.constant 8191 : i32
    %244 = vector.broadcast %c8191_i32_70 : i32 to vector<1x1xi32>
    %245 = arith.andi %243, %244 : vector<1x1xi32>
    %c8191_i32_71 = arith.constant 8191 : i32
    %246 = vector.broadcast %c8191_i32_71 : i32 to vector<1x1xi32>
    %247 = arith.subi %246, %245 : vector<1x1xi32>
    %248 = vector.broadcast %c12_i32 : i32 to vector<8x128xi32>
    %249 = arith.cmpi eq, %34, %248 : vector<8x128xi32>
    %250 = vector.shape_cast %247 : vector<1x1xi32> to vector<1x1xi32>
    %251 = vector.broadcast %250 : vector<1x1xi32> to vector<8x128xi32>
    %252 = arith.select %249, %251, %235 : vector<8x128xi1>, vector<8x128xi32>
    %253 = vector.broadcast %247 : vector<1x1xi32> to vector<64x128xi32>
    %254 = arith.cmpi eq, %4, %253 : vector<64x128xi32>
    %c-2147483648_i32_72 = arith.constant -2147483648 : i32
    %255 = vector.broadcast %c-2147483648_i32_72 : i32 to vector<64x128xi32>
    %256 = arith.select %254, %255, %239 : vector<64x128xi1>, vector<64x128xi32>
    %c13_i32 = arith.constant 13 : i32
    %cst_73 = arith.constant dense<-2147483648> : vector<64xi32>
    %257 = vector.multi_reduction <maxsi>, %256, %cst_73 [1] : vector<64x128xi32> to vector<64xi32>
    %258 = vector.shape_cast %257 : vector<64xi32> to vector<64x1xi32>
    %cst_74 = arith.constant dense<-2147483648> : vector<1xi32>
    %259 = vector.multi_reduction <maxsi>, %258, %cst_74 [0] : vector<64x1xi32> to vector<1xi32>
    %260 = vector.shape_cast %259 : vector<1xi32> to vector<1x1xi32>
    %c8191_i32_75 = arith.constant 8191 : i32
    %261 = vector.broadcast %c8191_i32_75 : i32 to vector<1x1xi32>
    %262 = arith.andi %260, %261 : vector<1x1xi32>
    %c8191_i32_76 = arith.constant 8191 : i32
    %263 = vector.broadcast %c8191_i32_76 : i32 to vector<1x1xi32>
    %264 = arith.subi %263, %262 : vector<1x1xi32>
    %265 = vector.broadcast %c13_i32 : i32 to vector<8x128xi32>
    %266 = arith.cmpi eq, %34, %265 : vector<8x128xi32>
    %267 = vector.shape_cast %264 : vector<1x1xi32> to vector<1x1xi32>
    %268 = vector.broadcast %267 : vector<1x1xi32> to vector<8x128xi32>
    %269 = arith.select %266, %268, %252 : vector<8x128xi1>, vector<8x128xi32>
    %270 = vector.broadcast %264 : vector<1x1xi32> to vector<64x128xi32>
    %271 = arith.cmpi eq, %4, %270 : vector<64x128xi32>
    %c-2147483648_i32_77 = arith.constant -2147483648 : i32
    %272 = vector.broadcast %c-2147483648_i32_77 : i32 to vector<64x128xi32>
    %273 = arith.select %271, %272, %256 : vector<64x128xi1>, vector<64x128xi32>
    %c14_i32 = arith.constant 14 : i32
    %cst_78 = arith.constant dense<-2147483648> : vector<64xi32>
    %274 = vector.multi_reduction <maxsi>, %273, %cst_78 [1] : vector<64x128xi32> to vector<64xi32>
    %275 = vector.shape_cast %274 : vector<64xi32> to vector<64x1xi32>
    %cst_79 = arith.constant dense<-2147483648> : vector<1xi32>
    %276 = vector.multi_reduction <maxsi>, %275, %cst_79 [0] : vector<64x1xi32> to vector<1xi32>
    %277 = vector.shape_cast %276 : vector<1xi32> to vector<1x1xi32>
    %c8191_i32_80 = arith.constant 8191 : i32
    %278 = vector.broadcast %c8191_i32_80 : i32 to vector<1x1xi32>
    %279 = arith.andi %277, %278 : vector<1x1xi32>
    %c8191_i32_81 = arith.constant 8191 : i32
    %280 = vector.broadcast %c8191_i32_81 : i32 to vector<1x1xi32>
    %281 = arith.subi %280, %279 : vector<1x1xi32>
    %282 = vector.broadcast %c14_i32 : i32 to vector<8x128xi32>
    %283 = arith.cmpi eq, %34, %282 : vector<8x128xi32>
    %284 = vector.shape_cast %281 : vector<1x1xi32> to vector<1x1xi32>
    %285 = vector.broadcast %284 : vector<1x1xi32> to vector<8x128xi32>
    %286 = arith.select %283, %285, %269 : vector<8x128xi1>, vector<8x128xi32>
    %287 = vector.broadcast %281 : vector<1x1xi32> to vector<64x128xi32>
    %288 = arith.cmpi eq, %4, %287 : vector<64x128xi32>
    %c-2147483648_i32_82 = arith.constant -2147483648 : i32
    %289 = vector.broadcast %c-2147483648_i32_82 : i32 to vector<64x128xi32>
    %290 = arith.select %288, %289, %273 : vector<64x128xi1>, vector<64x128xi32>
    %c15_i32 = arith.constant 15 : i32
    %cst_83 = arith.constant dense<-2147483648> : vector<64xi32>
    %291 = vector.multi_reduction <maxsi>, %290, %cst_83 [1] : vector<64x128xi32> to vector<64xi32>
    %292 = vector.shape_cast %291 : vector<64xi32> to vector<64x1xi32>
    %cst_84 = arith.constant dense<-2147483648> : vector<1xi32>
    %293 = vector.multi_reduction <maxsi>, %292, %cst_84 [0] : vector<64x1xi32> to vector<1xi32>
    %294 = vector.shape_cast %293 : vector<1xi32> to vector<1x1xi32>
    %c8191_i32_85 = arith.constant 8191 : i32
    %295 = vector.broadcast %c8191_i32_85 : i32 to vector<1x1xi32>
    %296 = arith.andi %294, %295 : vector<1x1xi32>
    %c8191_i32_86 = arith.constant 8191 : i32
    %297 = vector.broadcast %c8191_i32_86 : i32 to vector<1x1xi32>
    %298 = arith.subi %297, %296 : vector<1x1xi32>
    %299 = vector.broadcast %c15_i32 : i32 to vector<8x128xi32>
    %300 = arith.cmpi eq, %34, %299 : vector<8x128xi32>
    %301 = vector.shape_cast %298 : vector<1x1xi32> to vector<1x1xi32>
    %302 = vector.broadcast %301 : vector<1x1xi32> to vector<8x128xi32>
    %303 = arith.select %300, %302, %286 : vector<8x128xi1>, vector<8x128xi32>
    %304 = vector.broadcast %298 : vector<1x1xi32> to vector<64x128xi32>
    %305 = arith.cmpi eq, %4, %304 : vector<64x128xi32>
    %c-2147483648_i32_87 = arith.constant -2147483648 : i32
    %306 = vector.broadcast %c-2147483648_i32_87 : i32 to vector<64x128xi32>
    %307 = arith.select %305, %306, %290 : vector<64x128xi1>, vector<64x128xi32>
    %c16_i32 = arith.constant 16 : i32
    %cst_88 = arith.constant dense<-2147483648> : vector<64xi32>
    %308 = vector.multi_reduction <maxsi>, %307, %cst_88 [1] : vector<64x128xi32> to vector<64xi32>
    %309 = vector.shape_cast %308 : vector<64xi32> to vector<64x1xi32>
    %cst_89 = arith.constant dense<-2147483648> : vector<1xi32>
    %310 = vector.multi_reduction <maxsi>, %309, %cst_89 [0] : vector<64x1xi32> to vector<1xi32>
    %311 = vector.shape_cast %310 : vector<1xi32> to vector<1x1xi32>
    %c8191_i32_90 = arith.constant 8191 : i32
    %312 = vector.broadcast %c8191_i32_90 : i32 to vector<1x1xi32>
    %313 = arith.andi %311, %312 : vector<1x1xi32>
    %c8191_i32_91 = arith.constant 8191 : i32
    %314 = vector.broadcast %c8191_i32_91 : i32 to vector<1x1xi32>
    %315 = arith.subi %314, %313 : vector<1x1xi32>
    %316 = vector.broadcast %c16_i32 : i32 to vector<8x128xi32>
    %317 = arith.cmpi eq, %34, %316 : vector<8x128xi32>
    %318 = vector.shape_cast %315 : vector<1x1xi32> to vector<1x1xi32>
    %319 = vector.broadcast %318 : vector<1x1xi32> to vector<8x128xi32>
    %320 = arith.select %317, %319, %303 : vector<8x128xi1>, vector<8x128xi32>
    %321 = vector.broadcast %315 : vector<1x1xi32> to vector<64x128xi32>
    %322 = arith.cmpi eq, %4, %321 : vector<64x128xi32>
    %c-2147483648_i32_92 = arith.constant -2147483648 : i32
    %323 = vector.broadcast %c-2147483648_i32_92 : i32 to vector<64x128xi32>
    %324 = arith.select %322, %323, %307 : vector<64x128xi1>, vector<64x128xi32>
    %c17_i32 = arith.constant 17 : i32
    %cst_93 = arith.constant dense<-2147483648> : vector<64xi32>
    %325 = vector.multi_reduction <maxsi>, %324, %cst_93 [1] : vector<64x128xi32> to vector<64xi32>
    %326 = vector.shape_cast %325 : vector<64xi32> to vector<64x1xi32>
    %cst_94 = arith.constant dense<-2147483648> : vector<1xi32>
    %327 = vector.multi_reduction <maxsi>, %326, %cst_94 [0] : vector<64x1xi32> to vector<1xi32>
    %328 = vector.shape_cast %327 : vector<1xi32> to vector<1x1xi32>
    %c8191_i32_95 = arith.constant 8191 : i32
    %329 = vector.broadcast %c8191_i32_95 : i32 to vector<1x1xi32>
    %330 = arith.andi %328, %329 : vector<1x1xi32>
    %c8191_i32_96 = arith.constant 8191 : i32
    %331 = vector.broadcast %c8191_i32_96 : i32 to vector<1x1xi32>
    %332 = arith.subi %331, %330 : vector<1x1xi32>
    %333 = vector.broadcast %c17_i32 : i32 to vector<8x128xi32>
    %334 = arith.cmpi eq, %34, %333 : vector<8x128xi32>
    %335 = vector.shape_cast %332 : vector<1x1xi32> to vector<1x1xi32>
    %336 = vector.broadcast %335 : vector<1x1xi32> to vector<8x128xi32>
    %337 = arith.select %334, %336, %320 : vector<8x128xi1>, vector<8x128xi32>
    %338 = vector.broadcast %332 : vector<1x1xi32> to vector<64x128xi32>
    %339 = arith.cmpi eq, %4, %338 : vector<64x128xi32>
    %c-2147483648_i32_97 = arith.constant -2147483648 : i32
    %340 = vector.broadcast %c-2147483648_i32_97 : i32 to vector<64x128xi32>
    %341 = arith.select %339, %340, %324 : vector<64x128xi1>, vector<64x128xi32>
    %c18_i32 = arith.constant 18 : i32
    %cst_98 = arith.constant dense<-2147483648> : vector<64xi32>
    %342 = vector.multi_reduction <maxsi>, %341, %cst_98 [1] : vector<64x128xi32> to vector<64xi32>
    %343 = vector.shape_cast %342 : vector<64xi32> to vector<64x1xi32>
    %cst_99 = arith.constant dense<-2147483648> : vector<1xi32>
    %344 = vector.multi_reduction <maxsi>, %343, %cst_99 [0] : vector<64x1xi32> to vector<1xi32>
    %345 = vector.shape_cast %344 : vector<1xi32> to vector<1x1xi32>
    %c8191_i32_100 = arith.constant 8191 : i32
    %346 = vector.broadcast %c8191_i32_100 : i32 to vector<1x1xi32>
    %347 = arith.andi %345, %346 : vector<1x1xi32>
    %c8191_i32_101 = arith.constant 8191 : i32
    %348 = vector.broadcast %c8191_i32_101 : i32 to vector<1x1xi32>
    %349 = arith.subi %348, %347 : vector<1x1xi32>
    %350 = vector.broadcast %c18_i32 : i32 to vector<8x128xi32>
    %351 = arith.cmpi eq, %34, %350 : vector<8x128xi32>
    %352 = vector.shape_cast %349 : vector<1x1xi32> to vector<1x1xi32>
    %353 = vector.broadcast %352 : vector<1x1xi32> to vector<8x128xi32>
    %354 = arith.select %351, %353, %337 : vector<8x128xi1>, vector<8x128xi32>
    %355 = vector.broadcast %349 : vector<1x1xi32> to vector<64x128xi32>
    %356 = arith.cmpi eq, %4, %355 : vector<64x128xi32>
    %c-2147483648_i32_102 = arith.constant -2147483648 : i32
    %357 = vector.broadcast %c-2147483648_i32_102 : i32 to vector<64x128xi32>
    %358 = arith.select %356, %357, %341 : vector<64x128xi1>, vector<64x128xi32>
    %c19_i32 = arith.constant 19 : i32
    %cst_103 = arith.constant dense<-2147483648> : vector<64xi32>
    %359 = vector.multi_reduction <maxsi>, %358, %cst_103 [1] : vector<64x128xi32> to vector<64xi32>
    %360 = vector.shape_cast %359 : vector<64xi32> to vector<64x1xi32>
    %cst_104 = arith.constant dense<-2147483648> : vector<1xi32>
    %361 = vector.multi_reduction <maxsi>, %360, %cst_104 [0] : vector<64x1xi32> to vector<1xi32>
    %362 = vector.shape_cast %361 : vector<1xi32> to vector<1x1xi32>
    %c8191_i32_105 = arith.constant 8191 : i32
    %363 = vector.broadcast %c8191_i32_105 : i32 to vector<1x1xi32>
    %364 = arith.andi %362, %363 : vector<1x1xi32>
    %c8191_i32_106 = arith.constant 8191 : i32
    %365 = vector.broadcast %c8191_i32_106 : i32 to vector<1x1xi32>
    %366 = arith.subi %365, %364 : vector<1x1xi32>
    %367 = vector.broadcast %c19_i32 : i32 to vector<8x128xi32>
    %368 = arith.cmpi eq, %34, %367 : vector<8x128xi32>
    %369 = vector.shape_cast %366 : vector<1x1xi32> to vector<1x1xi32>
    %370 = vector.broadcast %369 : vector<1x1xi32> to vector<8x128xi32>
    %371 = arith.select %368, %370, %354 : vector<8x128xi1>, vector<8x128xi32>
    %372 = vector.broadcast %366 : vector<1x1xi32> to vector<64x128xi32>
    %373 = arith.cmpi eq, %4, %372 : vector<64x128xi32>
    %c-2147483648_i32_107 = arith.constant -2147483648 : i32
    %374 = vector.broadcast %c-2147483648_i32_107 : i32 to vector<64x128xi32>
    %375 = arith.select %373, %374, %358 : vector<64x128xi1>, vector<64x128xi32>
    %c20_i32 = arith.constant 20 : i32
    %cst_108 = arith.constant dense<-2147483648> : vector<64xi32>
    %376 = vector.multi_reduction <maxsi>, %375, %cst_108 [1] : vector<64x128xi32> to vector<64xi32>
    %377 = vector.shape_cast %376 : vector<64xi32> to vector<64x1xi32>
    %cst_109 = arith.constant dense<-2147483648> : vector<1xi32>
    %378 = vector.multi_reduction <maxsi>, %377, %cst_109 [0] : vector<64x1xi32> to vector<1xi32>
    %379 = vector.shape_cast %378 : vector<1xi32> to vector<1x1xi32>
    %c8191_i32_110 = arith.constant 8191 : i32
    %380 = vector.broadcast %c8191_i32_110 : i32 to vector<1x1xi32>
    %381 = arith.andi %379, %380 : vector<1x1xi32>
    %c8191_i32_111 = arith.constant 8191 : i32
    %382 = vector.broadcast %c8191_i32_111 : i32 to vector<1x1xi32>
    %383 = arith.subi %382, %381 : vector<1x1xi32>
    %384 = vector.broadcast %c20_i32 : i32 to vector<8x128xi32>
    %385 = arith.cmpi eq, %34, %384 : vector<8x128xi32>
    %386 = vector.shape_cast %383 : vector<1x1xi32> to vector<1x1xi32>
    %387 = vector.broadcast %386 : vector<1x1xi32> to vector<8x128xi32>
    %388 = arith.select %385, %387, %371 : vector<8x128xi1>, vector<8x128xi32>
    %389 = vector.broadcast %383 : vector<1x1xi32> to vector<64x128xi32>
    %390 = arith.cmpi eq, %4, %389 : vector<64x128xi32>
    %c-2147483648_i32_112 = arith.constant -2147483648 : i32
    %391 = vector.broadcast %c-2147483648_i32_112 : i32 to vector<64x128xi32>
    %392 = arith.select %390, %391, %375 : vector<64x128xi1>, vector<64x128xi32>
    %c21_i32 = arith.constant 21 : i32
    %cst_113 = arith.constant dense<-2147483648> : vector<64xi32>
    %393 = vector.multi_reduction <maxsi>, %392, %cst_113 [1] : vector<64x128xi32> to vector<64xi32>
    %394 = vector.shape_cast %393 : vector<64xi32> to vector<64x1xi32>
    %cst_114 = arith.constant dense<-2147483648> : vector<1xi32>
    %395 = vector.multi_reduction <maxsi>, %394, %cst_114 [0] : vector<64x1xi32> to vector<1xi32>
    %396 = vector.shape_cast %395 : vector<1xi32> to vector<1x1xi32>
    %c8191_i32_115 = arith.constant 8191 : i32
    %397 = vector.broadcast %c8191_i32_115 : i32 to vector<1x1xi32>
    %398 = arith.andi %396, %397 : vector<1x1xi32>
    %c8191_i32_116 = arith.constant 8191 : i32
    %399 = vector.broadcast %c8191_i32_116 : i32 to vector<1x1xi32>
    %400 = arith.subi %399, %398 : vector<1x1xi32>
    %401 = vector.broadcast %c21_i32 : i32 to vector<8x128xi32>
    %402 = arith.cmpi eq, %34, %401 : vector<8x128xi32>
    %403 = vector.shape_cast %400 : vector<1x1xi32> to vector<1x1xi32>
    %404 = vector.broadcast %403 : vector<1x1xi32> to vector<8x128xi32>
    %405 = arith.select %402, %404, %388 : vector<8x128xi1>, vector<8x128xi32>
    %406 = vector.broadcast %400 : vector<1x1xi32> to vector<64x128xi32>
    %407 = arith.cmpi eq, %4, %406 : vector<64x128xi32>
    %c-2147483648_i32_117 = arith.constant -2147483648 : i32
    %408 = vector.broadcast %c-2147483648_i32_117 : i32 to vector<64x128xi32>
    %409 = arith.select %407, %408, %392 : vector<64x128xi1>, vector<64x128xi32>
    %c22_i32 = arith.constant 22 : i32
    %cst_118 = arith.constant dense<-2147483648> : vector<64xi32>
    %410 = vector.multi_reduction <maxsi>, %409, %cst_118 [1] : vector<64x128xi32> to vector<64xi32>
    %411 = vector.shape_cast %410 : vector<64xi32> to vector<64x1xi32>
    %cst_119 = arith.constant dense<-2147483648> : vector<1xi32>
    %412 = vector.multi_reduction <maxsi>, %411, %cst_119 [0] : vector<64x1xi32> to vector<1xi32>
    %413 = vector.shape_cast %412 : vector<1xi32> to vector<1x1xi32>
    %c8191_i32_120 = arith.constant 8191 : i32
    %414 = vector.broadcast %c8191_i32_120 : i32 to vector<1x1xi32>
    %415 = arith.andi %413, %414 : vector<1x1xi32>
    %c8191_i32_121 = arith.constant 8191 : i32
    %416 = vector.broadcast %c8191_i32_121 : i32 to vector<1x1xi32>
    %417 = arith.subi %416, %415 : vector<1x1xi32>
    %418 = vector.broadcast %c22_i32 : i32 to vector<8x128xi32>
    %419 = arith.cmpi eq, %34, %418 : vector<8x128xi32>
    %420 = vector.shape_cast %417 : vector<1x1xi32> to vector<1x1xi32>
    %421 = vector.broadcast %420 : vector<1x1xi32> to vector<8x128xi32>
    %422 = arith.select %419, %421, %405 : vector<8x128xi1>, vector<8x128xi32>
    %423 = vector.broadcast %417 : vector<1x1xi32> to vector<64x128xi32>
    %424 = arith.cmpi eq, %4, %423 : vector<64x128xi32>
    %c-2147483648_i32_122 = arith.constant -2147483648 : i32
    %425 = vector.broadcast %c-2147483648_i32_122 : i32 to vector<64x128xi32>
    %426 = arith.select %424, %425, %409 : vector<64x128xi1>, vector<64x128xi32>
    %c23_i32 = arith.constant 23 : i32
    %cst_123 = arith.constant dense<-2147483648> : vector<64xi32>
    %427 = vector.multi_reduction <maxsi>, %426, %cst_123 [1] : vector<64x128xi32> to vector<64xi32>
    %428 = vector.shape_cast %427 : vector<64xi32> to vector<64x1xi32>
    %cst_124 = arith.constant dense<-2147483648> : vector<1xi32>
    %429 = vector.multi_reduction <maxsi>, %428, %cst_124 [0] : vector<64x1xi32> to vector<1xi32>
    %430 = vector.shape_cast %429 : vector<1xi32> to vector<1x1xi32>
    %c8191_i32_125 = arith.constant 8191 : i32
    %431 = vector.broadcast %c8191_i32_125 : i32 to vector<1x1xi32>
    %432 = arith.andi %430, %431 : vector<1x1xi32>
    %c8191_i32_126 = arith.constant 8191 : i32
    %433 = vector.broadcast %c8191_i32_126 : i32 to vector<1x1xi32>
    %434 = arith.subi %433, %432 : vector<1x1xi32>
    %435 = vector.broadcast %c23_i32 : i32 to vector<8x128xi32>
    %436 = arith.cmpi eq, %34, %435 : vector<8x128xi32>
    %437 = vector.shape_cast %434 : vector<1x1xi32> to vector<1x1xi32>
    %438 = vector.broadcast %437 : vector<1x1xi32> to vector<8x128xi32>
    %439 = arith.select %436, %438, %422 : vector<8x128xi1>, vector<8x128xi32>
    %440 = vector.broadcast %434 : vector<1x1xi32> to vector<64x128xi32>
    %441 = arith.cmpi eq, %4, %440 : vector<64x128xi32>
    %c-2147483648_i32_127 = arith.constant -2147483648 : i32
    %442 = vector.broadcast %c-2147483648_i32_127 : i32 to vector<64x128xi32>
    %443 = arith.select %441, %442, %426 : vector<64x128xi1>, vector<64x128xi32>
    %c24_i32 = arith.constant 24 : i32
    %cst_128 = arith.constant dense<-2147483648> : vector<64xi32>
    %444 = vector.multi_reduction <maxsi>, %443, %cst_128 [1] : vector<64x128xi32> to vector<64xi32>
    %445 = vector.shape_cast %444 : vector<64xi32> to vector<64x1xi32>
    %cst_129 = arith.constant dense<-2147483648> : vector<1xi32>
    %446 = vector.multi_reduction <maxsi>, %445, %cst_129 [0] : vector<64x1xi32> to vector<1xi32>
    %447 = vector.shape_cast %446 : vector<1xi32> to vector<1x1xi32>
    %c8191_i32_130 = arith.constant 8191 : i32
    %448 = vector.broadcast %c8191_i32_130 : i32 to vector<1x1xi32>
    %449 = arith.andi %447, %448 : vector<1x1xi32>
    %c8191_i32_131 = arith.constant 8191 : i32
    %450 = vector.broadcast %c8191_i32_131 : i32 to vector<1x1xi32>
    %451 = arith.subi %450, %449 : vector<1x1xi32>
    %452 = vector.broadcast %c24_i32 : i32 to vector<8x128xi32>
    %453 = arith.cmpi eq, %34, %452 : vector<8x128xi32>
    %454 = vector.shape_cast %451 : vector<1x1xi32> to vector<1x1xi32>
    %455 = vector.broadcast %454 : vector<1x1xi32> to vector<8x128xi32>
    %456 = arith.select %453, %455, %439 : vector<8x128xi1>, vector<8x128xi32>
    %457 = vector.broadcast %451 : vector<1x1xi32> to vector<64x128xi32>
    %458 = arith.cmpi eq, %4, %457 : vector<64x128xi32>
    %c-2147483648_i32_132 = arith.constant -2147483648 : i32
    %459 = vector.broadcast %c-2147483648_i32_132 : i32 to vector<64x128xi32>
    %460 = arith.select %458, %459, %443 : vector<64x128xi1>, vector<64x128xi32>
    %c25_i32 = arith.constant 25 : i32
    %cst_133 = arith.constant dense<-2147483648> : vector<64xi32>
    %461 = vector.multi_reduction <maxsi>, %460, %cst_133 [1] : vector<64x128xi32> to vector<64xi32>
    %462 = vector.shape_cast %461 : vector<64xi32> to vector<64x1xi32>
    %cst_134 = arith.constant dense<-2147483648> : vector<1xi32>
    %463 = vector.multi_reduction <maxsi>, %462, %cst_134 [0] : vector<64x1xi32> to vector<1xi32>
    %464 = vector.shape_cast %463 : vector<1xi32> to vector<1x1xi32>
    %c8191_i32_135 = arith.constant 8191 : i32
    %465 = vector.broadcast %c8191_i32_135 : i32 to vector<1x1xi32>
    %466 = arith.andi %464, %465 : vector<1x1xi32>
    %c8191_i32_136 = arith.constant 8191 : i32
    %467 = vector.broadcast %c8191_i32_136 : i32 to vector<1x1xi32>
    %468 = arith.subi %467, %466 : vector<1x1xi32>
    %469 = vector.broadcast %c25_i32 : i32 to vector<8x128xi32>
    %470 = arith.cmpi eq, %34, %469 : vector<8x128xi32>
    %471 = vector.shape_cast %468 : vector<1x1xi32> to vector<1x1xi32>
    %472 = vector.broadcast %471 : vector<1x1xi32> to vector<8x128xi32>
    %473 = arith.select %470, %472, %456 : vector<8x128xi1>, vector<8x128xi32>
    %474 = vector.broadcast %468 : vector<1x1xi32> to vector<64x128xi32>
    %475 = arith.cmpi eq, %4, %474 : vector<64x128xi32>
    %c-2147483648_i32_137 = arith.constant -2147483648 : i32
    %476 = vector.broadcast %c-2147483648_i32_137 : i32 to vector<64x128xi32>
    %477 = arith.select %475, %476, %460 : vector<64x128xi1>, vector<64x128xi32>
    %c26_i32 = arith.constant 26 : i32
    %cst_138 = arith.constant dense<-2147483648> : vector<64xi32>
    %478 = vector.multi_reduction <maxsi>, %477, %cst_138 [1] : vector<64x128xi32> to vector<64xi32>
    %479 = vector.shape_cast %478 : vector<64xi32> to vector<64x1xi32>
    %cst_139 = arith.constant dense<-2147483648> : vector<1xi32>
    %480 = vector.multi_reduction <maxsi>, %479, %cst_139 [0] : vector<64x1xi32> to vector<1xi32>
    %481 = vector.shape_cast %480 : vector<1xi32> to vector<1x1xi32>
    %c8191_i32_140 = arith.constant 8191 : i32
    %482 = vector.broadcast %c8191_i32_140 : i32 to vector<1x1xi32>
    %483 = arith.andi %481, %482 : vector<1x1xi32>
    %c8191_i32_141 = arith.constant 8191 : i32
    %484 = vector.broadcast %c8191_i32_141 : i32 to vector<1x1xi32>
    %485 = arith.subi %484, %483 : vector<1x1xi32>
    %486 = vector.broadcast %c26_i32 : i32 to vector<8x128xi32>
    %487 = arith.cmpi eq, %34, %486 : vector<8x128xi32>
    %488 = vector.shape_cast %485 : vector<1x1xi32> to vector<1x1xi32>
    %489 = vector.broadcast %488 : vector<1x1xi32> to vector<8x128xi32>
    %490 = arith.select %487, %489, %473 : vector<8x128xi1>, vector<8x128xi32>
    %491 = vector.broadcast %485 : vector<1x1xi32> to vector<64x128xi32>
    %492 = arith.cmpi eq, %4, %491 : vector<64x128xi32>
    %c-2147483648_i32_142 = arith.constant -2147483648 : i32
    %493 = vector.broadcast %c-2147483648_i32_142 : i32 to vector<64x128xi32>
    %494 = arith.select %492, %493, %477 : vector<64x128xi1>, vector<64x128xi32>
    %c27_i32 = arith.constant 27 : i32
    %cst_143 = arith.constant dense<-2147483648> : vector<64xi32>
    %495 = vector.multi_reduction <maxsi>, %494, %cst_143 [1] : vector<64x128xi32> to vector<64xi32>
    %496 = vector.shape_cast %495 : vector<64xi32> to vector<64x1xi32>
    %cst_144 = arith.constant dense<-2147483648> : vector<1xi32>
    %497 = vector.multi_reduction <maxsi>, %496, %cst_144 [0] : vector<64x1xi32> to vector<1xi32>
    %498 = vector.shape_cast %497 : vector<1xi32> to vector<1x1xi32>
    %c8191_i32_145 = arith.constant 8191 : i32
    %499 = vector.broadcast %c8191_i32_145 : i32 to vector<1x1xi32>
    %500 = arith.andi %498, %499 : vector<1x1xi32>
    %c8191_i32_146 = arith.constant 8191 : i32
    %501 = vector.broadcast %c8191_i32_146 : i32 to vector<1x1xi32>
    %502 = arith.subi %501, %500 : vector<1x1xi32>
    %503 = vector.broadcast %c27_i32 : i32 to vector<8x128xi32>
    %504 = arith.cmpi eq, %34, %503 : vector<8x128xi32>
    %505 = vector.shape_cast %502 : vector<1x1xi32> to vector<1x1xi32>
    %506 = vector.broadcast %505 : vector<1x1xi32> to vector<8x128xi32>
    %507 = arith.select %504, %506, %490 : vector<8x128xi1>, vector<8x128xi32>
    %508 = vector.broadcast %502 : vector<1x1xi32> to vector<64x128xi32>
    %509 = arith.cmpi eq, %4, %508 : vector<64x128xi32>
    %c-2147483648_i32_147 = arith.constant -2147483648 : i32
    %510 = vector.broadcast %c-2147483648_i32_147 : i32 to vector<64x128xi32>
    %511 = arith.select %509, %510, %494 : vector<64x128xi1>, vector<64x128xi32>
    %c28_i32 = arith.constant 28 : i32
    %cst_148 = arith.constant dense<-2147483648> : vector<64xi32>
    %512 = vector.multi_reduction <maxsi>, %511, %cst_148 [1] : vector<64x128xi32> to vector<64xi32>
    %513 = vector.shape_cast %512 : vector<64xi32> to vector<64x1xi32>
    %cst_149 = arith.constant dense<-2147483648> : vector<1xi32>
    %514 = vector.multi_reduction <maxsi>, %513, %cst_149 [0] : vector<64x1xi32> to vector<1xi32>
    %515 = vector.shape_cast %514 : vector<1xi32> to vector<1x1xi32>
    %c8191_i32_150 = arith.constant 8191 : i32
    %516 = vector.broadcast %c8191_i32_150 : i32 to vector<1x1xi32>
    %517 = arith.andi %515, %516 : vector<1x1xi32>
    %c8191_i32_151 = arith.constant 8191 : i32
    %518 = vector.broadcast %c8191_i32_151 : i32 to vector<1x1xi32>
    %519 = arith.subi %518, %517 : vector<1x1xi32>
    %520 = vector.broadcast %c28_i32 : i32 to vector<8x128xi32>
    %521 = arith.cmpi eq, %34, %520 : vector<8x128xi32>
    %522 = vector.shape_cast %519 : vector<1x1xi32> to vector<1x1xi32>
    %523 = vector.broadcast %522 : vector<1x1xi32> to vector<8x128xi32>
    %524 = arith.select %521, %523, %507 : vector<8x128xi1>, vector<8x128xi32>
    %525 = vector.broadcast %519 : vector<1x1xi32> to vector<64x128xi32>
    %526 = arith.cmpi eq, %4, %525 : vector<64x128xi32>
    %c-2147483648_i32_152 = arith.constant -2147483648 : i32
    %527 = vector.broadcast %c-2147483648_i32_152 : i32 to vector<64x128xi32>
    %528 = arith.select %526, %527, %511 : vector<64x128xi1>, vector<64x128xi32>
    %c29_i32 = arith.constant 29 : i32
    %cst_153 = arith.constant dense<-2147483648> : vector<64xi32>
    %529 = vector.multi_reduction <maxsi>, %528, %cst_153 [1] : vector<64x128xi32> to vector<64xi32>
    %530 = vector.shape_cast %529 : vector<64xi32> to vector<64x1xi32>
    %cst_154 = arith.constant dense<-2147483648> : vector<1xi32>
    %531 = vector.multi_reduction <maxsi>, %530, %cst_154 [0] : vector<64x1xi32> to vector<1xi32>
    %532 = vector.shape_cast %531 : vector<1xi32> to vector<1x1xi32>
    %c8191_i32_155 = arith.constant 8191 : i32
    %533 = vector.broadcast %c8191_i32_155 : i32 to vector<1x1xi32>
    %534 = arith.andi %532, %533 : vector<1x1xi32>
    %c8191_i32_156 = arith.constant 8191 : i32
    %535 = vector.broadcast %c8191_i32_156 : i32 to vector<1x1xi32>
    %536 = arith.subi %535, %534 : vector<1x1xi32>
    %537 = vector.broadcast %c29_i32 : i32 to vector<8x128xi32>
    %538 = arith.cmpi eq, %34, %537 : vector<8x128xi32>
    %539 = vector.shape_cast %536 : vector<1x1xi32> to vector<1x1xi32>
    %540 = vector.broadcast %539 : vector<1x1xi32> to vector<8x128xi32>
    %541 = arith.select %538, %540, %524 : vector<8x128xi1>, vector<8x128xi32>
    %542 = vector.broadcast %536 : vector<1x1xi32> to vector<64x128xi32>
    %543 = arith.cmpi eq, %4, %542 : vector<64x128xi32>
    %c-2147483648_i32_157 = arith.constant -2147483648 : i32
    %544 = vector.broadcast %c-2147483648_i32_157 : i32 to vector<64x128xi32>
    %545 = arith.select %543, %544, %528 : vector<64x128xi1>, vector<64x128xi32>
    %c30_i32 = arith.constant 30 : i32
    %cst_158 = arith.constant dense<-2147483648> : vector<64xi32>
    %546 = vector.multi_reduction <maxsi>, %545, %cst_158 [1] : vector<64x128xi32> to vector<64xi32>
    %547 = vector.shape_cast %546 : vector<64xi32> to vector<64x1xi32>
    %cst_159 = arith.constant dense<-2147483648> : vector<1xi32>
    %548 = vector.multi_reduction <maxsi>, %547, %cst_159 [0] : vector<64x1xi32> to vector<1xi32>
    %549 = vector.shape_cast %548 : vector<1xi32> to vector<1x1xi32>
    %c8191_i32_160 = arith.constant 8191 : i32
    %550 = vector.broadcast %c8191_i32_160 : i32 to vector<1x1xi32>
    %551 = arith.andi %549, %550 : vector<1x1xi32>
    %c8191_i32_161 = arith.constant 8191 : i32
    %552 = vector.broadcast %c8191_i32_161 : i32 to vector<1x1xi32>
    %553 = arith.subi %552, %551 : vector<1x1xi32>
    %554 = vector.broadcast %c30_i32 : i32 to vector<8x128xi32>
    %555 = arith.cmpi eq, %34, %554 : vector<8x128xi32>
    %556 = vector.shape_cast %553 : vector<1x1xi32> to vector<1x1xi32>
    %557 = vector.broadcast %556 : vector<1x1xi32> to vector<8x128xi32>
    %558 = arith.select %555, %557, %541 : vector<8x128xi1>, vector<8x128xi32>
    %559 = vector.broadcast %553 : vector<1x1xi32> to vector<64x128xi32>
    %560 = arith.cmpi eq, %4, %559 : vector<64x128xi32>
    %c-2147483648_i32_162 = arith.constant -2147483648 : i32
    %561 = vector.broadcast %c-2147483648_i32_162 : i32 to vector<64x128xi32>
    %562 = arith.select %560, %561, %545 : vector<64x128xi1>, vector<64x128xi32>
    %c31_i32 = arith.constant 31 : i32
    %cst_163 = arith.constant dense<-2147483648> : vector<64xi32>
    %563 = vector.multi_reduction <maxsi>, %562, %cst_163 [1] : vector<64x128xi32> to vector<64xi32>
    %564 = vector.shape_cast %563 : vector<64xi32> to vector<64x1xi32>
    %cst_164 = arith.constant dense<-2147483648> : vector<1xi32>
    %565 = vector.multi_reduction <maxsi>, %564, %cst_164 [0] : vector<64x1xi32> to vector<1xi32>
    %566 = vector.shape_cast %565 : vector<1xi32> to vector<1x1xi32>
    %c8191_i32_165 = arith.constant 8191 : i32
    %567 = vector.broadcast %c8191_i32_165 : i32 to vector<1x1xi32>
    %568 = arith.andi %566, %567 : vector<1x1xi32>
    %c8191_i32_166 = arith.constant 8191 : i32
    %569 = vector.broadcast %c8191_i32_166 : i32 to vector<1x1xi32>
    %570 = arith.subi %569, %568 : vector<1x1xi32>
    %571 = vector.broadcast %c31_i32 : i32 to vector<8x128xi32>
    %572 = arith.cmpi eq, %34, %571 : vector<8x128xi32>
    %573 = vector.shape_cast %570 : vector<1x1xi32> to vector<1x1xi32>
    %574 = vector.broadcast %573 : vector<1x1xi32> to vector<8x128xi32>
    %575 = arith.select %572, %574, %558 : vector<8x128xi1>, vector<8x128xi32>
    %576 = vector.broadcast %570 : vector<1x1xi32> to vector<64x128xi32>
    %577 = arith.cmpi eq, %4, %576 : vector<64x128xi32>
    %c-2147483648_i32_167 = arith.constant -2147483648 : i32
    %578 = vector.broadcast %c-2147483648_i32_167 : i32 to vector<64x128xi32>
    %579 = arith.select %577, %578, %562 : vector<64x128xi1>, vector<64x128xi32>
    %c32_i32 = arith.constant 32 : i32
    %c0_168 = arith.constant 0 : index
    %c0_169 = arith.constant 0 : index
    %580 = vector.load %arg2[%c0_168, %c0_169] : memref<8x128xi32, #tpu.memory_space<vmem>>, vector<8x128xi32>
    tpu.vector_store %arg2[%c0_168, %c0_169], %575 {strides = array<i32>} : memref<8x128xi32, #tpu.memory_space<vmem>>, vector<8x128xi32>,
    return
  }
}

</mosaic_0001>

<llo_original>
// kernel: sample_transitives.1
$region0: #{sample_transitives.1}
  #allocation0 [shape = 'u32[]', space=smem, size = 0x4, offset = 0x4, fixed_abs, tag = 'smem constant byte address 0x4 - core index']
  #allocation1 [shape = 'u32[72,128]{1,0:T(1,128)}', space=vmem, size = 0x9000, scoped, tag = 'internal scratch']
  %s0 = inlined_call_operand.vmem [shape: f32[64,128], index: 0, kind: input, shape index: {}]
  %s1 = inlined_call_operand.vmem [shape: f32[64,128], index: 1, kind: input, shape index: {}]
  %s2 = inlined_call_operand.vmem [shape: s32[8,128], index: 2, kind: output, shape index: {}]
  %s3 = sld [smem:[#allocation0]]
  $region18: #{sample_transitives.1} parent=0
    _
  %s5 = ssub.s32 1, %s3
  %s6 = scalar_select 0, %s5, %s3
  // Predicated region
  $region2: #{sample_transitives.1} parent=0 // pred_check
    _
  $region3: #{sample_transitives.1} parent=0 // pred_check_branch
    %8 = sbr.rel (0) target = $region5
  $region4: #{sample_transitives.1} parent=0 // pred_region
    _
  $region5: #{sample_transitives.1} parent=0 // pred_fallthru
    _
  // Predicated region
  $region6: #{sample_transitives.1} parent=0 // pred_check
    _
  $region7: #{sample_transitives.1} parent=0 // pred_check_branch
    %10 = sbr.rel (0) target = $region9
  $region8: #{sample_transitives.1} parent=0 // pred_region
    _
  $region9: #{sample_transitives.1} parent=0 // pred_fallthru
    _
  %v11 = vlaneseq
  %v12 = vshrl.u32 %v11, 7
  %v13 = vadd.s32 %v12, 8
  %v14 = vadd.s32 %v12, 16
  %v15 = vadd.s32 %v12, 24
  %v16 = vadd.s32 %v12, 32
  %v17 = vadd.s32 %v12, 40
  %v18 = vadd.s32 %v12, 48
  %v19 = vadd.s32 %v12, 56
  %v20 = vlaneseq
  %v21 = vand.u32 %v20, 127
  %v22 = vmul.u32 %v12, 128
  %v23 = vmul.u32 %v13, 128
  %v24 = vmul.u32 %v14, 128
  %v25 = vmul.u32 %v15, 128
  %v26 = vmul.u32 %v16, 128
  %v27 = vmul.u32 %v17, 128
  %v28 = vmul.u32 %v18, 128
  %v29 = vmul.u32 %v19, 128
  %v30 = vadd.s32 %v22, %v21
  %v31 = vadd.s32 %v23, %v21
  %v32 = vadd.s32 %v24, %v21
  %v33 = vadd.s32 %v25, %v21
  %v34 = vadd.s32 %v26, %v21
  %v35 = vadd.s32 %v27, %v21
  %v36 = vadd.s32 %v28, %v21
  %v37 = vadd.s32 %v29, %v21
  %vm38 = vcmp.lt.s32.totalorder %v30, 8000
  %vm39 = vcmp.lt.s32.totalorder %v31, 8000
  %vm40 = vcmp.lt.s32.totalorder %v32, 8000
  %vm41 = vcmp.lt.s32.totalorder %v33, 8000
  %vm42 = vcmp.lt.s32.totalorder %v34, 8000
  %vm43 = vcmp.lt.s32.totalorder %v35, 8000
  %vm44 = vcmp.lt.s32.totalorder %v36, 8000
  %vm45 = vcmp.lt.s32.totalorder %v37, 8000
  %v46 = vld [vmem:[%s0] sm:$0xff]
  %v47 = vld [vmem:[%s0 + $0x8] sm:$0xff]
  %v48 = vld [vmem:[%s0 + $0x10] sm:$0xff]
  %v49 = vld [vmem:[%s0 + $0x18] sm:$0xff]
  %v50 = vld [vmem:[%s0 + $0x20] sm:$0xff]
  %v51 = vld [vmem:[%s0 + $0x28] sm:$0xff]
  %v52 = vld [vmem:[%s0 + $0x30] sm:$0xff]
  %v53 = vld [vmem:[%s0 + $0x38] sm:$0xff]
  %v54 = vmax.f32 %v46, 0.0
  %v55 = vmax.f32 %v47, 0.0
  %v56 = vmax.f32 %v48, 0.0
  %v57 = vmax.f32 %v49, 0.0
  %v58 = vmax.f32 %v50, 0.0
  %v59 = vmax.f32 %v51, 0.0
  %v60 = vmax.f32 %v52, 0.0
  %v61 = vmax.f32 %v53, 0.0
  %v62 = vmin.f32 %v54, 1.0
  %v63 = vmin.f32 %v55, 1.0
  %v64 = vmin.f32 %v56, 1.0
  %v65 = vmin.f32 %v57, 1.0
  %v66 = vmin.f32 %v58, 1.0
  %v67 = vmin.f32 %v59, 1.0
  %v68 = vmin.f32 %v60, 1.0
  %v69 = vmin.f32 %v61, 1.0
  %v70 = vmax.f32 %v62, 1e-30
  %v71 = vmax.f32 %v63, 1e-30
  %v72 = vmax.f32 %v64, 1e-30
  %v73 = vmax.f32 %v65, 1e-30
  %v74 = vmax.f32 %v66, 1e-30
  %v75 = vmax.f32 %v67, 1e-30
  %v76 = vmax.f32 %v68, 1e-30
  %v77 = vmax.f32 %v69, 1e-30
  %v78 = vlog2.pop %v70
  %v79 = vmul.f32 %v78, 0.6931472
  %v80 = vlog2.pop %v71
  %v81 = vmul.f32 %v80, 0.6931472
  %v82 = vlog2.pop %v72
  %v83 = vmul.f32 %v82, 0.6931472
  %v84 = vlog2.pop %v73
  %v85 = vmul.f32 %v84, 0.6931472
  %v86 = vlog2.pop %v74
  %v87 = vmul.f32 %v86, 0.6931472
  %v88 = vlog2.pop %v75
  %v89 = vmul.f32 %v88, 0.6931472
  %v90 = vlog2.pop %v76
  %v91 = vmul.f32 %v90, 0.6931472
  %v92 = vlog2.pop %v77
  %v93 = vmul.f32 %v92, 0.6931472
  %v94 = vld [vmem:[%s1] sm:$0xff]
  %v95 = vld [vmem:[%s1 + $0x8] sm:$0xff]
  %v96 = vld [vmem:[%s1 + $0x10] sm:$0xff]
  %v97 = vld [vmem:[%s1 + $0x18] sm:$0xff]
  %v98 = vld [vmem:[%s1 + $0x20] sm:$0xff]
  %v99 = vld [vmem:[%s1 + $0x28] sm:$0xff]
  %v100 = vld [vmem:[%s1 + $0x30] sm:$0xff]
  %v101 = vld [vmem:[%s1 + $0x38] sm:$0xff]
  %v102 = vadd.f32 %v79, %v94
  %v103 = vadd.f32 %v81, %v95
  %v104 = vadd.f32 %v83, %v96
  %v105 = vadd.f32 %v85, %v97
  %v106 = vadd.f32 %v87, %v98
  %v107 = vadd.f32 %v89, %v99
  %v108 = vadd.f32 %v91, %v100
  %v109 = vadd.f32 %v93, %v101
  %vm118 = vcmp.lt.s32.totalorder %v102, 0
  %vm119 = vcmp.lt.s32.totalorder %v103, 0
  %vm120 = vcmp.lt.s32.totalorder %v104, 0
  %vm121 = vcmp.lt.s32.totalorder %v105, 0
  %vm122 = vcmp.lt.s32.totalorder %v106, 0
  %vm123 = vcmp.lt.s32.totalorder %v107, 0
  %vm124 = vcmp.lt.s32.totalorder %v108, 0
  %vm125 = vcmp.lt.s32.totalorder %v109, 0
  %v126 = vxor.u32 %v102, 2147483647
  %v127 = vxor.u32 %v103, 2147483647
  %v128 = vxor.u32 %v104, 2147483647
  %v129 = vxor.u32 %v105, 2147483647
  %v130 = vxor.u32 %v106, 2147483647
  %v131 = vxor.u32 %v107, 2147483647
  %v132 = vxor.u32 %v108, 2147483647
  %v133 = vxor.u32 %v109, 2147483647
  %v134 = vsel %vm118, %v126, %v102
  %v135 = vsel %vm119, %v127, %v103
  %v136 = vsel %vm120, %v128, %v104
  %v137 = vsel %vm121, %v129, %v105
  %v138 = vsel %vm122, %v130, %v106
  %v139 = vsel %vm123, %v131, %v107
  %v140 = vsel %vm124, %v132, %v108
  %v141 = vsel %vm125, %v133, %v109
  %v142 = vand.u32 %v134, 4294959104
  %v143 = vand.u32 %v135, 4294959104
  %v144 = vand.u32 %v136, 4294959104
  %v145 = vand.u32 %v137, 4294959104
  %v146 = vand.u32 %v138, 4294959104
  %v147 = vand.u32 %v139, 4294959104
  %v148 = vand.u32 %v140, 4294959104
  %v149 = vand.u32 %v141, 4294959104
  %v150 = vsub.s32 8191, %v30
  %v151 = vsub.s32 8191, %v31
  %v152 = vsub.s32 8191, %v32
  %v153 = vsub.s32 8191, %v33
  %v154 = vsub.s32 8191, %v34
  %v155 = vsub.s32 8191, %v35
  %v156 = vsub.s32 8191, %v36
  %v157 = vsub.s32 8191, %v37
  %v158 = vor.u32 %v142, %v150
  %v159 = vor.u32 %v143, %v151
  %v160 = vor.u32 %v144, %v152
  %v161 = vor.u32 %v145, %v153
  %v162 = vor.u32 %v146, %v154
  %v163 = vor.u32 %v147, %v155
  %v164 = vor.u32 %v148, %v156
  %v165 = vor.u32 %v149, %v157
  %v166 = vsel %vm38, %v158, 2147483648
  %v167 = vsel %vm39, %v159, 2147483648
  %v168 = vsel %vm40, %v160, 2147483648
  %v169 = vsel %vm41, %v161, 2147483648
  %v170 = vsel %vm42, %v162, 2147483648
  %v171 = vsel %vm43, %v163, 2147483648
  %v172 = vsel %vm44, %v164, 2147483648
  %v173 = vsel %vm45, %v165, 2147483648
  %v174 = vand.u32 %v166, 65535
  %v175 = vshra.s32 %v166, 16
  %v176 = vcvt.s32.f32 %v174
  %v177 = vcvt.s32.f32 %v175
  %178 = vmax.xlane.f32.xlu0 %v177
  %v179 = vpop.xlane.xlu0 %178
  %vm180 = vcmp.eq.f32.partialorder %v177, %v179
  %v181 = vsel %vm180, %v176, -inf
  %182 = vmax.xlane.f32.xlu0 %v181
  %v183 = vpop.xlane.xlu0 %182
  %v184 = vcvt.f32.s32 %v183
  %v185 = vcvt.f32.s32 %v179
  %v186 = vshll.u32 %v185, 16
  %v187 = vadd.s32 %v186, %v184
  %v188 = vand.u32 %v167, 65535
  %v189 = vshra.s32 %v167, 16
  %v190 = vcvt.s32.f32 %v188
  %v191 = vcvt.s32.f32 %v189
  %192 = vmax.xlane.f32.xlu0 %v191
  %v193 = vpop.xlane.xlu0 %192
  %vm194 = vcmp.eq.f32.partialorder %v191, %v193
  %v195 = vsel %vm194, %v190, -inf
  %196 = vmax.xlane.f32.xlu0 %v195
  %v197 = vpop.xlane.xlu0 %196
  %v198 = vcvt.f32.s32 %v197
  %v199 = vcvt.f32.s32 %v193
  %v200 = vshll.u32 %v199, 16
  %v201 = vadd.s32 %v200, %v198
  %v202 = vand.u32 %v168, 65535
  %v203 = vshra.s32 %v168, 16
  %v204 = vcvt.s32.f32 %v202
  %v205 = vcvt.s32.f32 %v203
  %206 = vmax.xlane.f32.xlu0 %v205
  %v207 = vpop.xlane.xlu0 %206
  %vm208 = vcmp.eq.f32.partialorder %v205, %v207
  %v209 = vsel %vm208, %v204, -inf
  %210 = vmax.xlane.f32.xlu0 %v209
  %v211 = vpop.xlane.xlu0 %210
  %v212 = vcvt.f32.s32 %v211
  %v213 = vcvt.f32.s32 %v207
  %v214 = vshll.u32 %v213, 16
  %v215 = vadd.s32 %v214, %v212
  %v216 = vand.u32 %v169, 65535
  %v217 = vshra.s32 %v169, 16
  %v218 = vcvt.s32.f32 %v216
  %v219 = vcvt.s32.f32 %v217
  %220 = vmax.xlane.f32.xlu0 %v219
  %v221 = vpop.xlane.xlu0 %220
  %vm222 = vcmp.eq.f32.partialorder %v219, %v221
  %v223 = vsel %vm222, %v218, -inf
  %224 = vmax.xlane.f32.xlu0 %v223
  %v225 = vpop.xlane.xlu0 %224
  %v226 = vcvt.f32.s32 %v225
  %v227 = vcvt.f32.s32 %v221
  %v228 = vshll.u32 %v227, 16
  %v229 = vadd.s32 %v228, %v226
  %v230 = vand.u32 %v170, 65535
  %v231 = vshra.s32 %v170, 16
  %v232 = vcvt.s32.f32 %v230
  %v233 = vcvt.s32.f32 %v231
  %234 = vmax.xlane.f32.xlu0 %v233
  %v235 = vpop.xlane.xlu0 %234
  %vm236 = vcmp.eq.f32.partialorder %v233, %v235
  %v237 = vsel %vm236, %v232, -inf
  %238 = vmax.xlane.f32.xlu0 %v237
  %v239 = vpop.xlane.xlu0 %238
  %v240 = vcvt.f32.s32 %v239
  %v241 = vcvt.f32.s32 %v235
  %v242 = vshll.u32 %v241, 16
  %v243 = vadd.s32 %v242, %v240
  %v244 = vand.u32 %v171, 65535
  %v245 = vshra.s32 %v171, 16
  %v246 = vcvt.s32.f32 %v244
  %v247 = vcvt.s32.f32 %v245
  %248 = vmax.xlane.f32.xlu0 %v247
  %v249 = vpop.xlane.xlu0 %248
  %vm250 = vcmp.eq.f32.partialorder %v247, %v249
  %v251 = vsel %vm250, %v246, -inf
  %252 = vmax.xlane.f32.xlu0 %v251
  %v253 = vpop.xlane.xlu0 %252
  %v254 = vcvt.f32.s32 %v253
  %v255 = vcvt.f32.s32 %v249
  %v256 = vshll.u32 %v255, 16
  %v257 = vadd.s32 %v256, %v254
  %v258 = vand.u32 %v172, 65535
  %v259 = vshra.s32 %v172, 16
  %v260 = vcvt.s32.f32 %v258
  %v261 = vcvt.s32.f32 %v259
  %262 = vmax.xlane.f32.xlu0 %v261
  %v263 = vpop.xlane.xlu0 %262
  %vm264 = vcmp.eq.f32.partialorder %v261, %v263
  %v265 = vsel %vm264, %v260, -inf
  %266 = vmax.xlane.f32.xlu0 %v265
  %v267 = vpop.xlane.xlu0 %266
  %v268 = vcvt.f32.s32 %v267
  %v269 = vcvt.f32.s32 %v263
  %v270 = vshll.u32 %v269, 16
  %v271 = vadd.s32 %v270, %v268
  %v272 = vand.u32 %v173, 65535
  %v273 = vshra.s32 %v173, 16
  %v274 = vcvt.s32.f32 %v272
  %v275 = vcvt.s32.f32 %v273
  %276 = vmax.xlane.f32.xlu0 %v275
  %v277 = vpop.xlane.xlu0 %276
  %vm278 = vcmp.eq.f32.partialorder %v275, %v277
  %v279 = vsel %vm278, %v274, -inf
  %280 = vmax.xlane.f32.xlu0 %v279
  %v281 = vpop.xlane.xlu0 %280
  %v282 = vcvt.f32.s32 %v281
  %v283 = vcvt.f32.s32 %v277
  %v284 = vshll.u32 %v283, 16
  %v285 = vadd.s32 %v284, %v282
  %vm286 = vcmp.gt.s32.totalorder %v187, %v243
  %v287 = vsel %vm286, %v187, %v243
  %vm288 = vcmp.gt.s32.totalorder %v201, %v257
  %v289 = vsel %vm288, %v201, %v257
  %vm290 = vcmp.gt.s32.totalorder %v215, %v271
  %v291 = vsel %vm290, %v215, %v271
  %vm292 = vcmp.gt.s32.totalorder %v229, %v285
  %v293 = vsel %vm292, %v229, %v285
  %vm294 = vcmp.gt.s32.totalorder %v287, %v289
  %v295 = vsel %vm294, %v287, %v289
  %vm296 = vcmp.gt.s32.totalorder %v291, %v293
  %v297 = vsel %vm296, %v291, %v293
  %vm298 = vcmp.gt.s32.totalorder %v295, %v297
  %v299 = vsel %vm298, %v295, %v297
  %v300 = vrot.slane %v299, 4
  %vm301 = vcmp.gt.s32.totalorder %v299, %v300
  %v302 = vsel %vm301, %v299, %v300
  %v303 = vrot.slane %v302, 2
  %vm304 = vcmp.gt.s32.totalorder %v302, %v303
  %v305 = vsel %vm304, %v302, %v303
  %v306 = vrot.slane %v305, 1
  %vm307 = vcmp.gt.s32.totalorder %v305, %v306
  %v308 = vsel %vm307, %v305, %v306
  %v309 = vand.u32 %v308, 8191
  %v310 = vsub.s32 8191, %v309
  %vm311 = vcmp.eq.s32.totalorder %v30, 0
  %v312 = vsel %vm311, %v310, 0
  %vm313 = vcmp.eq.s32.totalorder %v30, %v310
  %vm314 = vcmp.eq.s32.totalorder %v31, %v310
  %vm315 = vcmp.eq.s32.totalorder %v32, %v310
  %vm316 = vcmp.eq.s32.totalorder %v33, %v310
  %vm317 = vcmp.eq.s32.totalorder %v34, %v310
  %vm318 = vcmp.eq.s32.totalorder %v35, %v310
  %vm319 = vcmp.eq.s32.totalorder %v36, %v310
  %vm320 = vcmp.eq.s32.totalorder %v37, %v310
  %v321 = vsel %vm313, 2147483648, %v166
  %v322 = vsel %vm314, 2147483648, %v167
  %v323 = vsel %vm315, 2147483648, %v168
  %v324 = vsel %vm316, 2147483648, %v169
  %v325 = vsel %vm317, 2147483648, %v170
  %v326 = vsel %vm318, 2147483648, %v171
  %v327 = vsel %vm319, 2147483648, %v172
  %v328 = vsel %vm320, 2147483648, %v173
  %v329 = vand.u32 %v321, 65535
  %v330 = vshra.s32 %v321, 16
  %v331 = vcvt.s32.f32 %v329
  %v332 = vcvt.s32.f32 %v330
  %333 = vmax.xlane.f32.xlu0 %v332
  %v334 = vpop.xlane.xlu0 %333
  %vm335 = vcmp.eq.f32.partialorder %v332, %v334
  %v336 = vsel %vm335, %v331, -inf
  %337 = vmax.xlane.f32.xlu0 %v336
  %v338 = vpop.xlane.xlu0 %337
  %v339 = vcvt.f32.s32 %v338
  %v340 = vcvt.f32.s32 %v334
  %v341 = vshll.u32 %v340, 16
  %v342 = vadd.s32 %v341, %v339
  %v343 = vand.u32 %v322, 65535
  %v344 = vshra.s32 %v322, 16
  %v345 = vcvt.s32.f32 %v343
  %v346 = vcvt.s32.f32 %v344
  %347 = vmax.xlane.f32.xlu0 %v346
  %v348 = vpop.xlane.xlu0 %347
  %vm349 = vcmp.eq.f32.partialorder %v346, %v348
  %v350 = vsel %vm349, %v345, -inf
  %351 = vmax.xlane.f32.xlu0 %v350
  %v352 = vpop.xlane.xlu0 %351
  %v353 = vcvt.f32.s32 %v352
  %v354 = vcvt.f32.s32 %v348
  %v355 = vshll.u32 %v354, 16
  %v356 = vadd.s32 %v355, %v353
  %v357 = vand.u32 %v323, 65535
  %v358 = vshra.s32 %v323, 16
  %v359 = vcvt.s32.f32 %v357
  %v360 = vcvt.s32.f32 %v358
  %361 = vmax.xlane.f32.xlu0 %v360
  %v362 = vpop.xlane.xlu0 %361
  %vm363 = vcmp.eq.f32.partialorder %v360, %v362
  %v364 = vsel %vm363, %v359, -inf
  %365 = vmax.xlane.f32.xlu0 %v364
  %v366 = vpop.xlane.xlu0 %365
  %v367 = vcvt.f32.s32 %v366
  %v368 = vcvt.f32.s32 %v362
  %v369 = vshll.u32 %v368, 16
  %v370 = vadd.s32 %v369, %v367
  %v371 = vand.u32 %v324, 65535
  %v372 = vshra.s32 %v324, 16
  %v373 = vcvt.s32.f32 %v371
  %v374 = vcvt.s32.f32 %v372
  %375 = vmax.xlane.f32.xlu0 %v374
  %v376 = vpop.xlane.xlu0 %375
  %vm377 = vcmp.eq.f32.partialorder %v374, %v376
  %v378 = vsel %vm377, %v373, -inf
  %379 = vmax.xlane.f32.xlu0 %v378
  %v380 = vpop.xlane.xlu0 %379
  %v381 = vcvt.f32.s32 %v380
  %v382 = vcvt.f32.s32 %v376
  %v383 = vshll.u32 %v382, 16
  %v384 = vadd.s32 %v383, %v381
  %v385 = vand.u32 %v325, 65535
  %v386 = vshra.s32 %v325, 16
  %v387 = vcvt.s32.f32 %v385
  %v388 = vcvt.s32.f32 %v386
  %389 = vmax.xlane.f32.xlu0 %v388
  %v390 = vpop.xlane.xlu0 %389
  %vm391 = vcmp.eq.f32.partialorder %v388, %v390
  %v392 = vsel %vm391, %v387, -inf
  %393 = vmax.xlane.f32.xlu0 %v392
  %v394 = vpop.xlane.xlu0 %393
  %v395 = vcvt.f32.s32 %v394
  %v396 = vcvt.f32.s32 %v390
  %v397 = vshll.u32 %v396, 16
  %v398 = vadd.s32 %v397, %v395
  %v399 = vand.u32 %v326, 65535
  %v400 = vshra.s32 %v326, 16
  %v401 = vcvt.s32.f32 %v399
  %v402 = vcvt.s32.f32 %v400
  %403 = vmax.xlane.f32.xlu0 %v402
  %v404 = vpop.xlane.xlu0 %403
  %vm405 = vcmp.eq.f32.partialorder %v402, %v404
  %v406 = vsel %vm405, %v401, -inf
  %407 = vmax.xlane.f32.xlu0 %v406
  %v408 = vpop.xlane.xlu0 %407
  %v409 = vcvt.f32.s32 %v408
  %v410 = vcvt.f32.s32 %v404
  %v411 = vshll.u32 %v410, 16
  %v412 = vadd.s32 %v411, %v409
  %v413 = vand.u32 %v327, 65535
  %v414 = vshra.s32 %v327, 16
  %v415 = vcvt.s32.f32 %v413
  %v416 = vcvt.s32.f32 %v414
  %417 = vmax.xlane.f32.xlu0 %v416
  %v418 = vpop.xlane.xlu0 %417
  %vm419 = vcmp.eq.f32.partialorder %v416, %v418
  %v420 = vsel %vm419, %v415, -inf
  %421 = vmax.xlane.f32.xlu0 %v420
  %v422 = vpop.xlane.xlu0 %421
  %v423 = vcvt.f32.s32 %v422
  %v424 = vcvt.f32.s32 %v418
  %v425 = vshll.u32 %v424, 16
  %v426 = vadd.s32 %v425, %v423
  %v427 = vand.u32 %v328, 65535
  %v428 = vshra.s32 %v328, 16
  %v429 = vcvt.s32.f32 %v427
  %v430 = vcvt.s32.f32 %v428
  %431 = vmax.xlane.f32.xlu0 %v430
  %v432 = vpop.xlane.xlu0 %431
  %vm433 = vcmp.eq.f32.partialorder %v430, %v432
  %v434 = vsel %vm433, %v429, -inf
  %435 = vmax.xlane.f32.xlu0 %v434
  %v436 = vpop.xlane.xlu0 %435
  %v437 = vcvt.f32.s32 %v436
  %v438 = vcvt.f32.s32 %v432
  %v439 = vshll.u32 %v438, 16
  %v440 = vadd.s32 %v439, %v437
  %vm441 = vcmp.gt.s32.totalorder %v342, %v398
  %v442 = vsel %vm441, %v342, %v398
  %vm443 = vcmp.gt.s32.totalorder %v356, %v412
  %v444 = vsel %vm443, %v356, %v412
  %vm445 = vcmp.gt.s32.totalorder %v370, %v426
  %v446 = vsel %vm445, %v370, %v426
  %vm447 = vcmp.gt.s32.totalorder %v384, %v440
  %v448 = vsel %vm447, %v384, %v440
  %vm449 = vcmp.gt.s32.totalorder %v442, %v444
  %v450 = vsel %vm449, %v442, %v444
  %vm451 = vcmp.gt.s32.totalorder %v446, %v448
  %v452 = vsel %vm451, %v446, %v448
  %vm453 = vcmp.gt.s32.totalorder %v450, %v452
  %v454 = vsel %vm453, %v450, %v452
  %v455 = vrot.slane %v454, 4
  %vm456 = vcmp.gt.s32.totalorder %v454, %v455
  %v457 = vsel %vm456, %v454, %v455
  %v458 = vrot.slane %v457, 2
  %vm459 = vcmp.gt.s32.totalorder %v457, %v458
  %v460 = vsel %vm459, %v457, %v458
  %v461 = vrot.slane %v460, 1
  %vm462 = vcmp.gt.s32.totalorder %v460, %v461
  %v463 = vsel %vm462, %v460, %v461
  %v464 = vand.u32 %v463, 8191
  %v465 = vsub.s32 8191, %v464
  %vm466 = vcmp.eq.s32.totalorder %v30, 1
  %v467 = vsel %vm466, %v465, %v312
  %vm468 = vcmp.eq.s32.totalorder %v30, %v465
  %vm469 = vcmp.eq.s32.totalorder %v31, %v465
  %vm470 = vcmp.eq.s32.totalorder %v32, %v465
  %vm471 = vcmp.eq.s32.totalorder %v33, %v465
  %vm472 = vcmp.eq.s32.totalorder %v34, %v465
  %vm473 = vcmp.eq.s32.totalorder %v35, %v465
  %vm474 = vcmp.eq.s32.totalorder %v36, %v465
  %vm475 = vcmp.eq.s32.totalorder %v37, %v465
  %v476 = vsel %vm468, 2147483648, %v321
  %v477 = vsel %vm469, 2147483648, %v322
  %v478 = vsel %vm470, 2147483648, %v323
  %v479 = vsel %vm471, 2147483648, %v324
  %v480 = vsel %vm472, 2147483648, %v325
  %v481 = vsel %vm473, 2147483648, %v326
  %v482 = vsel %vm474, 2147483648, %v327
  %v483 = vsel %vm475, 2147483648, %v328
  %v484 = vand.u32 %v476, 65535
  %v485 = vshra.s32 %v476, 16
  %v486 = vcvt.s32.f32 %v484
  %v487 = vcvt.s32.f32 %v485
  %488 = vmax.xlane.f32.xlu0 %v487
  %v489 = vpop.xlane.xlu0 %488
  %vm490 = vcmp.eq.f32.partialorder %v487, %v489
  %v491 = vsel %vm490, %v486, -inf
  %492 = vmax.xlane.f32.xlu0 %v491
  %v493 = vpop.xlane.xlu0 %492
  %v494 = vcvt.f32.s32 %v493
  %v495 = vcvt.f32.s32 %v489
  %v496 = vshll.u32 %v495, 16
  %v497 = vadd.s32 %v496, %v494
  %v498 = vand.u32 %v477, 65535
  %v499 = vshra.s32 %v477, 16
  %v500 = vcvt.s32.f32 %v498
  %v501 = vcvt.s32.f32 %v499
  %502 = vmax.xlane.f32.xlu0 %v501
  %v503 = vpop.xlane.xlu0 %502
  %vm504 = vcmp.eq.f32.partialorder %v501, %v503
  %v505 = vsel %vm504, %v500, -inf
  %506 = vmax.xlane.f32.xlu0 %v505
  %v507 = vpop.xlane.xlu0 %506
  %v508 = vcvt.f32.s32 %v507
  %v509 = vcvt.f32.s32 %v503
  %v510 = vshll.u32 %v509, 16
  %v511 = vadd.s32 %v510, %v508
  %v512 = vand.u32 %v478, 65535
  %v513 = vshra.s32 %v478, 16
  %v514 = vcvt.s32.f32 %v512
  %v515 = vcvt.s32.f32 %v513
  %516 = vmax.xlane.f32.xlu0 %v515
  %v517 = vpop.xlane.xlu0 %516
  %vm518 = vcmp.eq.f32.partialorder %v515, %v517
  %v519 = vsel %vm518, %v514, -inf
  %520 = vmax.xlane.f32.xlu0 %v519
  %v521 = vpop.xlane.xlu0 %520
  %v522 = vcvt.f32.s32 %v521
  %v523 = vcvt.f32.s32 %v517
  %v524 = vshll.u32 %v523, 16
  %v525 = vadd.s32 %v524, %v522
  %v526 = vand.u32 %v479, 65535
  %v527 = vshra.s32 %v479, 16
  %v528 = vcvt.s32.f32 %v526
  %v529 = vcvt.s32.f32 %v527
  %530 = vmax.xlane.f32.xlu0 %v529
  %v531 = vpop.xlane.xlu0 %530
  %vm532 = vcmp.eq.f32.partialorder %v529, %v531
  %v533 = vsel %vm532, %v528, -inf
  %534 = vmax.xlane.f32.xlu0 %v533
  %v535 = vpop.xlane.xlu0 %534
  %v536 = vcvt.f32.s32 %v535
  %v537 = vcvt.f32.s32 %v531
  %v538 = vshll.u32 %v537, 16
  %v539 = vadd.s32 %v538, %v536
  %v540 = vand.u32 %v480, 65535
  %v541 = vshra.s32 %v480, 16
  %v542 = vcvt.s32.f32 %v540
  %v543 = vcvt.s32.f32 %v541
  %544 = vmax.xlane.f32.xlu0 %v543
  %v545 = vpop.xlane.xlu0 %544
  %vm546 = vcmp.eq.f32.partialorder %v543, %v545
  %v547 = vsel %vm546, %v542, -inf
  %548 = vmax.xlane.f32.xlu0 %v547
  %v549 = vpop.xlane.xlu0 %548
  %v550 = vcvt.f32.s32 %v549
  %v551 = vcvt.f32.s32 %v545
  %v552 = vshll.u32 %v551, 16
  %v553 = vadd.s32 %v552, %v550
  %v554 = vand.u32 %v481, 65535
  %v555 = vshra.s32 %v481, 16
  %v556 = vcvt.s32.f32 %v554
  %v557 = vcvt.s32.f32 %v555
  %558 = vmax.xlane.f32.xlu0 %v557
  %v559 = vpop.xlane.xlu0 %558
  %vm560 = vcmp.eq.f32.partialorder %v557, %v559
  %v561 = vsel %vm560, %v556, -inf
  %562 = vmax.xlane.f32.xlu0 %v561
  %v563 = vpop.xlane.xlu0 %562
  %v564 = vcvt.f32.s32 %v563
  %v565 = vcvt.f32.s32 %v559
  %v566 = vshll.u32 %v565, 16
  %v567 = vadd.s32 %v566, %v564
  %v568 = vand.u32 %v482, 65535
  %v569 = vshra.s32 %v482, 16
  %v570 = vcvt.s32.f32 %v568
  %v571 = vcvt.s32.f32 %v569
  %572 = vmax.xlane.f32.xlu0 %v571
  %v573 = vpop.xlane.xlu0 %572
  %vm574 = vcmp.eq.f32.partialorder %v571, %v573
  %v575 = vsel %vm574, %v570, -inf
  %576 = vmax.xlane.f32.xlu0 %v575
  %v577 = vpop.xlane.xlu0 %576
  %v578 = vcvt.f32.s32 %v577
  %v579 = vcvt.f32.s32 %v573
  %v580 = vshll.u32 %v579, 16
  %v581 = vadd.s32 %v580, %v578
  %v582 = vand.u32 %v483, 65535
  %v583 = vshra.s32 %v483, 16
  %v584 = vcvt.s32.f32 %v582
  %v585 = vcvt.s32.f32 %v583
  %586 = vmax.xlane.f32.xlu0 %v585
  %v587 = vpop.xlane.xlu0 %586
  %vm588 = vcmp.eq.f32.partialorder %v585, %v587
  %v589 = vsel %vm588, %v584, -inf
  %590 = vmax.xlane.f32.xlu0 %v589
  %v591 = vpop.xlane.xlu0 %590
  %v592 = vcvt.f32.s32 %v591
  %v593 = vcvt.f32.s32 %v587
  %v594 = vshll.u32 %v593, 16
  %v595 = vadd.s32 %v594, %v592
  %vm596 = vcmp.gt.s32.totalorder %v497, %v553
  %v597 = vsel %vm596, %v497, %v553
  %vm598 = vcmp.gt.s32.totalorder %v511, %v567
  %v599 = vsel %vm598, %v511, %v567
  %vm600 = vcmp.gt.s32.totalorder %v525, %v581
  %v601 = vsel %vm600, %v525, %v581
  %vm602 = vcmp.gt.s32.totalorder %v539, %v595
  %v603 = vsel %vm602, %v539, %v595
  %vm604 = vcmp.gt.s32.totalorder %v597, %v599
  %v605 = vsel %vm604, %v597, %v599
  %vm606 = vcmp.gt.s32.totalorder %v601, %v603
  %v607 = vsel %vm606, %v601, %v603
  %vm608 = vcmp.gt.s32.totalorder %v605, %v607
  %v609 = vsel %vm608, %v605, %v607
  %v610 = vrot.slane %v609, 4
  %vm611 = vcmp.gt.s32.totalorder %v609, %v610
  %v612 = vsel %vm611, %v609, %v610
  %v613 = vrot.slane %v612, 2
  %vm614 = vcmp.gt.s32.totalorder %v612, %v613
  %v615 = vsel %vm614, %v612, %v613
  %v616 = vrot.slane %v615, 1
  %vm617 = vcmp.gt.s32.totalorder %v615, %v616
  %v618 = vsel %vm617, %v615, %v616
  %v619 = vand.u32 %v618, 8191
  %v620 = vsub.s32 8191, %v619
  %vm621 = vcmp.eq.s32.totalorder %v30, 2
  %v622 = vsel %vm621, %v620, %v467
  %vm623 = vcmp.eq.s32.totalorder %v30, %v620
  %vm624 = vcmp.eq.s32.totalorder %v31, %v620
  %vm625 = vcmp.eq.s32.totalorder %v32, %v620
  %vm626 = vcmp.eq.s32.totalorder %v33, %v620
  %vm627 = vcmp.eq.s32.totalorder %v34, %v620
  %vm628 = vcmp.eq.s32.totalorder %v35, %v620
  %vm629 = vcmp.eq.s32.totalorder %v36, %v620
  %vm630 = vcmp.eq.s32.totalorder %v37, %v620
  %v631 = vsel %vm623, 2147483648, %v476
  %v632 = vsel %vm624, 2147483648, %v477
  %v633 = vsel %vm625, 2147483648, %v478
  %v634 = vsel %vm626, 2147483648, %v479
  %v635 = vsel %vm627, 2147483648, %v480
  %v636 = vsel %vm628, 2147483648, %v481
  %v637 = vsel %vm629, 2147483648, %v482
  %v638 = vsel %vm630, 2147483648, %v483
  %v639 = vand.u32 %v631, 65535
  %v640 = vshra.s32 %v631, 16
  %v641 = vcvt.s32.f32 %v639
  %v642 = vcvt.s32.f32 %v640
  %643 = vmax.xlane.f32.xlu0 %v642
  %v644 = vpop.xlane.xlu0 %643
  %vm645 = vcmp.eq.f32.partialorder %v642, %v644
  %v646 = vsel %vm645, %v641, -inf
  %647 = vmax.xlane.f32.xlu0 %v646
  %v648 = vpop.xlane.xlu0 %647
  %v649 = vcvt.f32.s32 %v648
  %v650 = vcvt.f32.s32 %v644
  %v651 = vshll.u32 %v650, 16
  %v652 = vadd.s32 %v651, %v649
  %v653 = vand.u32 %v632, 65535
  %v654 = vshra.s32 %v632, 16
  %v655 = vcvt.s32.f32 %v653
  %v656 = vcvt.s32.f32 %v654
  %657 = vmax.xlane.f32.xlu0 %v656
  %v658 = vpop.xlane.xlu0 %657
  %vm659 = vcmp.eq.f32.partialorder %v656, %v658
  %v660 = vsel %vm659, %v655, -inf
  %661 = vmax.xlane.f32.xlu0 %v660
  %v662 = vpop.xlane.xlu0 %661
  %v663 = vcvt.f32.s32 %v662
  %v664 = vcvt.f32.s32 %v658
  %v665 = vshll.u32 %v664, 16
  %v666 = vadd.s32 %v665, %v663
  %v667 = vand.u32 %v633, 65535
  %v668 = vshra.s32 %v633, 16
  %v669 = vcvt.s32.f32 %v667
  %v670 = vcvt.s32.f32 %v668
  %671 = vmax.xlane.f32.xlu0 %v670
  %v672 = vpop.xlane.xlu0 %671
  %vm673 = vcmp.eq.f32.partialorder %v670, %v672
  %v674 = vsel %vm673, %v669, -inf
  %675 = vmax.xlane.f32.xlu0 %v674
  %v676 = vpop.xlane.xlu0 %675
  %v677 = vcvt.f32.s32 %v676
  %v678 = vcvt.f32.s32 %v672
  %v679 = vshll.u32 %v678, 16
  %v680 = vadd.s32 %v679, %v677
  %v681 = vand.u32 %v634, 65535
  %v682 = vshra.s32 %v634, 16
  %v683 = vcvt.s32.f32 %v681
  %v684 = vcvt.s32.f32 %v682
  %685 = vmax.xlane.f32.xlu0 %v684
  %v686 = vpop.xlane.xlu0 %685
  %vm687 = vcmp.eq.f32.partialorder %v684, %v686
  %v688 = vsel %vm687, %v683, -inf
  %689 = vmax.xlane.f32.xlu0 %v688
  %v690 = vpop.xlane.xlu0 %689
  %v691 = vcvt.f32.s32 %v690
  %v692 = vcvt.f32.s32 %v686
  %v693 = vshll.u32 %v692, 16
  %v694 = vadd.s32 %v693, %v691
  %v695 = vand.u32 %v635, 65535
  %v696 = vshra.s32 %v635, 16
  %v697 = vcvt.s32.f32 %v695
  %v698 = vcvt.s32.f32 %v696
  %699 = vmax.xlane.f32.xlu0 %v698
  %v700 = vpop.xlane.xlu0 %699
  %vm701 = vcmp.eq.f32.partialorder %v698, %v700
  %v702 = vsel %vm701, %v697, -inf
  %703 = vmax.xlane.f32.xlu0 %v702
  %v704 = vpop.xlane.xlu0 %703
  %v705 = vcvt.f32.s32 %v704
  %v706 = vcvt.f32.s32 %v700
  %v707 = vshll.u32 %v706, 16
  %v708 = vadd.s32 %v707, %v705
  %v709 = vand.u32 %v636, 65535
  %v710 = vshra.s32 %v636, 16
  %v711 = vcvt.s32.f32 %v709
  %v712 = vcvt.s32.f32 %v710
  %713 = vmax.xlane.f32.xlu0 %v712
  %v714 = vpop.xlane.xlu0 %713
  %vm715 = vcmp.eq.f32.partialorder %v712, %v714
  %v716 = vsel %vm715, %v711, -inf
  %717 = vmax.xlane.f32.xlu0 %v716
  %v718 = vpop.xlane.xlu0 %717
  %v719 = vcvt.f32.s32 %v718
  %v720 = vcvt.f32.s32 %v714
  %v721 = vshll.u32 %v720, 16
  %v722 = vadd.s32 %v721, %v719
  %v723 = vand.u32 %v637, 65535
  %v724 = vshra.s32 %v637, 16
  %v725 = vcvt.s32.f32 %v723
  %v726 = vcvt.s32.f32 %v724
  %727 = vmax.xlane.f32.xlu0 %v726
  %v728 = vpop.xlane.xlu0 %727
  %vm729 = vcmp.eq.f32.partialorder %v726, %v728
  %v730 = vsel %vm729, %v725, -inf
  %731 = vmax.xlane.f32.xlu0 %v730
  %v732 = vpop.xlane.xlu0 %731
  %v733 = vcvt.f32.s32 %v732
  %v734 = vcvt.f32.s32 %v728
  %v735 = vshll.u32 %v734, 16
  %v736 = vadd.s32 %v735, %v733
  %v737 = vand.u32 %v638, 65535
  %v738 = vshra.s32 %v638, 16
  %v739 = vcvt.s32.f32 %v737
  %v740 = vcvt.s32.f32 %v738
  %741 = vmax.xlane.f32.xlu0 %v740
  %v742 = vpop.xlane.xlu0 %741
  %vm743 = vcmp.eq.f32.partialorder %v740, %v742
  %v744 = vsel %vm743, %v739, -inf
  %745 = vmax.xlane.f32.xlu0 %v744
  %v746 = vpop.xlane.xlu0 %745
  %v747 = vcvt.f32.s32 %v746
  %v748 = vcvt.f32.s32 %v742
  %v749 = vshll.u32 %v748, 16
  %v750 = vadd.s32 %v749, %v747
  %vm751 = vcmp.gt.s32.totalorder %v652, %v708
  %v752 = vsel %vm751, %v652, %v708
  %vm753 = vcmp.gt.s32.totalorder %v666, %v722
  %v754 = vsel %vm753, %v666, %v722
  %vm755 = vcmp.gt.s32.totalorder %v680, %v736
  %v756 = vsel %vm755, %v680, %v736
  %vm757 = vcmp.gt.s32.totalorder %v694, %v750
  %v758 = vsel %vm757, %v694, %v750
  %vm759 = vcmp.gt.s32.totalorder %v752, %v754
  %v760 = vsel %vm759, %v752, %v754
  %vm761 = vcmp.gt.s32.totalorder %v756, %v758
  %v762 = vsel %vm761, %v756, %v758
  %vm763 = vcmp.gt.s32.totalorder %v760, %v762
  %v764 = vsel %vm763, %v760, %v762
  %v765 = vrot.slane %v764, 4
  %vm766 = vcmp.gt.s32.totalorder %v764, %v765
  %v767 = vsel %vm766, %v764, %v765
  %v768 = vrot.slane %v767, 2
  %vm769 = vcmp.gt.s32.totalorder %v767, %v768
  %v770 = vsel %vm769, %v767, %v768
  %v771 = vrot.slane %v770, 1
  %vm772 = vcmp.gt.s32.totalorder %v770, %v771
  %v773 = vsel %vm772, %v770, %v771
  %v774 = vand.u32 %v773, 8191
  %v775 = vsub.s32 8191, %v774
  %vm776 = vcmp.eq.s32.totalorder %v30, 3
  %v777 = vsel %vm776, %v775, %v622
  %vm778 = vcmp.eq.s32.totalorder %v30, %v775
  %vm779 = vcmp.eq.s32.totalorder %v31, %v775
  %vm780 = vcmp.eq.s32.totalorder %v32, %v775
  %vm781 = vcmp.eq.s32.totalorder %v33, %v775
  %vm782 = vcmp.eq.s32.totalorder %v34, %v775
  %vm783 = vcmp.eq.s32.totalorder %v35, %v775
  %vm784 = vcmp.eq.s32.totalorder %v36, %v775
  %vm785 = vcmp.eq.s32.totalorder %v37, %v775
  %v786 = vsel %vm778, 2147483648, %v631
  %v787 = vsel %vm779, 2147483648, %v632
  %v788 = vsel %vm780, 2147483648, %v633
  %v789 = vsel %vm781, 2147483648, %v634
  %v790 = vsel %vm782, 2147483648, %v635
  %v791 = vsel %vm783, 2147483648, %v636
  %v792 = vsel %vm784, 2147483648, %v637
  %v793 = vsel %vm785, 2147483648, %v638
  %v794 = vand.u32 %v786, 65535
  %v795 = vshra.s32 %v786, 16
  %v796 = vcvt.s32.f32 %v794
  %v797 = vcvt.s32.f32 %v795
  %798 = vmax.xlane.f32.xlu0 %v797
  %v799 = vpop.xlane.xlu0 %798
  %vm800 = vcmp.eq.f32.partialorder %v797, %v799
  %v801 = vsel %vm800, %v796, -inf
  %802 = vmax.xlane.f32.xlu0 %v801
  %v803 = vpop.xlane.xlu0 %802
  %v804 = vcvt.f32.s32 %v803
  %v805 = vcvt.f32.s32 %v799
  %v806 = vshll.u32 %v805, 16
  %v807 = vadd.s32 %v806, %v804
  %v808 = vand.u32 %v787, 65535
  %v809 = vshra.s32 %v787, 16
  %v810 = vcvt.s32.f32 %v808
  %v811 = vcvt.s32.f32 %v809
  %812 = vmax.xlane.f32.xlu0 %v811
  %v813 = vpop.xlane.xlu0 %812
  %vm814 = vcmp.eq.f32.partialorder %v811, %v813
  %v815 = vsel %vm814, %v810, -inf
  %816 = vmax.xlane.f32.xlu0 %v815
  %v817 = vpop.xlane.xlu0 %816
  %v818 = vcvt.f32.s32 %v817
  %v819 = vcvt.f32.s32 %v813
  %v820 = vshll.u32 %v819, 16
  %v821 = vadd.s32 %v820, %v818
  %v822 = vand.u32 %v788, 65535
  %v823 = vshra.s32 %v788, 16
  %v824 = vcvt.s32.f32 %v822
  %v825 = vcvt.s32.f32 %v823
  %826 = vmax.xlane.f32.xlu0 %v825
  %v827 = vpop.xlane.xlu0 %826
  %vm828 = vcmp.eq.f32.partialorder %v825, %v827
  %v829 = vsel %vm828, %v824, -inf
  %830 = vmax.xlane.f32.xlu0 %v829
  %v831 = vpop.xlane.xlu0 %830
  %v832 = vcvt.f32.s32 %v831
  %v833 = vcvt.f32.s32 %v827
  %v834 = vshll.u32 %v833, 16
  %v835 = vadd.s32 %v834, %v832
  %v836 = vand.u32 %v789, 65535
  %v837 = vshra.s32 %v789, 16
  %v838 = vcvt.s32.f32 %v836
  %v839 = vcvt.s32.f32 %v837
  %840 = vmax.xlane.f32.xlu0 %v839
  %v841 = vpop.xlane.xlu0 %840
  %vm842 = vcmp.eq.f32.partialorder %v839, %v841
  %v843 = vsel %vm842, %v838, -inf
  %844 = vmax.xlane.f32.xlu0 %v843
  %v845 = vpop.xlane.xlu0 %844
  %v846 = vcvt.f32.s32 %v845
  %v847 = vcvt.f32.s32 %v841
  %v848 = vshll.u32 %v847, 16
  %v849 = vadd.s32 %v848, %v846
  %v850 = vand.u32 %v790, 65535
  %v851 = vshra.s32 %v790, 16
  %v852 = vcvt.s32.f32 %v850
  %v853 = vcvt.s32.f32 %v851
  %854 = vmax.xlane.f32.xlu0 %v853
  %v855 = vpop.xlane.xlu0 %854
  %vm856 = vcmp.eq.f32.partialorder %v853, %v855
  %v857 = vsel %vm856, %v852, -inf
  %858 = vmax.xlane.f32.xlu0 %v857
  %v859 = vpop.xlane.xlu0 %858
  %v860 = vcvt.f32.s32 %v859
  %v861 = vcvt.f32.s32 %v855
  %v862 = vshll.u32 %v861, 16
  %v863 = vadd.s32 %v862, %v860
  %v864 = vand.u32 %v791, 65535
  %v865 = vshra.s32 %v791, 16
  %v866 = vcvt.s32.f32 %v864
  %v867 = vcvt.s32.f32 %v865
  %868 = vmax.xlane.f32.xlu0 %v867
  %v869 = vpop.xlane.xlu0 %868
  %vm870 = vcmp.eq.f32.partialorder %v867, %v869
  %v871 = vsel %vm870, %v866, -inf
  %872 = vmax.xlane.f32.xlu0 %v871
  %v873 = vpop.xlane.xlu0 %872
  %v874 = vcvt.f32.s32 %v873
  %v875 = vcvt.f32.s32 %v869
  %v876 = vshll.u32 %v875, 16
  %v877 = vadd.s32 %v876, %v874
  %v878 = vand.u32 %v792, 65535
  %v879 = vshra.s32 %v792, 16
  %v880 = vcvt.s32.f32 %v878
  %v881 = vcvt.s32.f32 %v879
  %882 = vmax.xlane.f32.xlu0 %v881
  %v883 = vpop.xlane.xlu0 %882
  %vm884 = vcmp.eq.f32.partialorder %v881, %v883
  %v885 = vsel %vm884, %v880, -inf
  %886 = vmax.xlane.f32.xlu0 %v885
  %v887 = vpop.xlane.xlu0 %886
  %v888 = vcvt.f32.s32 %v887
  %v889 = vcvt.f32.s32 %v883
  %v890 = vshll.u32 %v889, 16
  %v891 = vadd.s32 %v890, %v888
  %v892 = vand.u32 %v793, 65535
  %v893 = vshra.s32 %v793, 16
  %v894 = vcvt.s32.f32 %v892
  %v895 = vcvt.s32.f32 %v893
  %896 = vmax.xlane.f32.xlu0 %v895
  %v897 = vpop.xlane.xlu0 %896
  %vm898 = vcmp.eq.f32.partialorder %v895, %v897
  %v899 = vsel %vm898, %v894, -inf
  %900 = vmax.xlane.f32.xlu0 %v899
  %v901 = vpop.xlane.xlu0 %900
  %v902 = vcvt.f32.s32 %v901
  %v903 = vcvt.f32.s32 %v897
  %v904 = vshll.u32 %v903, 16
  %v905 = vadd.s32 %v904, %v902
  %vm906 = vcmp.gt.s32.totalorder %v807, %v863
  %v907 = vsel %vm906, %v807, %v863
  %vm908 = vcmp.gt.s32.totalorder %v821, %v877
  %v909 = vsel %vm908, %v821, %v877
  %vm910 = vcmp.gt.s32.totalorder %v835, %v891
  %v911 = vsel %vm910, %v835, %v891
  %vm912 = vcmp.gt.s32.totalorder %v849, %v905
  %v913 = vsel %vm912, %v849, %v905
  %vm914 = vcmp.gt.s32.totalorder %v907, %v909
  %v915 = vsel %vm914, %v907, %v909
  %vm916 = vcmp.gt.s32.totalorder %v911, %v913
  %v917 = vsel %vm916, %v911, %v913
  %vm918 = vcmp.gt.s32.totalorder %v915, %v917
  %v919 = vsel %vm918, %v915, %v917
  %v920 = vrot.slane %v919, 4
  %vm921 = vcmp.gt.s32.totalorder %v919, %v920
  %v922 = vsel %vm921, %v919, %v920
  %v923 = vrot.slane %v922, 2
  %vm924 = vcmp.gt.s32.totalorder %v922, %v923
  %v925 = vsel %vm924, %v922, %v923
  %v926 = vrot.slane %v925, 1
  %vm927 = vcmp.gt.s32.totalorder %v925, %v926
  %v928 = vsel %vm927, %v925, %v926
  %v929 = vand.u32 %v928, 8191
  %v930 = vsub.s32 8191, %v929
  %vm931 = vcmp.eq.s32.totalorder %v30, 4
  %v932 = vsel %vm931, %v930, %v777
  %vm933 = vcmp.eq.s32.totalorder %v30, %v930
  %vm934 = vcmp.eq.s32.totalorder %v31, %v930
  %vm935 = vcmp.eq.s32.totalorder %v32, %v930
  %vm936 = vcmp.eq.s32.totalorder %v33, %v930
  %vm937 = vcmp.eq.s32.totalorder %v34, %v930
  %vm938 = vcmp.eq.s32.totalorder %v35, %v930
  %vm939 = vcmp.eq.s32.totalorder %v36, %v930
  %vm940 = vcmp.eq.s32.totalorder %v37, %v930
  %v941 = vsel %vm933, 2147483648, %v786
  %v942 = vsel %vm934, 2147483648, %v787
  %v943 = vsel %vm935, 2147483648, %v788
  %v944 = vsel %vm936, 2147483648, %v789
  %v945 = vsel %vm937, 2147483648, %v790
  %v946 = vsel %vm938, 2147483648, %v791
  %v947 = vsel %vm939, 2147483648, %v792
  %v948 = vsel %vm940, 2147483648, %v793
  %v949 = vand.u32 %v941, 65535
  %v950 = vshra.s32 %v941, 16
  %v951 = vcvt.s32.f32 %v949
  %v952 = vcvt.s32.f32 %v950
  %953 = vmax.xlane.f32.xlu0 %v952
  %v954 = vpop.xlane.xlu0 %953
  %vm955 = vcmp.eq.f32.partialorder %v952, %v954
  %v956 = vsel %vm955, %v951, -inf
  %957 = vmax.xlane.f32.xlu0 %v956
  %v958 = vpop.xlane.xlu0 %957
  %v959 = vcvt.f32.s32 %v958
  %v960 = vcvt.f32.s32 %v954
  %v961 = vshll.u32 %v960, 16
  %v962 = vadd.s32 %v961, %v959
  %v963 = vand.u32 %v942, 65535
  %v964 = vshra.s32 %v942, 16
  %v965 = vcvt.s32.f32 %v963
  %v966 = vcvt.s32.f32 %v964
  %967 = vmax.xlane.f32.xlu0 %v966
  %v968 = vpop.xlane.xlu0 %967
  %vm969 = vcmp.eq.f32.partialorder %v966, %v968
  %v970 = vsel %vm969, %v965, -inf
  %971 = vmax.xlane.f32.xlu0 %v970
  %v972 = vpop.xlane.xlu0 %971
  %v973 = vcvt.f32.s32 %v972
  %v974 = vcvt.f32.s32 %v968
  %v975 = vshll.u32 %v974, 16
  %v976 = vadd.s32 %v975, %v973
  %v977 = vand.u32 %v943, 65535
  %v978 = vshra.s32 %v943, 16
  %v979 = vcvt.s32.f32 %v977
  %v980 = vcvt.s32.f32 %v978
  %981 = vmax.xlane.f32.xlu0 %v980
  %v982 = vpop.xlane.xlu0 %981
  %vm983 = vcmp.eq.f32.partialorder %v980, %v982
  %v984 = vsel %vm983, %v979, -inf
  %985 = vmax.xlane.f32.xlu0 %v984
  %v986 = vpop.xlane.xlu0 %985
  %v987 = vcvt.f32.s32 %v986
  %v988 = vcvt.f32.s32 %v982
  %v989 = vshll.u32 %v988, 16
  %v990 = vadd.s32 %v989, %v987
  %v991 = vand.u32 %v944, 65535
  %v992 = vshra.s32 %v944, 16
  %v993 = vcvt.s32.f32 %v991
  %v994 = vcvt.s32.f32 %v992
  %995 = vmax.xlane.f32.xlu0 %v994
  %v996 = vpop.xlane.xlu0 %995
  %vm997 = vcmp.eq.f32.partialorder %v994, %v996
  %v998 = vsel %vm997, %v993, -inf
  %999 = vmax.xlane.f32.xlu0 %v998
  %v1000 = vpop.xlane.xlu0 %999
  %v1001 = vcvt.f32.s32 %v1000
  %v1002 = vcvt.f32.s32 %v996
  %v1003 = vshll.u32 %v1002, 16
  %v1004 = vadd.s32 %v1003, %v1001
  %v1005 = vand.u32 %v945, 65535
  %v1006 = vshra.s32 %v945, 16
  %v1007 = vcvt.s32.f32 %v1005
  %v1008 = vcvt.s32.f32 %v1006
  %1009 = vmax.xlane.f32.xlu0 %v1008
  %v1010 = vpop.xlane.xlu0 %1009
  %vm1011 = vcmp.eq.f32.partialorder %v1008, %v1010
  %v1012 = vsel %vm1011, %v1007, -inf
  %1013 = vmax.xlane.f32.xlu0 %v1012
  %v1014 = vpop.xlane.xlu0 %1013
  %v1015 = vcvt.f32.s32 %v1014
  %v1016 = vcvt.f32.s32 %v1010
  %v1017 = vshll.u32 %v1016, 16
  %v1018 = vadd.s32 %v1017, %v1015
  %v1019 = vand.u32 %v946, 65535
  %v1020 = vshra.s32 %v946, 16
  %v1021 = vcvt.s32.f32 %v1019
  %v1022 = vcvt.s32.f32 %v1020
  %1023 = vmax.xlane.f32.xlu0 %v1022
  %v1024 = vpop.xlane.xlu0 %1023
  %vm1025 = vcmp.eq.f32.partialorder %v1022, %v1024
  %v1026 = vsel %vm1025, %v1021, -inf
  %1027 = vmax.xlane.f32.xlu0 %v1026
  %v1028 = vpop.xlane.xlu0 %1027
  %v1029 = vcvt.f32.s32 %v1028
  %v1030 = vcvt.f32.s32 %v1024
  %v1031 = vshll.u32 %v1030, 16
  %v1032 = vadd.s32 %v1031, %v1029
  %v1033 = vand.u32 %v947, 65535
  %v1034 = vshra.s32 %v947, 16
  %v1035 = vcvt.s32.f32 %v1033
  %v1036 = vcvt.s32.f32 %v1034
  %1037 = vmax.xlane.f32.xlu0 %v1036
  %v1038 = vpop.xlane.xlu0 %1037
  %vm1039 = vcmp.eq.f32.partialorder %v1036, %v1038
  %v1040 = vsel %vm1039, %v1035, -inf
  %1041 = vmax.xlane.f32.xlu0 %v1040
  %v1042 = vpop.xlane.xlu0 %1041
  %v1043 = vcvt.f32.s32 %v1042
  %v1044 = vcvt.f32.s32 %v1038
  %v1045 = vshll.u32 %v1044, 16
  %v1046 = vadd.s32 %v1045, %v1043
  %v1047 = vand.u32 %v948, 65535
  %v1048 = vshra.s32 %v948, 16
  %v1049 = vcvt.s32.f32 %v1047
  %v1050 = vcvt.s32.f32 %v1048
  %1051 = vmax.xlane.f32.xlu0 %v1050
  %v1052 = vpop.xlane.xlu0 %1051
  %vm1053 = vcmp.eq.f32.partialorder %v1050, %v1052
  %v1054 = vsel %vm1053, %v1049, -inf
  %1055 = vmax.xlane.f32.xlu0 %v1054
  %v1056 = vpop.xlane.xlu0 %1055
  %v1057 = vcvt.f32.s32 %v1056
  %v1058 = vcvt.f32.s32 %v1052
  %v1059 = vshll.u32 %v1058, 16
  %v1060 = vadd.s32 %v1059, %v1057
  %vm1061 = vcmp.gt.s32.totalorder %v962, %v1018
  %v1062 = vsel %vm1061, %v962, %v1018
  %vm1063 = vcmp.gt.s32.totalorder %v976, %v1032
  %v1064 = vsel %vm1063, %v976, %v1032
  %vm1065 = vcmp.gt.s32.totalorder %v990, %v1046
  %v1066 = vsel %vm1065, %v990, %v1046
  %vm1067 = vcmp.gt.s32.totalorder %v1004, %v1060
  %v1068 = vsel %vm1067, %v1004, %v1060
  %vm1069 = vcmp.gt.s32.totalorder %v1062, %v1064
  %v1070 = vsel %vm1069, %v1062, %v1064
  %vm1071 = vcmp.gt.s32.totalorder %v1066, %v1068
  %v1072 = vsel %vm1071, %v1066, %v1068
  %vm1073 = vcmp.gt.s32.totalorder %v1070, %v1072
  %v1074 = vsel %vm1073, %v1070, %v1072
  %v1075 = vrot.slane %v1074, 4
  %vm1076 = vcmp.gt.s32.totalorder %v1074, %v1075
  %v1077 = vsel %vm1076, %v1074, %v1075
  %v1078 = vrot.slane %v1077, 2
  %vm1079 = vcmp.gt.s32.totalorder %v1077, %v1078
  %v1080 = vsel %vm1079, %v1077, %v1078
  %v1081 = vrot.slane %v1080, 1
  %vm1082 = vcmp.gt.s32.totalorder %v1080, %v1081
  %v1083 = vsel %vm1082, %v1080, %v1081
  %v1084 = vand.u32 %v1083, 8191
  %v1085 = vsub.s32 8191, %v1084
  %vm1086 = vcmp.eq.s32.totalorder %v30, 5
  %v1087 = vsel %vm1086, %v1085, %v932
  %vm1088 = vcmp.eq.s32.totalorder %v30, %v1085
  %vm1089 = vcmp.eq.s32.totalorder %v31, %v1085
  %vm1090 = vcmp.eq.s32.totalorder %v32, %v1085
  %vm1091 = vcmp.eq.s32.totalorder %v33, %v1085
  %vm1092 = vcmp.eq.s32.totalorder %v34, %v1085
  %vm1093 = vcmp.eq.s32.totalorder %v35, %v1085
  %vm1094 = vcmp.eq.s32.totalorder %v36, %v1085
  %vm1095 = vcmp.eq.s32.totalorder %v37, %v1085
  %v1096 = vsel %vm1088, 2147483648, %v941
  %v1097 = vsel %vm1089, 2147483648, %v942
  %v1098 = vsel %vm1090, 2147483648, %v943
  %v1099 = vsel %vm1091, 2147483648, %v944
  %v1100 = vsel %vm1092, 2147483648, %v945
  %v1101 = vsel %vm1093, 2147483648, %v946
  %v1102 = vsel %vm1094, 2147483648, %v947
  %v1103 = vsel %vm1095, 2147483648, %v948
  %v1104 = vand.u32 %v1096, 65535
  %v1105 = vshra.s32 %v1096, 16
  %v1106 = vcvt.s32.f32 %v1104
  %v1107 = vcvt.s32.f32 %v1105
  %1108 = vmax.xlane.f32.xlu0 %v1107
  %v1109 = vpop.xlane.xlu0 %1108
  %vm1110 = vcmp.eq.f32.partialorder %v1107, %v1109
  %v1111 = vsel %vm1110, %v1106, -inf
  %1112 = vmax.xlane.f32.xlu0 %v1111
  %v1113 = vpop.xlane.xlu0 %1112
  %v1114 = vcvt.f32.s32 %v1113
  %v1115 = vcvt.f32.s32 %v1109
  %v1116 = vshll.u32 %v1115, 16
  %v1117 = vadd.s32 %v1116, %v1114
  %v1118 = vand.u32 %v1097, 65535
  %v1119 = vshra.s32 %v1097, 16
  %v1120 = vcvt.s32.f32 %v1118
  %v1121 = vcvt.s32.f32 %v1119
  %1122 = vmax.xlane.f32.xlu0 %v1121
  %v1123 = vpop.xlane.xlu0 %1122
  %vm1124 = vcmp.eq.f32.partialorder %v1121, %v1123
  %v1125 = vsel %vm1124, %v1120, -inf
  %1126 = vmax.xlane.f32.xlu0 %v1125
  %v1127 = vpop.xlane.xlu0 %1126
  %v1128 = vcvt.f32.s32 %v1127
  %v1129 = vcvt.f32.s32 %v1123
  %v1130 = vshll.u32 %v1129, 16
  %v1131 = vadd.s32 %v1130, %v1128
  %v1132 = vand.u32 %v1098, 65535
  %v1133 = vshra.s32 %v1098, 16
  %v1134 = vcvt.s32.f32 %v1132
  %v1135 = vcvt.s32.f32 %v1133
  %1136 = vmax.xlane.f32.xlu0 %v1135
  %v1137 = vpop.xlane.xlu0 %1136
  %vm1138 = vcmp.eq.f32.partialorder %v1135, %v1137
  %v1139 = vsel %vm1138, %v1134, -inf
  %1140 = vmax.xlane.f32.xlu0 %v1139
  %v1141 = vpop.xlane.xlu0 %1140
  %v1142 = vcvt.f32.s32 %v1141
  %v1143 = vcvt.f32.s32 %v1137
  %v1144 = vshll.u32 %v1143, 16
  %v1145 = vadd.s32 %v1144, %v1142
  %v1146 = vand.u32 %v1099, 65535
  %v1147 = vshra.s32 %v1099, 16
  %v1148 = vcvt.s32.f32 %v1146
  %v1149 = vcvt.s32.f32 %v1147
  %1150 = vmax.xlane.f32.xlu0 %v1149
  %v1151 = vpop.xlane.xlu0 %1150
  %vm1152 = vcmp.eq.f32.partialorder %v1149, %v1151
  %v1153 = vsel %vm1152, %v1148, -inf
  %1154 = vmax.xlane.f32.xlu0 %v1153
  %v1155 = vpop.xlane.xlu0 %1154
  %v1156 = vcvt.f32.s32 %v1155
  %v1157 = vcvt.f32.s32 %v1151
  %v1158 = vshll.u32 %v1157, 16
  %v1159 = vadd.s32 %v1158, %v1156
  %v1160 = vand.u32 %v1100, 65535
  %v1161 = vshra.s32 %v1100, 16
  %v1162 = vcvt.s32.f32 %v1160
  %v1163 = vcvt.s32.f32 %v1161
  %1164 = vmax.xlane.f32.xlu0 %v1163
  %v1165 = vpop.xlane.xlu0 %1164
  %vm1166 = vcmp.eq.f32.partialorder %v1163, %v1165
  %v1167 = vsel %vm1166, %v1162, -inf
  %1168 = vmax.xlane.f32.xlu0 %v1167
  %v1169 = vpop.xlane.xlu0 %1168
  %v1170 = vcvt.f32.s32 %v1169
  %v1171 = vcvt.f32.s32 %v1165
  %v1172 = vshll.u32 %v1171, 16
  %v1173 = vadd.s32 %v1172, %v1170
  %v1174 = vand.u32 %v1101, 65535
  %v1175 = vshra.s32 %v1101, 16
  %v1176 = vcvt.s32.f32 %v1174
  %v1177 = vcvt.s32.f32 %v1175
  %1178 = vmax.xlane.f32.xlu0 %v1177
  %v1179 = vpop.xlane.xlu0 %1178
  %vm1180 = vcmp.eq.f32.partialorder %v1177, %v1179
  %v1181 = vsel %vm1180, %v1176, -inf
  %1182 = vmax.xlane.f32.xlu0 %v1181
  %v1183 = vpop.xlane.xlu0 %1182
  %v1184 = vcvt.f32.s32 %v1183
  %v1185 = vcvt.f32.s32 %v1179
  %v1186 = vshll.u32 %v1185, 16
  %v1187 = vadd.s32 %v1186, %v1184
  %v1188 = vand.u32 %v1102, 65535
  %v1189 = vshra.s32 %v1102, 16
  %v1190 = vcvt.s32.f32 %v1188
  %v1191 = vcvt.s32.f32 %v1189
  %1192 = vmax.xlane.f32.xlu0 %v1191
  %v1193 = vpop.xlane.xlu0 %1192
  %vm1194 = vcmp.eq.f32.partialorder %v1191, %v1193
  %v1195 = vsel %vm1194, %v1190, -inf
  %1196 = vmax.xlane.f32.xlu0 %v1195
  %v1197 = vpop.xlane.xlu0 %1196
  %v1198 = vcvt.f32.s32 %v1197
  %v1199 = vcvt.f32.s32 %v1193
  %v1200 = vshll.u32 %v1199, 16
  %v1201 = vadd.s32 %v1200, %v1198
  %v1202 = vand.u32 %v1103, 65535
  %v1203 = vshra.s32 %v1103, 16
  %v1204 = vcvt.s32.f32 %v1202
  %v1205 = vcvt.s32.f32 %v1203
  %1206 = vmax.xlane.f32.xlu0 %v1205
  %v1207 = vpop.xlane.xlu0 %1206
  %vm1208 = vcmp.eq.f32.partialorder %v1205, %v1207
  %v1209 = vsel %vm1208, %v1204, -inf
  %1210 = vmax.xlane.f32.xlu0 %v1209
  %v1211 = vpop.xlane.xlu0 %1210
  %v1212 = vcvt.f32.s32 %v1211
  %v1213 = vcvt.f32.s32 %v1207
  %v1214 = vshll.u32 %v1213, 16
  %v1215 = vadd.s32 %v1214, %v1212
  %vm1216 = vcmp.gt.s32.totalorder %v1117, %v1173
  %v1217 = vsel %vm1216, %v1117, %v1173
  %vm1218 = vcmp.gt.s32.totalorder %v1131, %v1187
  %v1219 = vsel %vm1218, %v1131, %v1187
  %vm1220 = vcmp.gt.s32.totalorder %v1145, %v1201
  %v1221 = vsel %vm1220, %v1145, %v1201
  %vm1222 = vcmp.gt.s32.totalorder %v1159, %v1215
  %v1223 = vsel %vm1222, %v1159, %v1215
  %vm1224 = vcmp.gt.s32.totalorder %v1217, %v1219
  %v1225 = vsel %vm1224, %v1217, %v1219
  %vm1226 = vcmp.gt.s32.totalorder %v1221, %v1223
  %v1227 = vsel %vm1226, %v1221, %v1223
  %vm1228 = vcmp.gt.s32.totalorder %v1225, %v1227
  %v1229 = vsel %vm1228, %v1225, %v1227
  %v1230 = vrot.slane %v1229, 4
  %vm1231 = vcmp.gt.s32.totalorder %v1229, %v1230
  %v1232 = vsel %vm1231, %v1229, %v1230
  %v1233 = vrot.slane %v1232, 2
  %vm1234 = vcmp.gt.s32.totalorder %v1232, %v1233
  %v1235 = vsel %vm1234, %v1232, %v1233
  %v1236 = vrot.slane %v1235, 1
  %vm1237 = vcmp.gt.s32.totalorder %v1235, %v1236
  %v1238 = vsel %vm1237, %v1235, %v1236
  %v1239 = vand.u32 %v1238, 8191
  %v1240 = vsub.s32 8191, %v1239
  %vm1241 = vcmp.eq.s32.totalorder %v30, 6
  %v1242 = vsel %vm1241, %v1240, %v1087
  %vm1243 = vcmp.eq.s32.totalorder %v30, %v1240
  %vm1244 = vcmp.eq.s32.totalorder %v31, %v1240
  %vm1245 = vcmp.eq.s32.totalorder %v32, %v1240
  %vm1246 = vcmp.eq.s32.totalorder %v33, %v1240
  %vm1247 = vcmp.eq.s32.totalorder %v34, %v1240
  %vm1248 = vcmp.eq.s32.totalorder %v35, %v1240
  %vm1249 = vcmp.eq.s32.totalorder %v36, %v1240
  %vm1250 = vcmp.eq.s32.totalorder %v37, %v1240
  %v1251 = vsel %vm1243, 2147483648, %v1096
  %v1252 = vsel %vm1244, 2147483648, %v1097
  %v1253 = vsel %vm1245, 2147483648, %v1098
  %v1254 = vsel %vm1246, 2147483648, %v1099
  %v1255 = vsel %vm1247, 2147483648, %v1100
  %v1256 = vsel %vm1248, 2147483648, %v1101
  %v1257 = vsel %vm1249, 2147483648, %v1102
  %v1258 = vsel %vm1250, 2147483648, %v1103
  %v1259 = vand.u32 %v1251, 65535
  %v1260 = vshra.s32 %v1251, 16
  %v1261 = vcvt.s32.f32 %v1259
  %v1262 = vcvt.s32.f32 %v1260
  %1263 = vmax.xlane.f32.xlu0 %v1262
  %v1264 = vpop.xlane.xlu0 %1263
  %vm1265 = vcmp.eq.f32.partialorder %v1262, %v1264
  %v1266 = vsel %vm1265, %v1261, -inf
  %1267 = vmax.xlane.f32.xlu0 %v1266
  %v1268 = vpop.xlane.xlu0 %1267
  %v1269 = vcvt.f32.s32 %v1268
  %v1270 = vcvt.f32.s32 %v1264
  %v1271 = vshll.u32 %v1270, 16
  %v1272 = vadd.s32 %v1271, %v1269
  %v1273 = vand.u32 %v1252, 65535
  %v1274 = vshra.s32 %v1252, 16
  %v1275 = vcvt.s32.f32 %v1273
  %v1276 = vcvt.s32.f32 %v1274
  %1277 = vmax.xlane.f32.xlu0 %v1276
  %v1278 = vpop.xlane.xlu0 %1277
  %vm1279 = vcmp.eq.f32.partialorder %v1276, %v1278
  %v1280 = vsel %vm1279, %v1275, -inf
  %1281 = vmax.xlane.f32.xlu0 %v1280
  %v1282 = vpop.xlane.xlu0 %1281
  %v1283 = vcvt.f32.s32 %v1282
  %v1284 = vcvt.f32.s32 %v1278
  %v1285 = vshll.u32 %v1284, 16
  %v1286 = vadd.s32 %v1285, %v1283
  %v1287 = vand.u32 %v1253, 65535
  %v1288 = vshra.s32 %v1253, 16
  %v1289 = vcvt.s32.f32 %v1287
  %v1290 = vcvt.s32.f32 %v1288
  %1291 = vmax.xlane.f32.xlu0 %v1290
  %v1292 = vpop.xlane.xlu0 %1291
  %vm1293 = vcmp.eq.f32.partialorder %v1290, %v1292
  %v1294 = vsel %vm1293, %v1289, -inf
  %1295 = vmax.xlane.f32.xlu0 %v1294
  %v1296 = vpop.xlane.xlu0 %1295
  %v1297 = vcvt.f32.s32 %v1296
  %v1298 = vcvt.f32.s32 %v1292
  %v1299 = vshll.u32 %v1298, 16
  %v1300 = vadd.s32 %v1299, %v1297
  %v1301 = vand.u32 %v1254, 65535
  %v1302 = vshra.s32 %v1254, 16
  %v1303 = vcvt.s32.f32 %v1301
  %v1304 = vcvt.s32.f32 %v1302
  %1305 = vmax.xlane.f32.xlu0 %v1304
  %v1306 = vpop.xlane.xlu0 %1305
  %vm1307 = vcmp.eq.f32.partialorder %v1304, %v1306
  %v1308 = vsel %vm1307, %v1303, -inf
  %1309 = vmax.xlane.f32.xlu0 %v1308
  %v1310 = vpop.xlane.xlu0 %1309
  %v1311 = vcvt.f32.s32 %v1310
  %v1312 = vcvt.f32.s32 %v1306
  %v1313 = vshll.u32 %v1312, 16
  %v1314 = vadd.s32 %v1313, %v1311
  %v1315 = vand.u32 %v1255, 65535
  %v1316 = vshra.s32 %v1255, 16
  %v1317 = vcvt.s32.f32 %v1315
  %v1318 = vcvt.s32.f32 %v1316
  %1319 = vmax.xlane.f32.xlu0 %v1318
  %v1320 = vpop.xlane.xlu0 %1319
  %vm1321 = vcmp.eq.f32.partialorder %v1318, %v1320
  %v1322 = vsel %vm1321, %v1317, -inf
  %1323 = vmax.xlane.f32.xlu0 %v1322
  %v1324 = vpop.xlane.xlu0 %1323
  %v1325 = vcvt.f32.s32 %v1324
  %v1326 = vcvt.f32.s32 %v1320
  %v1327 = vshll.u32 %v1326, 16
  %v1328 = vadd.s32 %v1327, %v1325
  %v1329 = vand.u32 %v1256, 65535
  %v1330 = vshra.s32 %v1256, 16
  %v1331 = vcvt.s32.f32 %v1329
  %v1332 = vcvt.s32.f32 %v1330
  %1333 = vmax.xlane.f32.xlu0 %v1332
  %v1334 = vpop.xlane.xlu0 %1333
  %vm1335 = vcmp.eq.f32.partialorder %v1332, %v1334
  %v1336 = vsel %vm1335, %v1331, -inf
  %1337 = vmax.xlane.f32.xlu0 %v1336
  %v1338 = vpop.xlane.xlu0 %1337
  %v1339 = vcvt.f32.s32 %v1338
  %v1340 = vcvt.f32.s32 %v1334
  %v1341 = vshll.u32 %v1340, 16
  %v1342 = vadd.s32 %v1341, %v1339
  %v1343 = vand.u32 %v1257, 65535
  %v1344 = vshra.s32 %v1257, 16
  %v1345 = vcvt.s32.f32 %v1343
  %v1346 = vcvt.s32.f32 %v1344
  %1347 = vmax.xlane.f32.xlu0 %v1346
  %v1348 = vpop.xlane.xlu0 %1347
  %vm1349 = vcmp.eq.f32.partialorder %v1346, %v1348
  %v1350 = vsel %vm1349, %v1345, -inf
  %1351 = vmax.xlane.f32.xlu0 %v1350
  %v1352 = vpop.xlane.xlu0 %1351
  %v1353 = vcvt.f32.s32 %v1352
  %v1354 = vcvt.f32.s32 %v1348
  %v1355 = vshll.u32 %v1354, 16
  %v1356 = vadd.s32 %v1355, %v1353
  %v1357 = vand.u32 %v1258, 65535
  %v1358 = vshra.s32 %v1258, 16
  %v1359 = vcvt.s32.f32 %v1357
  %v1360 = vcvt.s32.f32 %v1358
  %1361 = vmax.xlane.f32.xlu0 %v1360
  %v1362 = vpop.xlane.xlu0 %1361
  %vm1363 = vcmp.eq.f32.partialorder %v1360, %v1362
  %v1364 = vsel %vm1363, %v1359, -inf
  %1365 = vmax.xlane.f32.xlu0 %v1364
  %v1366 = vpop.xlane.xlu0 %1365
  %v1367 = vcvt.f32.s32 %v1366
  %v1368 = vcvt.f32.s32 %v1362
  %v1369 = vshll.u32 %v1368, 16
  %v1370 = vadd.s32 %v1369, %v1367
  %vm1371 = vcmp.gt.s32.totalorder %v1272, %v1328
  %v1372 = vsel %vm1371, %v1272, %v1328
  %vm1373 = vcmp.gt.s32.totalorder %v1286, %v1342
  %v1374 = vsel %vm1373, %v1286, %v1342
  %vm1375 = vcmp.gt.s32.totalorder %v1300, %v1356
  %v1376 = vsel %vm1375, %v1300, %v1356
  %vm1377 = vcmp.gt.s32.totalorder %v1314, %v1370
  %v1378 = vsel %vm1377, %v1314, %v1370
  %vm1379 = vcmp.gt.s32.totalorder %v1372, %v1374
  %v1380 = vsel %vm1379, %v1372, %v1374
  %vm1381 = vcmp.gt.s32.totalorder %v1376, %v1378
  %v1382 = vsel %vm1381, %v1376, %v1378
  %vm1383 = vcmp.gt.s32.totalorder %v1380, %v1382
  %v1384 = vsel %vm1383, %v1380, %v1382
  %v1385 = vrot.slane %v1384, 4
  %vm1386 = vcmp.gt.s32.totalorder %v1384, %v1385
  %v1387 = vsel %vm1386, %v1384, %v1385
  %v1388 = vrot.slane %v1387, 2
  %vm1389 = vcmp.gt.s32.totalorder %v1387, %v1388
  %v1390 = vsel %vm1389, %v1387, %v1388
  %v1391 = vrot.slane %v1390, 1
  %vm1392 = vcmp.gt.s32.totalorder %v1390, %v1391
  %v1393 = vsel %vm1392, %v1390, %v1391
  %v1394 = vand.u32 %v1393, 8191
  %v1395 = vsub.s32 8191, %v1394
  %vm1396 = vcmp.eq.s32.totalorder %v30, 7
  %v1397 = vsel %vm1396, %v1395, %v1242
  %vm1398 = vcmp.eq.s32.totalorder %v30, %v1395
  %vm1399 = vcmp.eq.s32.totalorder %v31, %v1395
  %vm1400 = vcmp.eq.s32.totalorder %v32, %v1395
  %vm1401 = vcmp.eq.s32.totalorder %v33, %v1395
  %vm1402 = vcmp.eq.s32.totalorder %v34, %v1395
  %vm1403 = vcmp.eq.s32.totalorder %v35, %v1395
  %vm1404 = vcmp.eq.s32.totalorder %v36, %v1395
  %vm1405 = vcmp.eq.s32.totalorder %v37, %v1395
  %v1406 = vsel %vm1398, 2147483648, %v1251
  %v1407 = vsel %vm1399, 2147483648, %v1252
  %v1408 = vsel %vm1400, 2147483648, %v1253
  %v1409 = vsel %vm1401, 2147483648, %v1254
  %v1410 = vsel %vm1402, 2147483648, %v1255
  %v1411 = vsel %vm1403, 2147483648, %v1256
  %v1412 = vsel %vm1404, 2147483648, %v1257
  %v1413 = vsel %vm1405, 2147483648, %v1258
  %v1414 = vand.u32 %v1406, 65535
  %v1415 = vshra.s32 %v1406, 16
  %v1416 = vcvt.s32.f32 %v1414
  %v1417 = vcvt.s32.f32 %v1415
  %1418 = vmax.xlane.f32.xlu0 %v1417
  %v1419 = vpop.xlane.xlu0 %1418
  %vm1420 = vcmp.eq.f32.partialorder %v1417, %v1419
  %v1421 = vsel %vm1420, %v1416, -inf
  %1422 = vmax.xlane.f32.xlu0 %v1421
  %v1423 = vpop.xlane.xlu0 %1422
  %v1424 = vcvt.f32.s32 %v1423
  %v1425 = vcvt.f32.s32 %v1419
  %v1426 = vshll.u32 %v1425, 16
  %v1427 = vadd.s32 %v1426, %v1424
  %v1428 = vand.u32 %v1407, 65535
  %v1429 = vshra.s32 %v1407, 16
  %v1430 = vcvt.s32.f32 %v1428
  %v1431 = vcvt.s32.f32 %v1429
  %1432 = vmax.xlane.f32.xlu0 %v1431
  %v1433 = vpop.xlane.xlu0 %1432
  %vm1434 = vcmp.eq.f32.partialorder %v1431, %v1433
  %v1435 = vsel %vm1434, %v1430, -inf
  %1436 = vmax.xlane.f32.xlu0 %v1435
  %v1437 = vpop.xlane.xlu0 %1436
  %v1438 = vcvt.f32.s32 %v1437
  %v1439 = vcvt.f32.s32 %v1433
  %v1440 = vshll.u32 %v1439, 16
  %v1441 = vadd.s32 %v1440, %v1438
  %v1442 = vand.u32 %v1408, 65535
  %v1443 = vshra.s32 %v1408, 16
  %v1444 = vcvt.s32.f32 %v1442
  %v1445 = vcvt.s32.f32 %v1443
  %1446 = vmax.xlane.f32.xlu0 %v1445
  %v1447 = vpop.xlane.xlu0 %1446
  %vm1448 = vcmp.eq.f32.partialorder %v1445, %v1447
  %v1449 = vsel %vm1448, %v1444, -inf
  %1450 = vmax.xlane.f32.xlu0 %v1449
  %v1451 = vpop.xlane.xlu0 %1450
  %v1452 = vcvt.f32.s32 %v1451
  %v1453 = vcvt.f32.s32 %v1447
  %v1454 = vshll.u32 %v1453, 16
  %v1455 = vadd.s32 %v1454, %v1452
  %v1456 = vand.u32 %v1409, 65535
  %v1457 = vshra.s32 %v1409, 16
  %v1458 = vcvt.s32.f32 %v1456
  %v1459 = vcvt.s32.f32 %v1457
  %1460 = vmax.xlane.f32.xlu0 %v1459
  %v1461 = vpop.xlane.xlu0 %1460
  %vm1462 = vcmp.eq.f32.partialorder %v1459, %v1461
  %v1463 = vsel %vm1462, %v1458, -inf
  %1464 = vmax.xlane.f32.xlu0 %v1463
  %v1465 = vpop.xlane.xlu0 %1464
  %v1466 = vcvt.f32.s32 %v1465
  %v1467 = vcvt.f32.s32 %v1461
  %v1468 = vshll.u32 %v1467, 16
  %v1469 = vadd.s32 %v1468, %v1466
  %v1470 = vand.u32 %v1410, 65535
  %v1471 = vshra.s32 %v1410, 16
  %v1472 = vcvt.s32.f32 %v1470
  %v1473 = vcvt.s32.f32 %v1471
  %1474 = vmax.xlane.f32.xlu0 %v1473
  %v1475 = vpop.xlane.xlu0 %1474
  %vm1476 = vcmp.eq.f32.partialorder %v1473, %v1475
  %v1477 = vsel %vm1476, %v1472, -inf
  %1478 = vmax.xlane.f32.xlu0 %v1477
  %v1479 = vpop.xlane.xlu0 %1478
  %v1480 = vcvt.f32.s32 %v1479
  %v1481 = vcvt.f32.s32 %v1475
  %v1482 = vshll.u32 %v1481, 16
  %v1483 = vadd.s32 %v1482, %v1480
  %v1484 = vand.u32 %v1411, 65535
  %v1485 = vshra.s32 %v1411, 16
  %v1486 = vcvt.s32.f32 %v1484
  %v1487 = vcvt.s32.f32 %v1485
  %1488 = vmax.xlane.f32.xlu0 %v1487
  %v1489 = vpop.xlane.xlu0 %1488
  %vm1490 = vcmp.eq.f32.partialorder %v1487, %v1489
  %v1491 = vsel %vm1490, %v1486, -inf
  %1492 = vmax.xlane.f32.xlu0 %v1491
  %v1493 = vpop.xlane.xlu0 %1492
  %v1494 = vcvt.f32.s32 %v1493
  %v1495 = vcvt.f32.s32 %v1489
  %v1496 = vshll.u32 %v1495, 16
  %v1497 = vadd.s32 %v1496, %v1494
  %v1498 = vand.u32 %v1412, 65535
  %v1499 = vshra.s32 %v1412, 16
  %v1500 = vcvt.s32.f32 %v1498
  %v1501 = vcvt.s32.f32 %v1499
  %1502 = vmax.xlane.f32.xlu0 %v1501
  %v1503 = vpop.xlane.xlu0 %1502
  %vm1504 = vcmp.eq.f32.partialorder %v1501, %v1503
  %v1505 = vsel %vm1504, %v1500, -inf
  %1506 = vmax.xlane.f32.xlu0 %v1505
  %v1507 = vpop.xlane.xlu0 %1506
  %v1508 = vcvt.f32.s32 %v1507
  %v1509 = vcvt.f32.s32 %v1503
  %v1510 = vshll.u32 %v1509, 16
  %v1511 = vadd.s32 %v1510, %v1508
  %v1512 = vand.u32 %v1413, 65535
  %v1513 = vshra.s32 %v1413, 16
  %v1514 = vcvt.s32.f32 %v1512
  %v1515 = vcvt.s32.f32 %v1513
  %1516 = vmax.xlane.f32.xlu0 %v1515
  %v1517 = vpop.xlane.xlu0 %1516
  %vm1518 = vcmp.eq.f32.partialorder %v1515, %v1517
  %v1519 = vsel %vm1518, %v1514, -inf
  %1520 = vmax.xlane.f32.xlu0 %v1519
  %v1521 = vpop.xlane.xlu0 %1520
  %v1522 = vcvt.f32.s32 %v1521
  %v1523 = vcvt.f32.s32 %v1517
  %v1524 = vshll.u32 %v1523, 16
  %v1525 = vadd.s32 %v1524, %v1522
  %vm1526 = vcmp.gt.s32.totalorder %v1427, %v1483
  %v1527 = vsel %vm1526, %v1427, %v1483
  %vm1528 = vcmp.gt.s32.totalorder %v1441, %v1497
  %v1529 = vsel %vm1528, %v1441, %v1497
  %vm1530 = vcmp.gt.s32.totalorder %v1455, %v1511
  %v1531 = vsel %vm1530, %v1455, %v1511
  %vm1532 = vcmp.gt.s32.totalorder %v1469, %v1525
  %v1533 = vsel %vm1532, %v1469, %v1525
  %vm1534 = vcmp.gt.s32.totalorder %v1527, %v1529
  %v1535 = vsel %vm1534, %v1527, %v1529
  %vm1536 = vcmp.gt.s32.totalorder %v1531, %v1533
  %v1537 = vsel %vm1536, %v1531, %v1533
  %vm1538 = vcmp.gt.s32.totalorder %v1535, %v1537
  %v1539 = vsel %vm1538, %v1535, %v1537
  %v1540 = vrot.slane %v1539, 4
  %vm1541 = vcmp.gt.s32.totalorder %v1539, %v1540
  %v1542 = vsel %vm1541, %v1539, %v1540
  %v1543 = vrot.slane %v1542, 2
  %vm1544 = vcmp.gt.s32.totalorder %v1542, %v1543
  %v1545 = vsel %vm1544, %v1542, %v1543
  %v1546 = vrot.slane %v1545, 1
  %vm1547 = vcmp.gt.s32.totalorder %v1545, %v1546
  %v1548 = vsel %vm1547, %v1545, %v1546
  %v1549 = vand.u32 %v1548, 8191
  %v1550 = vsub.s32 8191, %v1549
  %vm1551 = vcmp.eq.s32.totalorder %v30, 8
  %v1552 = vsel %vm1551, %v1550, %v1397
  %vm1553 = vcmp.eq.s32.totalorder %v30, %v1550
  %vm1554 = vcmp.eq.s32.totalorder %v31, %v1550
  %vm1555 = vcmp.eq.s32.totalorder %v32, %v1550
  %vm1556 = vcmp.eq.s32.totalorder %v33, %v1550
  %vm1557 = vcmp.eq.s32.totalorder %v34, %v1550
  %vm1558 = vcmp.eq.s32.totalorder %v35, %v1550
  %vm1559 = vcmp.eq.s32.totalorder %v36, %v1550
  %vm1560 = vcmp.eq.s32.totalorder %v37, %v1550
  %v1561 = vsel %vm1553, 2147483648, %v1406
  %v1562 = vsel %vm1554, 2147483648, %v1407
  %v1563 = vsel %vm1555, 2147483648, %v1408
  %v1564 = vsel %vm1556, 2147483648, %v1409
  %v1565 = vsel %vm1557, 2147483648, %v1410
  %v1566 = vsel %vm1558, 2147483648, %v1411
  %v1567 = vsel %vm1559, 2147483648, %v1412
  %v1568 = vsel %vm1560, 2147483648, %v1413
  %v1569 = vand.u32 %v1561, 65535
  %v1570 = vshra.s32 %v1561, 16
  %v1571 = vcvt.s32.f32 %v1569
  %v1572 = vcvt.s32.f32 %v1570
  %1573 = vmax.xlane.f32.xlu0 %v1572
  %v1574 = vpop.xlane.xlu0 %1573
  %vm1575 = vcmp.eq.f32.partialorder %v1572, %v1574
  %v1576 = vsel %vm1575, %v1571, -inf
  %1577 = vmax.xlane.f32.xlu0 %v1576
  %v1578 = vpop.xlane.xlu0 %1577
  %v1579 = vcvt.f32.s32 %v1578
  %v1580 = vcvt.f32.s32 %v1574
  %v1581 = vshll.u32 %v1580, 16
  %v1582 = vadd.s32 %v1581, %v1579
  %v1583 = vand.u32 %v1562, 65535
  %v1584 = vshra.s32 %v1562, 16
  %v1585 = vcvt.s32.f32 %v1583
  %v1586 = vcvt.s32.f32 %v1584
  %1587 = vmax.xlane.f32.xlu0 %v1586
  %v1588 = vpop.xlane.xlu0 %1587
  %vm1589 = vcmp.eq.f32.partialorder %v1586, %v1588
  %v1590 = vsel %vm1589, %v1585, -inf
  %1591 = vmax.xlane.f32.xlu0 %v1590
  %v1592 = vpop.xlane.xlu0 %1591
  %v1593 = vcvt.f32.s32 %v1592
  %v1594 = vcvt.f32.s32 %v1588
  %v1595 = vshll.u32 %v1594, 16
  %v1596 = vadd.s32 %v1595, %v1593
  %v1597 = vand.u32 %v1563, 65535
  %v1598 = vshra.s32 %v1563, 16
  %v1599 = vcvt.s32.f32 %v1597
  %v1600 = vcvt.s32.f32 %v1598
  %1601 = vmax.xlane.f32.xlu0 %v1600
  %v1602 = vpop.xlane.xlu0 %1601
  %vm1603 = vcmp.eq.f32.partialorder %v1600, %v1602
  %v1604 = vsel %vm1603, %v1599, -inf
  %1605 = vmax.xlane.f32.xlu0 %v1604
  %v1606 = vpop.xlane.xlu0 %1605
  %v1607 = vcvt.f32.s32 %v1606
  %v1608 = vcvt.f32.s32 %v1602
  %v1609 = vshll.u32 %v1608, 16
  %v1610 = vadd.s32 %v1609, %v1607
  %v1611 = vand.u32 %v1564, 65535
  %v1612 = vshra.s32 %v1564, 16
  %v1613 = vcvt.s32.f32 %v1611
  %v1614 = vcvt.s32.f32 %v1612
  %1615 = vmax.xlane.f32.xlu0 %v1614
  %v1616 = vpop.xlane.xlu0 %1615
  %vm1617 = vcmp.eq.f32.partialorder %v1614, %v1616
  %v1618 = vsel %vm1617, %v1613, -inf
  %1619 = vmax.xlane.f32.xlu0 %v1618
  %v1620 = vpop.xlane.xlu0 %1619
  %v1621 = vcvt.f32.s32 %v1620
  %v1622 = vcvt.f32.s32 %v1616
  %v1623 = vshll.u32 %v1622, 16
  %v1624 = vadd.s32 %v1623, %v1621
  %v1625 = vand.u32 %v1565, 65535
  %v1626 = vshra.s32 %v1565, 16
  %v1627 = vcvt.s32.f32 %v1625
  %v1628 = vcvt.s32.f32 %v1626
  %1629 = vmax.xlane.f32.xlu0 %v1628
  %v1630 = vpop.xlane.xlu0 %1629
  %vm1631 = vcmp.eq.f32.partialorder %v1628, %v1630
  %v1632 = vsel %vm1631, %v1627, -inf
  %1633 = vmax.xlane.f32.xlu0 %v1632
  %v1634 = vpop.xlane.xlu0 %1633
  %v1635 = vcvt.f32.s32 %v1634
  %v1636 = vcvt.f32.s32 %v1630
  %v1637 = vshll.u32 %v1636, 16
  %v1638 = vadd.s32 %v1637, %v1635
  %v1639 = vand.u32 %v1566, 65535
  %v1640 = vshra.s32 %v1566, 16
  %v1641 = vcvt.s32.f32 %v1639
  %v1642 = vcvt.s32.f32 %v1640
  %1643 = vmax.xlane.f32.xlu0 %v1642
  %v1644 = vpop.xlane.xlu0 %1643
  %vm1645 = vcmp.eq.f32.partialorder %v1642, %v1644
  %v1646 = vsel %vm1645, %v1641, -inf
  %1647 = vmax.xlane.f32.xlu0 %v1646
  %v1648 = vpop.xlane.xlu0 %1647
  %v1649 = vcvt.f32.s32 %v1648
  %v1650 = vcvt.f32.s32 %v1644
  %v1651 = vshll.u32 %v1650, 16
  %v1652 = vadd.s32 %v1651, %v1649
  %v1653 = vand.u32 %v1567, 65535
  %v1654 = vshra.s32 %v1567, 16
  %v1655 = vcvt.s32.f32 %v1653
  %v1656 = vcvt.s32.f32 %v1654
  %1657 = vmax.xlane.f32.xlu0 %v1656
  %v1658 = vpop.xlane.xlu0 %1657
  %vm1659 = vcmp.eq.f32.partialorder %v1656, %v1658
  %v1660 = vsel %vm1659, %v1655, -inf
  %1661 = vmax.xlane.f32.xlu0 %v1660
  %v1662 = vpop.xlane.xlu0 %1661
  %v1663 = vcvt.f32.s32 %v1662
  %v1664 = vcvt.f32.s32 %v1658
  %v1665 = vshll.u32 %v1664, 16
  %v1666 = vadd.s32 %v1665, %v1663
  %v1667 = vand.u32 %v1568, 65535
  %v1668 = vshra.s32 %v1568, 16
  %v1669 = vcvt.s32.f32 %v1667
  %v1670 = vcvt.s32.f32 %v1668
  %1671 = vmax.xlane.f32.xlu0 %v1670
  %v1672 = vpop.xlane.xlu0 %1671
  %vm1673 = vcmp.eq.f32.partialorder %v1670, %v1672
  %v1674 = vsel %vm1673, %v1669, -inf
  %1675 = vmax.xlane.f32.xlu0 %v1674
  %v1676 = vpop.xlane.xlu0 %1675
  %v1677 = vcvt.f32.s32 %v1676
  %v1678 = vcvt.f32.s32 %v1672
  %v1679 = vshll.u32 %v1678, 16
  %v1680 = vadd.s32 %v1679, %v1677
  %vm1681 = vcmp.gt.s32.totalorder %v1582, %v1638
  %v1682 = vsel %vm1681, %v1582, %v1638
  %vm1683 = vcmp.gt.s32.totalorder %v1596, %v1652
  %v1684 = vsel %vm1683, %v1596, %v1652
  %vm1685 = vcmp.gt.s32.totalorder %v1610, %v1666
  %v1686 = vsel %vm1685, %v1610, %v1666
  %vm1687 = vcmp.gt.s32.totalorder %v1624, %v1680
  %v1688 = vsel %vm1687, %v1624, %v1680
  %vm1689 = vcmp.gt.s32.totalorder %v1682, %v1684
  %v1690 = vsel %vm1689, %v1682, %v1684
  %vm1691 = vcmp.gt.s32.totalorder %v1686, %v1688
  %v1692 = vsel %vm1691, %v1686, %v1688
  %vm1693 = vcmp.gt.s32.totalorder %v1690, %v1692
  %v1694 = vsel %vm1693, %v1690, %v1692
  %v1695 = vrot.slane %v1694, 4
  %vm1696 = vcmp.gt.s32.totalorder %v1694, %v1695
  %v1697 = vsel %vm1696, %v1694, %v1695
  %v1698 = vrot.slane %v1697, 2
  %vm1699 = vcmp.gt.s32.totalorder %v1697, %v1698
  %v1700 = vsel %vm1699, %v1697, %v1698
  %v1701 = vrot.slane %v1700, 1
  %vm1702 = vcmp.gt.s32.totalorder %v1700, %v1701
  %v1703 = vsel %vm1702, %v1700, %v1701
  %v1704 = vand.u32 %v1703, 8191
  %v1705 = vsub.s32 8191, %v1704
  %vm1706 = vcmp.eq.s32.totalorder %v30, 9
  %v1707 = vsel %vm1706, %v1705, %v1552
  %vm1708 = vcmp.eq.s32.totalorder %v30, %v1705
  %vm1709 = vcmp.eq.s32.totalorder %v31, %v1705
  %vm1710 = vcmp.eq.s32.totalorder %v32, %v1705
  %vm1711 = vcmp.eq.s32.totalorder %v33, %v1705
  %vm1712 = vcmp.eq.s32.totalorder %v34, %v1705
  %vm1713 = vcmp.eq.s32.totalorder %v35, %v1705
  %vm1714 = vcmp.eq.s32.totalorder %v36, %v1705
  %vm1715 = vcmp.eq.s32.totalorder %v37, %v1705
  %v1716 = vsel %vm1708, 2147483648, %v1561
  %v1717 = vsel %vm1709, 2147483648, %v1562
  %v1718 = vsel %vm1710, 2147483648, %v1563
  %v1719 = vsel %vm1711, 2147483648, %v1564
  %v1720 = vsel %vm1712, 2147483648, %v1565
  %v1721 = vsel %vm1713, 2147483648, %v1566
  %v1722 = vsel %vm1714, 2147483648, %v1567
  %v1723 = vsel %vm1715, 2147483648, %v1568
  %v1724 = vand.u32 %v1716, 65535
  %v1725 = vshra.s32 %v1716, 16
  %v1726 = vcvt.s32.f32 %v1724
  %v1727 = vcvt.s32.f32 %v1725
  %1728 = vmax.xlane.f32.xlu0 %v1727
  %v1729 = vpop.xlane.xlu0 %1728
  %vm1730 = vcmp.eq.f32.partialorder %v1727, %v1729
  %v1731 = vsel %vm1730, %v1726, -inf
  %1732 = vmax.xlane.f32.xlu0 %v1731
  %v1733 = vpop.xlane.xlu0 %1732
  %v1734 = vcvt.f32.s32 %v1733
  %v1735 = vcvt.f32.s32 %v1729
  %v1736 = vshll.u32 %v1735, 16
  %v1737 = vadd.s32 %v1736, %v1734
  %v1738 = vand.u32 %v1717, 65535
  %v1739 = vshra.s32 %v1717, 16
  %v1740 = vcvt.s32.f32 %v1738
  %v1741 = vcvt.s32.f32 %v1739
  %1742 = vmax.xlane.f32.xlu0 %v1741
  %v1743 = vpop.xlane.xlu0 %1742
  %vm1744 = vcmp.eq.f32.partialorder %v1741, %v1743
  %v1745 = vsel %vm1744, %v1740, -inf
  %1746 = vmax.xlane.f32.xlu0 %v1745
  %v1747 = vpop.xlane.xlu0 %1746
  %v1748 = vcvt.f32.s32 %v1747
  %v1749 = vcvt.f32.s32 %v1743
  %v1750 = vshll.u32 %v1749, 16
  %v1751 = vadd.s32 %v1750, %v1748
  %v1752 = vand.u32 %v1718, 65535
  %v1753 = vshra.s32 %v1718, 16
  %v1754 = vcvt.s32.f32 %v1752
  %v1755 = vcvt.s32.f32 %v1753
  %1756 = vmax.xlane.f32.xlu0 %v1755
  %v1757 = vpop.xlane.xlu0 %1756
  %vm1758 = vcmp.eq.f32.partialorder %v1755, %v1757
  %v1759 = vsel %vm1758, %v1754, -inf
  %1760 = vmax.xlane.f32.xlu0 %v1759
  %v1761 = vpop.xlane.xlu0 %1760
  %v1762 = vcvt.f32.s32 %v1761
  %v1763 = vcvt.f32.s32 %v1757
  %v1764 = vshll.u32 %v1763, 16
  %v1765 = vadd.s32 %v1764, %v1762
  %v1766 = vand.u32 %v1719, 65535
  %v1767 = vshra.s32 %v1719, 16
  %v1768 = vcvt.s32.f32 %v1766
  %v1769 = vcvt.s32.f32 %v1767
  %1770 = vmax.xlane.f32.xlu0 %v1769
  %v1771 = vpop.xlane.xlu0 %1770
  %vm1772 = vcmp.eq.f32.partialorder %v1769, %v1771
  %v1773 = vsel %vm1772, %v1768, -inf
  %1774 = vmax.xlane.f32.xlu0 %v1773
  %v1775 = vpop.xlane.xlu0 %1774
  %v1776 = vcvt.f32.s32 %v1775
  %v1777 = vcvt.f32.s32 %v1771
  %v1778 = vshll.u32 %v1777, 16
  %v1779 = vadd.s32 %v1778, %v1776
  %v1780 = vand.u32 %v1720, 65535
  %v1781 = vshra.s32 %v1720, 16
  %v1782 = vcvt.s32.f32 %v1780
  %v1783 = vcvt.s32.f32 %v1781
  %1784 = vmax.xlane.f32.xlu0 %v1783
  %v1785 = vpop.xlane.xlu0 %1784
  %vm1786 = vcmp.eq.f32.partialorder %v1783, %v1785
  %v1787 = vsel %vm1786, %v1782, -inf
  %1788 = vmax.xlane.f32.xlu0 %v1787
  %v1789 = vpop.xlane.xlu0 %1788
  %v1790 = vcvt.f32.s32 %v1789
  %v1791 = vcvt.f32.s32 %v1785
  %v1792 = vshll.u32 %v1791, 16
  %v1793 = vadd.s32 %v1792, %v1790
  %v1794 = vand.u32 %v1721, 65535
  %v1795 = vshra.s32 %v1721, 16
  %v1796 = vcvt.s32.f32 %v1794
  %v1797 = vcvt.s32.f32 %v1795
  %1798 = vmax.xlane.f32.xlu0 %v1797
  %v1799 = vpop.xlane.xlu0 %1798
  %vm1800 = vcmp.eq.f32.partialorder %v1797, %v1799
  %v1801 = vsel %vm1800, %v1796, -inf
  %1802 = vmax.xlane.f32.xlu0 %v1801
  %v1803 = vpop.xlane.xlu0 %1802
  %v1804 = vcvt.f32.s32 %v1803
  %v1805 = vcvt.f32.s32 %v1799
  %v1806 = vshll.u32 %v1805, 16
  %v1807 = vadd.s32 %v1806, %v1804
  %v1808 = vand.u32 %v1722, 65535
  %v1809 = vshra.s32 %v1722, 16
  %v1810 = vcvt.s32.f32 %v1808
  %v1811 = vcvt.s32.f32 %v1809
  %1812 = vmax.xlane.f32.xlu0 %v1811
  %v1813 = vpop.xlane.xlu0 %1812
  %vm1814 = vcmp.eq.f32.partialorder %v1811, %v1813
  %v1815 = vsel %vm1814, %v1810, -inf
  %1816 = vmax.xlane.f32.xlu0 %v1815
  %v1817 = vpop.xlane.xlu0 %1816
  %v1818 = vcvt.f32.s32 %v1817
  %v1819 = vcvt.f32.s32 %v1813
  %v1820 = vshll.u32 %v1819, 16
  %v1821 = vadd.s32 %v1820, %v1818
  %v1822 = vand.u32 %v1723, 65535
  %v1823 = vshra.s32 %v1723, 16
  %v1824 = vcvt.s32.f32 %v1822
  %v1825 = vcvt.s32.f32 %v1823
  %1826 = vmax.xlane.f32.xlu0 %v1825
  %v1827 = vpop.xlane.xlu0 %1826
  %vm1828 = vcmp.eq.f32.partialorder %v1825, %v1827
  %v1829 = vsel %vm1828, %v1824, -inf
  %1830 = vmax.xlane.f32.xlu0 %v1829
  %v1831 = vpop.xlane.xlu0 %1830
  %v1832 = vcvt.f32.s32 %v1831
  %v1833 = vcvt.f32.s32 %v1827
  %v1834 = vshll.u32 %v1833, 16
  %v1835 = vadd.s32 %v1834, %v1832
  %vm1836 = vcmp.gt.s32.totalorder %v1737, %v1793
  %v1837 = vsel %vm1836, %v1737, %v1793
  %vm1838 = vcmp.gt.s32.totalorder %v1751, %v1807
  %v1839 = vsel %vm1838, %v1751, %v1807
  %vm1840 = vcmp.gt.s32.totalorder %v1765, %v1821
  %v1841 = vsel %vm1840, %v1765, %v1821
  %vm1842 = vcmp.gt.s32.totalorder %v1779, %v1835
  %v1843 = vsel %vm1842, %v1779, %v1835
  %vm1844 = vcmp.gt.s32.totalorder %v1837, %v1839
  %v1845 = vsel %vm1844, %v1837, %v1839
  %vm1846 = vcmp.gt.s32.totalorder %v1841, %v1843
  %v1847 = vsel %vm1846, %v1841, %v1843
  %vm1848 = vcmp.gt.s32.totalorder %v1845, %v1847
  %v1849 = vsel %vm1848, %v1845, %v1847
  %v1850 = vrot.slane %v1849, 4
  %vm1851 = vcmp.gt.s32.totalorder %v1849, %v1850
  %v1852 = vsel %vm1851, %v1849, %v1850
  %v1853 = vrot.slane %v1852, 2
  %vm1854 = vcmp.gt.s32.totalorder %v1852, %v1853
  %v1855 = vsel %vm1854, %v1852, %v1853
  %v1856 = vrot.slane %v1855, 1
  %vm1857 = vcmp.gt.s32.totalorder %v1855, %v1856
  %v1858 = vsel %vm1857, %v1855, %v1856
  %v1859 = vand.u32 %v1858, 8191
  %v1860 = vsub.s32 8191, %v1859
  %vm1861 = vcmp.eq.s32.totalorder %v30, 10
  %v1862 = vsel %vm1861, %v1860, %v1707
  %vm1863 = vcmp.eq.s32.totalorder %v30, %v1860
  %vm1864 = vcmp.eq.s32.totalorder %v31, %v1860
  %vm1865 = vcmp.eq.s32.totalorder %v32, %v1860
  %vm1866 = vcmp.eq.s32.totalorder %v33, %v1860
  %vm1867 = vcmp.eq.s32.totalorder %v34, %v1860
  %vm1868 = vcmp.eq.s32.totalorder %v35, %v1860
  %vm1869 = vcmp.eq.s32.totalorder %v36, %v1860
  %vm1870 = vcmp.eq.s32.totalorder %v37, %v1860
  %v1871 = vsel %vm1863, 2147483648, %v1716
  %v1872 = vsel %vm1864, 2147483648, %v1717
  %v1873 = vsel %vm1865, 2147483648, %v1718
  %v1874 = vsel %vm1866, 2147483648, %v1719
  %v1875 = vsel %vm1867, 2147483648, %v1720
  %v1876 = vsel %vm1868, 2147483648, %v1721
  %v1877 = vsel %vm1869, 2147483648, %v1722
  %v1878 = vsel %vm1870, 2147483648, %v1723
  %v1879 = vand.u32 %v1871, 65535
  %v1880 = vshra.s32 %v1871, 16
  %v1881 = vcvt.s32.f32 %v1879
  %v1882 = vcvt.s32.f32 %v1880
  %1883 = vmax.xlane.f32.xlu0 %v1882
  %v1884 = vpop.xlane.xlu0 %1883
  %vm1885 = vcmp.eq.f32.partialorder %v1882, %v1884
  %v1886 = vsel %vm1885, %v1881, -inf
  %1887 = vmax.xlane.f32.xlu0 %v1886
  %v1888 = vpop.xlane.xlu0 %1887
  %v1889 = vcvt.f32.s32 %v1888
  %v1890 = vcvt.f32.s32 %v1884
  %v1891 = vshll.u32 %v1890, 16
  %v1892 = vadd.s32 %v1891, %v1889
  %v1893 = vand.u32 %v1872, 65535
  %v1894 = vshra.s32 %v1872, 16
  %v1895 = vcvt.s32.f32 %v1893
  %v1896 = vcvt.s32.f32 %v1894
  %1897 = vmax.xlane.f32.xlu0 %v1896
  %v1898 = vpop.xlane.xlu0 %1897
  %vm1899 = vcmp.eq.f32.partialorder %v1896, %v1898
  %v1900 = vsel %vm1899, %v1895, -inf
  %1901 = vmax.xlane.f32.xlu0 %v1900
  %v1902 = vpop.xlane.xlu0 %1901
  %v1903 = vcvt.f32.s32 %v1902
  %v1904 = vcvt.f32.s32 %v1898
  %v1905 = vshll.u32 %v1904, 16
  %v1906 = vadd.s32 %v1905, %v1903
  %v1907 = vand.u32 %v1873, 65535
  %v1908 = vshra.s32 %v1873, 16
  %v1909 = vcvt.s32.f32 %v1907
  %v1910 = vcvt.s32.f32 %v1908
  %1911 = vmax.xlane.f32.xlu0 %v1910
  %v1912 = vpop.xlane.xlu0 %1911
  %vm1913 = vcmp.eq.f32.partialorder %v1910, %v1912
  %v1914 = vsel %vm1913, %v1909, -inf
  %1915 = vmax.xlane.f32.xlu0 %v1914
  %v1916 = vpop.xlane.xlu0 %1915
  %v1917 = vcvt.f32.s32 %v1916
  %v1918 = vcvt.f32.s32 %v1912
  %v1919 = vshll.u32 %v1918, 16
  %v1920 = vadd.s32 %v1919, %v1917
  %v1921 = vand.u32 %v1874, 65535
  %v1922 = vshra.s32 %v1874, 16
  %v1923 = vcvt.s32.f32 %v1921
  %v1924 = vcvt.s32.f32 %v1922
  %1925 = vmax.xlane.f32.xlu0 %v1924
  %v1926 = vpop.xlane.xlu0 %1925
  %vm1927 = vcmp.eq.f32.partialorder %v1924, %v1926
  %v1928 = vsel %vm1927, %v1923, -inf
  %1929 = vmax.xlane.f32.xlu0 %v1928
  %v1930 = vpop.xlane.xlu0 %1929
  %v1931 = vcvt.f32.s32 %v1930
  %v1932 = vcvt.f32.s32 %v1926
  %v1933 = vshll.u32 %v1932, 16
  %v1934 = vadd.s32 %v1933, %v1931
  %v1935 = vand.u32 %v1875, 65535
  %v1936 = vshra.s32 %v1875, 16
  %v1937 = vcvt.s32.f32 %v1935
  %v1938 = vcvt.s32.f32 %v1936
  %1939 = vmax.xlane.f32.xlu0 %v1938
  %v1940 = vpop.xlane.xlu0 %1939
  %vm1941 = vcmp.eq.f32.partialorder %v1938, %v1940
  %v1942 = vsel %vm1941, %v1937, -inf
  %1943 = vmax.xlane.f32.xlu0 %v1942
  %v1944 = vpop.xlane.xlu0 %1943
  %v1945 = vcvt.f32.s32 %v1944
  %v1946 = vcvt.f32.s32 %v1940
  %v1947 = vshll.u32 %v1946, 16
  %v1948 = vadd.s32 %v1947, %v1945
  %v1949 = vand.u32 %v1876, 65535
  %v1950 = vshra.s32 %v1876, 16
  %v1951 = vcvt.s32.f32 %v1949
  %v1952 = vcvt.s32.f32 %v1950
  %1953 = vmax.xlane.f32.xlu0 %v1952
  %v1954 = vpop.xlane.xlu0 %1953
  %vm1955 = vcmp.eq.f32.partialorder %v1952, %v1954
  %v1956 = vsel %vm1955, %v1951, -inf
  %1957 = vmax.xlane.f32.xlu0 %v1956
  %v1958 = vpop.xlane.xlu0 %1957
  %v1959 = vcvt.f32.s32 %v1958
  %v1960 = vcvt.f32.s32 %v1954
  %v1961 = vshll.u32 %v1960, 16
  %v1962 = vadd.s32 %v1961, %v1959
  %v1963 = vand.u32 %v1877, 65535
  %v1964 = vshra.s32 %v1877, 16
  %v1965 = vcvt.s32.f32 %v1963
  %v1966 = vcvt.s32.f32 %v1964
  %1967 = vmax.xlane.f32.xlu0 %v1966
  %v1968 = vpop.xlane.xlu0 %1967
  %vm1969 = vcmp.eq.f32.partialorder %v1966, %v1968
  %v1970 = vsel %vm1969, %v1965, -inf
  %1971 = vmax.xlane.f32.xlu0 %v1970
  %v1972 = vpop.xlane.xlu0 %1971
  %v1973 = vcvt.f32.s32 %v1972
  %v1974 = vcvt.f32.s32 %v1968
  %v1975 = vshll.u32 %v1974, 16
  %v1976 = vadd.s32 %v1975, %v1973
  %v1977 = vand.u32 %v1878, 65535
  %v1978 = vshra.s32 %v1878, 16
  %v1979 = vcvt.s32.f32 %v1977
  %v1980 = vcvt.s32.f32 %v1978
  %1981 = vmax.xlane.f32.xlu0 %v1980
  %v1982 = vpop.xlane.xlu0 %1981
  %vm1983 = vcmp.eq.f32.partialorder %v1980, %v1982
  %v1984 = vsel %vm1983, %v1979, -inf
  %1985 = vmax.xlane.f32.xlu0 %v1984
  %v1986 = vpop.xlane.xlu0 %1985
  %v1987 = vcvt.f32.s32 %v1986
  %v1988 = vcvt.f32.s32 %v1982
  %v1989 = vshll.u32 %v1988, 16
  %v1990 = vadd.s32 %v1989, %v1987
  %vm1991 = vcmp.gt.s32.totalorder %v1892, %v1948
  %v1992 = vsel %vm1991, %v1892, %v1948
  %vm1993 = vcmp.gt.s32.totalorder %v1906, %v1962
  %v1994 = vsel %vm1993, %v1906, %v1962
  %vm1995 = vcmp.gt.s32.totalorder %v1920, %v1976
  %v1996 = vsel %vm1995, %v1920, %v1976
  %vm1997 = vcmp.gt.s32.totalorder %v1934, %v1990
  %v1998 = vsel %vm1997, %v1934, %v1990
  %vm1999 = vcmp.gt.s32.totalorder %v1992, %v1994
  %v2000 = vsel %vm1999, %v1992, %v1994
  %vm2001 = vcmp.gt.s32.totalorder %v1996, %v1998
  %v2002 = vsel %vm2001, %v1996, %v1998
  %vm2003 = vcmp.gt.s32.totalorder %v2000, %v2002
  %v2004 = vsel %vm2003, %v2000, %v2002
  %v2005 = vrot.slane %v2004, 4
  %vm2006 = vcmp.gt.s32.totalorder %v2004, %v2005
  %v2007 = vsel %vm2006, %v2004, %v2005
  %v2008 = vrot.slane %v2007, 2
  %vm2009 = vcmp.gt.s32.totalorder %v2007, %v2008
  %v2010 = vsel %vm2009, %v2007, %v2008
  %v2011 = vrot.slane %v2010, 1
  %vm2012 = vcmp.gt.s32.totalorder %v2010, %v2011
  %v2013 = vsel %vm2012, %v2010, %v2011
  %v2014 = vand.u32 %v2013, 8191
  %v2015 = vsub.s32 8191, %v2014
  %vm2016 = vcmp.eq.s32.totalorder %v30, 11
  %v2017 = vsel %vm2016, %v2015, %v1862
  %vm2018 = vcmp.eq.s32.totalorder %v30, %v2015
  %vm2019 = vcmp.eq.s32.totalorder %v31, %v2015
  %vm2020 = vcmp.eq.s32.totalorder %v32, %v2015
  %vm2021 = vcmp.eq.s32.totalorder %v33, %v2015
  %vm2022 = vcmp.eq.s32.totalorder %v34, %v2015
  %vm2023 = vcmp.eq.s32.totalorder %v35, %v2015
  %vm2024 = vcmp.eq.s32.totalorder %v36, %v2015
  %vm2025 = vcmp.eq.s32.totalorder %v37, %v2015
  %v2026 = vsel %vm2018, 2147483648, %v1871
  %v2027 = vsel %vm2019, 2147483648, %v1872
  %v2028 = vsel %vm2020, 2147483648, %v1873
  %v2029 = vsel %vm2021, 2147483648, %v1874
  %v2030 = vsel %vm2022, 2147483648, %v1875
  %v2031 = vsel %vm2023, 2147483648, %v1876
  %v2032 = vsel %vm2024, 2147483648, %v1877
  %v2033 = vsel %vm2025, 2147483648, %v1878
  %v2034 = vand.u32 %v2026, 65535
  %v2035 = vshra.s32 %v2026, 16
  %v2036 = vcvt.s32.f32 %v2034
  %v2037 = vcvt.s32.f32 %v2035
  %2038 = vmax.xlane.f32.xlu0 %v2037
  %v2039 = vpop.xlane.xlu0 %2038
  %vm2040 = vcmp.eq.f32.partialorder %v2037, %v2039
  %v2041 = vsel %vm2040, %v2036, -inf
  %2042 = vmax.xlane.f32.xlu0 %v2041
  %v2043 = vpop.xlane.xlu0 %2042
  %v2044 = vcvt.f32.s32 %v2043
  %v2045 = vcvt.f32.s32 %v2039
  %v2046 = vshll.u32 %v2045, 16
  %v2047 = vadd.s32 %v2046, %v2044
  %v2048 = vand.u32 %v2027, 65535
  %v2049 = vshra.s32 %v2027, 16
  %v2050 = vcvt.s32.f32 %v2048
  %v2051 = vcvt.s32.f32 %v2049
  %2052 = vmax.xlane.f32.xlu0 %v2051
  %v2053 = vpop.xlane.xlu0 %2052
  %vm2054 = vcmp.eq.f32.partialorder %v2051, %v2053
  %v2055 = vsel %vm2054, %v2050, -inf
  %2056 = vmax.xlane.f32.xlu0 %v2055
  %v2057 = vpop.xlane.xlu0 %2056
  %v2058 = vcvt.f32.s32 %v2057
  %v2059 = vcvt.f32.s32 %v2053
  %v2060 = vshll.u32 %v2059, 16
  %v2061 = vadd.s32 %v2060, %v2058
  %v2062 = vand.u32 %v2028, 65535
  %v2063 = vshra.s32 %v2028, 16
  %v2064 = vcvt.s32.f32 %v2062
  %v2065 = vcvt.s32.f32 %v2063
  %2066 = vmax.xlane.f32.xlu0 %v2065
  %v2067 = vpop.xlane.xlu0 %2066
  %vm2068 = vcmp.eq.f32.partialorder %v2065, %v2067
  %v2069 = vsel %vm2068, %v2064, -inf
  %2070 = vmax.xlane.f32.xlu0 %v2069
  %v2071 = vpop.xlane.xlu0 %2070
  %v2072 = vcvt.f32.s32 %v2071
  %v2073 = vcvt.f32.s32 %v2067
  %v2074 = vshll.u32 %v2073, 16
  %v2075 = vadd.s32 %v2074, %v2072
  %v2076 = vand.u32 %v2029, 65535
  %v2077 = vshra.s32 %v2029, 16
  %v2078 = vcvt.s32.f32 %v2076
  %v2079 = vcvt.s32.f32 %v2077
  %2080 = vmax.xlane.f32.xlu0 %v2079
  %v2081 = vpop.xlane.xlu0 %2080
  %vm2082 = vcmp.eq.f32.partialorder %v2079, %v2081
  %v2083 = vsel %vm2082, %v2078, -inf
  %2084 = vmax.xlane.f32.xlu0 %v2083
  %v2085 = vpop.xlane.xlu0 %2084
  %v2086 = vcvt.f32.s32 %v2085
  %v2087 = vcvt.f32.s32 %v2081
  %v2088 = vshll.u32 %v2087, 16
  %v2089 = vadd.s32 %v2088, %v2086
  %v2090 = vand.u32 %v2030, 65535
  %v2091 = vshra.s32 %v2030, 16
  %v2092 = vcvt.s32.f32 %v2090
  %v2093 = vcvt.s32.f32 %v2091
  %2094 = vmax.xlane.f32.xlu0 %v2093
  %v2095 = vpop.xlane.xlu0 %2094
  %vm2096 = vcmp.eq.f32.partialorder %v2093, %v2095
  %v2097 = vsel %vm2096, %v2092, -inf
  %2098 = vmax.xlane.f32.xlu0 %v2097
  %v2099 = vpop.xlane.xlu0 %2098
  %v2100 = vcvt.f32.s32 %v2099
  %v2101 = vcvt.f32.s32 %v2095
  %v2102 = vshll.u32 %v2101, 16
  %v2103 = vadd.s32 %v2102, %v2100
  %v2104 = vand.u32 %v2031, 65535
  %v2105 = vshra.s32 %v2031, 16
  %v2106 = vcvt.s32.f32 %v2104
  %v2107 = vcvt.s32.f32 %v2105
  %2108 = vmax.xlane.f32.xlu0 %v2107
  %v2109 = vpop.xlane.xlu0 %2108
  %vm2110 = vcmp.eq.f32.partialorder %v2107, %v2109
  %v2111 = vsel %vm2110, %v2106, -inf
  %2112 = vmax.xlane.f32.xlu0 %v2111
  %v2113 = vpop.xlane.xlu0 %2112
  %v2114 = vcvt.f32.s32 %v2113
  %v2115 = vcvt.f32.s32 %v2109
  %v2116 = vshll.u32 %v2115, 16
  %v2117 = vadd.s32 %v2116, %v2114
  %v2118 = vand.u32 %v2032, 65535
  %v2119 = vshra.s32 %v2032, 16
  %v2120 = vcvt.s32.f32 %v2118
  %v2121 = vcvt.s32.f32 %v2119
  %2122 = vmax.xlane.f32.xlu0 %v2121
  %v2123 = vpop.xlane.xlu0 %2122
  %vm2124 = vcmp.eq.f32.partialorder %v2121, %v2123
  %v2125 = vsel %vm2124, %v2120, -inf
  %2126 = vmax.xlane.f32.xlu0 %v2125
  %v2127 = vpop.xlane.xlu0 %2126
  %v2128 = vcvt.f32.s32 %v2127
  %v2129 = vcvt.f32.s32 %v2123
  %v2130 = vshll.u32 %v2129, 16
  %v2131 = vadd.s32 %v2130, %v2128
  %v2132 = vand.u32 %v2033, 65535
  %v2133 = vshra.s32 %v2033, 16
  %v2134 = vcvt.s32.f32 %v2132
  %v2135 = vcvt.s32.f32 %v2133
  %2136 = vmax.xlane.f32.xlu0 %v2135
  %v2137 = vpop.xlane.xlu0 %2136
  %vm2138 = vcmp.eq.f32.partialorder %v2135, %v2137
  %v2139 = vsel %vm2138, %v2134, -inf
  %2140 = vmax.xlane.f32.xlu0 %v2139
  %v2141 = vpop.xlane.xlu0 %2140
  %v2142 = vcvt.f32.s32 %v2141
  %v2143 = vcvt.f32.s32 %v2137
  %v2144 = vshll.u32 %v2143, 16
  %v2145 = vadd.s32 %v2144, %v2142
  %vm2146 = vcmp.gt.s32.totalorder %v2047, %v2103
  %v2147 = vsel %vm2146, %v2047, %v2103
  %vm2148 = vcmp.gt.s32.totalorder %v2061, %v2117
  %v2149 = vsel %vm2148, %v2061, %v2117
  %vm2150 = vcmp.gt.s32.totalorder %v2075, %v2131
  %v2151 = vsel %vm2150, %v2075, %v2131
  %vm2152 = vcmp.gt.s32.totalorder %v2089, %v2145
  %v2153 = vsel %vm2152, %v2089, %v2145
  %vm2154 = vcmp.gt.s32.totalorder %v2147, %v2149
  %v2155 = vsel %vm2154, %v2147, %v2149
  %vm2156 = vcmp.gt.s32.totalorder %v2151, %v2153
  %v2157 = vsel %vm2156, %v2151, %v2153
  %vm2158 = vcmp.gt.s32.totalorder %v2155, %v2157
  %v2159 = vsel %vm2158, %v2155, %v2157
  %v2160 = vrot.slane %v2159, 4
  %vm2161 = vcmp.gt.s32.totalorder %v2159, %v2160
  %v2162 = vsel %vm2161, %v2159, %v2160
  %v2163 = vrot.slane %v2162, 2
  %vm2164 = vcmp.gt.s32.totalorder %v2162, %v2163
  %v2165 = vsel %vm2164, %v2162, %v2163
  %v2166 = vrot.slane %v2165, 1
  %vm2167 = vcmp.gt.s32.totalorder %v2165, %v2166
  %v2168 = vsel %vm2167, %v2165, %v2166
  %v2169 = vand.u32 %v2168, 8191
  %v2170 = vsub.s32 8191, %v2169
  %vm2171 = vcmp.eq.s32.totalorder %v30, 12
  %v2172 = vsel %vm2171, %v2170, %v2017
  %vm2173 = vcmp.eq.s32.totalorder %v30, %v2170
  %vm2174 = vcmp.eq.s32.totalorder %v31, %v2170
  %vm2175 = vcmp.eq.s32.totalorder %v32, %v2170
  %vm2176 = vcmp.eq.s32.totalorder %v33, %v2170
  %vm2177 = vcmp.eq.s32.totalorder %v34, %v2170
  %vm2178 = vcmp.eq.s32.totalorder %v35, %v2170
  %vm2179 = vcmp.eq.s32.totalorder %v36, %v2170
  %vm2180 = vcmp.eq.s32.totalorder %v37, %v2170
  %v2181 = vsel %vm2173, 2147483648, %v2026
  %v2182 = vsel %vm2174, 2147483648, %v2027
  %v2183 = vsel %vm2175, 2147483648, %v2028
  %v2184 = vsel %vm2176, 2147483648, %v2029
  %v2185 = vsel %vm2177, 2147483648, %v2030
  %v2186 = vsel %vm2178, 2147483648, %v2031
  %v2187 = vsel %vm2179, 2147483648, %v2032
  %v2188 = vsel %vm2180, 2147483648, %v2033
  %v2189 = vand.u32 %v2181, 65535
  %v2190 = vshra.s32 %v2181, 16
  %v2191 = vcvt.s32.f32 %v2189
  %v2192 = vcvt.s32.f32 %v2190
  %2193 = vmax.xlane.f32.xlu0 %v2192
  %v2194 = vpop.xlane.xlu0 %2193
  %vm2195 = vcmp.eq.f32.partialorder %v2192, %v2194
  %v2196 = vsel %vm2195, %v2191, -inf
  %2197 = vmax.xlane.f32.xlu0 %v2196
  %v2198 = vpop.xlane.xlu0 %2197
  %v2199 = vcvt.f32.s32 %v2198
  %v2200 = vcvt.f32.s32 %v2194
  %v2201 = vshll.u32 %v2200, 16
  %v2202 = vadd.s32 %v2201, %v2199
  %v2203 = vand.u32 %v2182, 65535
  %v2204 = vshra.s32 %v2182, 16
  %v2205 = vcvt.s32.f32 %v2203
  %v2206 = vcvt.s32.f32 %v2204
  %2207 = vmax.xlane.f32.xlu0 %v2206
  %v2208 = vpop.xlane.xlu0 %2207
  %vm2209 = vcmp.eq.f32.partialorder %v2206, %v2208
  %v2210 = vsel %vm2209, %v2205, -inf
  %2211 = vmax.xlane.f32.xlu0 %v2210
  %v2212 = vpop.xlane.xlu0 %2211
  %v2213 = vcvt.f32.s32 %v2212
  %v2214 = vcvt.f32.s32 %v2208
  %v2215 = vshll.u32 %v2214, 16
  %v2216 = vadd.s32 %v2215, %v2213
  %v2217 = vand.u32 %v2183, 65535
  %v2218 = vshra.s32 %v2183, 16
  %v2219 = vcvt.s32.f32 %v2217
  %v2220 = vcvt.s32.f32 %v2218
  %2221 = vmax.xlane.f32.xlu0 %v2220
  %v2222 = vpop.xlane.xlu0 %2221
  %vm2223 = vcmp.eq.f32.partialorder %v2220, %v2222
  %v2224 = vsel %vm2223, %v2219, -inf
  %2225 = vmax.xlane.f32.xlu0 %v2224
  %v2226 = vpop.xlane.xlu0 %2225
  %v2227 = vcvt.f32.s32 %v2226
  %v2228 = vcvt.f32.s32 %v2222
  %v2229 = vshll.u32 %v2228, 16
  %v2230 = vadd.s32 %v2229, %v2227
  %v2231 = vand.u32 %v2184, 65535
  %v2232 = vshra.s32 %v2184, 16
  %v2233 = vcvt.s32.f32 %v2231
  %v2234 = vcvt.s32.f32 %v2232
  %2235 = vmax.xlane.f32.xlu0 %v2234
  %v2236 = vpop.xlane.xlu0 %2235
  %vm2237 = vcmp.eq.f32.partialorder %v2234, %v2236
  %v2238 = vsel %vm2237, %v2233, -inf
  %2239 = vmax.xlane.f32.xlu0 %v2238
  %v2240 = vpop.xlane.xlu0 %2239
  %v2241 = vcvt.f32.s32 %v2240
  %v2242 = vcvt.f32.s32 %v2236
  %v2243 = vshll.u32 %v2242, 16
  %v2244 = vadd.s32 %v2243, %v2241
  %v2245 = vand.u32 %v2185, 65535
  %v2246 = vshra.s32 %v2185, 16
  %v2247 = vcvt.s32.f32 %v2245
  %v2248 = vcvt.s32.f32 %v2246
  %2249 = vmax.xlane.f32.xlu0 %v2248
  %v2250 = vpop.xlane.xlu0 %2249
  %vm2251 = vcmp.eq.f32.partialorder %v2248, %v2250
  %v2252 = vsel %vm2251, %v2247, -inf
  %2253 = vmax.xlane.f32.xlu0 %v2252
  %v2254 = vpop.xlane.xlu0 %2253
  %v2255 = vcvt.f32.s32 %v2254
  %v2256 = vcvt.f32.s32 %v2250
  %v2257 = vshll.u32 %v2256, 16
  %v2258 = vadd.s32 %v2257, %v2255
  %v2259 = vand.u32 %v2186, 65535
  %v2260 = vshra.s32 %v2186, 16
  %v2261 = vcvt.s32.f32 %v2259
  %v2262 = vcvt.s32.f32 %v2260
  %2263 = vmax.xlane.f32.xlu0 %v2262
  %v2264 = vpop.xlane.xlu0 %2263
  %vm2265 = vcmp.eq.f32.partialorder %v2262, %v2264
  %v2266 = vsel %vm2265, %v2261, -inf
  %2267 = vmax.xlane.f32.xlu0 %v2266
  %v2268 = vpop.xlane.xlu0 %2267
  %v2269 = vcvt.f32.s32 %v2268
  %v2270 = vcvt.f32.s32 %v2264
  %v2271 = vshll.u32 %v2270, 16
  %v2272 = vadd.s32 %v2271, %v2269
  %v2273 = vand.u32 %v2187, 65535
  %v2274 = vshra.s32 %v2187, 16
  %v2275 = vcvt.s32.f32 %v2273
  %v2276 = vcvt.s32.f32 %v2274
  %2277 = vmax.xlane.f32.xlu0 %v2276
  %v2278 = vpop.xlane.xlu0 %2277
  %vm2279 = vcmp.eq.f32.partialorder %v2276, %v2278
  %v2280 = vsel %vm2279, %v2275, -inf
  %2281 = vmax.xlane.f32.xlu0 %v2280
  %v2282 = vpop.xlane.xlu0 %2281
  %v2283 = vcvt.f32.s32 %v2282
  %v2284 = vcvt.f32.s32 %v2278
  %v2285 = vshll.u32 %v2284, 16
  %v2286 = vadd.s32 %v2285, %v2283
  %v2287 = vand.u32 %v2188, 65535
  %v2288 = vshra.s32 %v2188, 16
  %v2289 = vcvt.s32.f32 %v2287
  %v2290 = vcvt.s32.f32 %v2288
  %2291 = vmax.xlane.f32.xlu0 %v2290
  %v2292 = vpop.xlane.xlu0 %2291
  %vm2293 = vcmp.eq.f32.partialorder %v2290, %v2292
  %v2294 = vsel %vm2293, %v2289, -inf
  %2295 = vmax.xlane.f32.xlu0 %v2294
  %v2296 = vpop.xlane.xlu0 %2295
  %v2297 = vcvt.f32.s32 %v2296
  %v2298 = vcvt.f32.s32 %v2292
  %v2299 = vshll.u32 %v2298, 16
  %v2300 = vadd.s32 %v2299, %v2297
  %vm2301 = vcmp.gt.s32.totalorder %v2202, %v2258
  %v2302 = vsel %vm2301, %v2202, %v2258
  %vm2303 = vcmp.gt.s32.totalorder %v2216, %v2272
  %v2304 = vsel %vm2303, %v2216, %v2272
  %vm2305 = vcmp.gt.s32.totalorder %v2230, %v2286
  %v2306 = vsel %vm2305, %v2230, %v2286
  %vm2307 = vcmp.gt.s32.totalorder %v2244, %v2300
  %v2308 = vsel %vm2307, %v2244, %v2300
  %vm2309 = vcmp.gt.s32.totalorder %v2302, %v2304
  %v2310 = vsel %vm2309, %v2302, %v2304
  %vm2311 = vcmp.gt.s32.totalorder %v2306, %v2308
  %v2312 = vsel %vm2311, %v2306, %v2308
  %vm2313 = vcmp.gt.s32.totalorder %v2310, %v2312
  %v2314 = vsel %vm2313, %v2310, %v2312
  %v2315 = vrot.slane %v2314, 4
  %vm2316 = vcmp.gt.s32.totalorder %v2314, %v2315
  %v2317 = vsel %vm2316, %v2314, %v2315
  %v2318 = vrot.slane %v2317, 2
  %vm2319 = vcmp.gt.s32.totalorder %v2317, %v2318
  %v2320 = vsel %vm2319, %v2317, %v2318
  %v2321 = vrot.slane %v2320, 1
  %vm2322 = vcmp.gt.s32.totalorder %v2320, %v2321
  %v2323 = vsel %vm2322, %v2320, %v2321
  %v2324 = vand.u32 %v2323, 8191
  %v2325 = vsub.s32 8191, %v2324
  %vm2326 = vcmp.eq.s32.totalorder %v30, 13
  %v2327 = vsel %vm2326, %v2325, %v2172
  %vm2328 = vcmp.eq.s32.totalorder %v30, %v2325
  %vm2329 = vcmp.eq.s32.totalorder %v31, %v2325
  %vm2330 = vcmp.eq.s32.totalorder %v32, %v2325
  %vm2331 = vcmp.eq.s32.totalorder %v33, %v2325
  %vm2332 = vcmp.eq.s32.totalorder %v34, %v2325
  %vm2333 = vcmp.eq.s32.totalorder %v35, %v2325
  %vm2334 = vcmp.eq.s32.totalorder %v36, %v2325
  %vm2335 = vcmp.eq.s32.totalorder %v37, %v2325
  %v2336 = vsel %vm2328, 2147483648, %v2181
  %v2337 = vsel %vm2329, 2147483648, %v2182
  %v2338 = vsel %vm2330, 2147483648, %v2183
  %v2339 = vsel %vm2331, 2147483648, %v2184
  %v2340 = vsel %vm2332, 2147483648, %v2185
  %v2341 = vsel %vm2333, 2147483648, %v2186
  %v2342 = vsel %vm2334, 2147483648, %v2187
  %v2343 = vsel %vm2335, 2147483648, %v2188
  %v2344 = vand.u32 %v2336, 65535
  %v2345 = vshra.s32 %v2336, 16
  %v2346 = vcvt.s32.f32 %v2344
  %v2347 = vcvt.s32.f32 %v2345
  %2348 = vmax.xlane.f32.xlu0 %v2347
  %v2349 = vpop.xlane.xlu0 %2348
  %vm2350 = vcmp.eq.f32.partialorder %v2347, %v2349
  %v2351 = vsel %vm2350, %v2346, -inf
  %2352 = vmax.xlane.f32.xlu0 %v2351
  %v2353 = vpop.xlane.xlu0 %2352
  %v2354 = vcvt.f32.s32 %v2353
  %v2355 = vcvt.f32.s32 %v2349
  %v2356 = vshll.u32 %v2355, 16
  %v2357 = vadd.s32 %v2356, %v2354
  %v2358 = vand.u32 %v2337, 65535
  %v2359 = vshra.s32 %v2337, 16
  %v2360 = vcvt.s32.f32 %v2358
  %v2361 = vcvt.s32.f32 %v2359
  %2362 = vmax.xlane.f32.xlu0 %v2361
  %v2363 = vpop.xlane.xlu0 %2362
  %vm2364 = vcmp.eq.f32.partialorder %v2361, %v2363
  %v2365 = vsel %vm2364, %v2360, -inf
  %2366 = vmax.xlane.f32.xlu0 %v2365
  %v2367 = vpop.xlane.xlu0 %2366
  %v2368 = vcvt.f32.s32 %v2367
  %v2369 = vcvt.f32.s32 %v2363
  %v2370 = vshll.u32 %v2369, 16
  %v2371 = vadd.s32 %v2370, %v2368
  %v2372 = vand.u32 %v2338, 65535
  %v2373 = vshra.s32 %v2338, 16
  %v2374 = vcvt.s32.f32 %v2372
  %v2375 = vcvt.s32.f32 %v2373
  %2376 = vmax.xlane.f32.xlu0 %v2375
  %v2377 = vpop.xlane.xlu0 %2376
  %vm2378 = vcmp.eq.f32.partialorder %v2375, %v2377
  %v2379 = vsel %vm2378, %v2374, -inf
  %2380 = vmax.xlane.f32.xlu0 %v2379
  %v2381 = vpop.xlane.xlu0 %2380
  %v2382 = vcvt.f32.s32 %v2381
  %v2383 = vcvt.f32.s32 %v2377
  %v2384 = vshll.u32 %v2383, 16
  %v2385 = vadd.s32 %v2384, %v2382
  %v2386 = vand.u32 %v2339, 65535
  %v2387 = vshra.s32 %v2339, 16
  %v2388 = vcvt.s32.f32 %v2386
  %v2389 = vcvt.s32.f32 %v2387
  %2390 = vmax.xlane.f32.xlu0 %v2389
  %v2391 = vpop.xlane.xlu0 %2390
  %vm2392 = vcmp.eq.f32.partialorder %v2389, %v2391
  %v2393 = vsel %vm2392, %v2388, -inf
  %2394 = vmax.xlane.f32.xlu0 %v2393
  %v2395 = vpop.xlane.xlu0 %2394
  %v2396 = vcvt.f32.s32 %v2395
  %v2397 = vcvt.f32.s32 %v2391
  %v2398 = vshll.u32 %v2397, 16
  %v2399 = vadd.s32 %v2398, %v2396
  %v2400 = vand.u32 %v2340, 65535
  %v2401 = vshra.s32 %v2340, 16
  %v2402 = vcvt.s32.f32 %v2400
  %v2403 = vcvt.s32.f32 %v2401
  %2404 = vmax.xlane.f32.xlu0 %v2403
  %v2405 = vpop.xlane.xlu0 %2404
  %vm2406 = vcmp.eq.f32.partialorder %v2403, %v2405
  %v2407 = vsel %vm2406, %v2402, -inf
  %2408 = vmax.xlane.f32.xlu0 %v2407
  %v2409 = vpop.xlane.xlu0 %2408
  %v2410 = vcvt.f32.s32 %v2409
  %v2411 = vcvt.f32.s32 %v2405
  %v2412 = vshll.u32 %v2411, 16
  %v2413 = vadd.s32 %v2412, %v2410
  %v2414 = vand.u32 %v2341, 65535
  %v2415 = vshra.s32 %v2341, 16
  %v2416 = vcvt.s32.f32 %v2414
  %v2417 = vcvt.s32.f32 %v2415
  %2418 = vmax.xlane.f32.xlu0 %v2417
  %v2419 = vpop.xlane.xlu0 %2418
  %vm2420 = vcmp.eq.f32.partialorder %v2417, %v2419
  %v2421 = vsel %vm2420, %v2416, -inf
  %2422 = vmax.xlane.f32.xlu0 %v2421
  %v2423 = vpop.xlane.xlu0 %2422
  %v2424 = vcvt.f32.s32 %v2423
  %v2425 = vcvt.f32.s32 %v2419
  %v2426 = vshll.u32 %v2425, 16
  %v2427 = vadd.s32 %v2426, %v2424
  %v2428 = vand.u32 %v2342, 65535
  %v2429 = vshra.s32 %v2342, 16
  %v2430 = vcvt.s32.f32 %v2428
  %v2431 = vcvt.s32.f32 %v2429
  %2432 = vmax.xlane.f32.xlu0 %v2431
  %v2433 = vpop.xlane.xlu0 %2432
  %vm2434 = vcmp.eq.f32.partialorder %v2431, %v2433
  %v2435 = vsel %vm2434, %v2430, -inf
  %2436 = vmax.xlane.f32.xlu0 %v2435
  %v2437 = vpop.xlane.xlu0 %2436
  %v2438 = vcvt.f32.s32 %v2437
  %v2439 = vcvt.f32.s32 %v2433
  %v2440 = vshll.u32 %v2439, 16
  %v2441 = vadd.s32 %v2440, %v2438
  %v2442 = vand.u32 %v2343, 65535
  %v2443 = vshra.s32 %v2343, 16
  %v2444 = vcvt.s32.f32 %v2442
  %v2445 = vcvt.s32.f32 %v2443
  %2446 = vmax.xlane.f32.xlu0 %v2445
  %v2447 = vpop.xlane.xlu0 %2446
  %vm2448 = vcmp.eq.f32.partialorder %v2445, %v2447
  %v2449 = vsel %vm2448, %v2444, -inf
  %2450 = vmax.xlane.f32.xlu0 %v2449
  %v2451 = vpop.xlane.xlu0 %2450
  %v2452 = vcvt.f32.s32 %v2451
  %v2453 = vcvt.f32.s32 %v2447
  %v2454 = vshll.u32 %v2453, 16
  %v2455 = vadd.s32 %v2454, %v2452
  %vm2456 = vcmp.gt.s32.totalorder %v2357, %v2413
  %v2457 = vsel %vm2456, %v2357, %v2413
  %vm2458 = vcmp.gt.s32.totalorder %v2371, %v2427
  %v2459 = vsel %vm2458, %v2371, %v2427
  %vm2460 = vcmp.gt.s32.totalorder %v2385, %v2441
  %v2461 = vsel %vm2460, %v2385, %v2441
  %vm2462 = vcmp.gt.s32.totalorder %v2399, %v2455
  %v2463 = vsel %vm2462, %v2399, %v2455
  %vm2464 = vcmp.gt.s32.totalorder %v2457, %v2459
  %v2465 = vsel %vm2464, %v2457, %v2459
  %vm2466 = vcmp.gt.s32.totalorder %v2461, %v2463
  %v2467 = vsel %vm2466, %v2461, %v2463
  %vm2468 = vcmp.gt.s32.totalorder %v2465, %v2467
  %v2469 = vsel %vm2468, %v2465, %v2467
  %v2470 = vrot.slane %v2469, 4
  %vm2471 = vcmp.gt.s32.totalorder %v2469, %v2470
  %v2472 = vsel %vm2471, %v2469, %v2470
  %v2473 = vrot.slane %v2472, 2
  %vm2474 = vcmp.gt.s32.totalorder %v2472, %v2473
  %v2475 = vsel %vm2474, %v2472, %v2473
  %v2476 = vrot.slane %v2475, 1
  %vm2477 = vcmp.gt.s32.totalorder %v2475, %v2476
  %v2478 = vsel %vm2477, %v2475, %v2476
  %v2479 = vand.u32 %v2478, 8191
  %v2480 = vsub.s32 8191, %v2479
  %vm2481 = vcmp.eq.s32.totalorder %v30, 14
  %v2482 = vsel %vm2481, %v2480, %v2327
  %vm2483 = vcmp.eq.s32.totalorder %v30, %v2480
  %vm2484 = vcmp.eq.s32.totalorder %v31, %v2480
  %vm2485 = vcmp.eq.s32.totalorder %v32, %v2480
  %vm2486 = vcmp.eq.s32.totalorder %v33, %v2480
  %vm2487 = vcmp.eq.s32.totalorder %v34, %v2480
  %vm2488 = vcmp.eq.s32.totalorder %v35, %v2480
  %vm2489 = vcmp.eq.s32.totalorder %v36, %v2480
  %vm2490 = vcmp.eq.s32.totalorder %v37, %v2480
  %v2491 = vsel %vm2483, 2147483648, %v2336
  %v2492 = vsel %vm2484, 2147483648, %v2337
  %v2493 = vsel %vm2485, 2147483648, %v2338
  %v2494 = vsel %vm2486, 2147483648, %v2339
  %v2495 = vsel %vm2487, 2147483648, %v2340
  %v2496 = vsel %vm2488, 2147483648, %v2341
  %v2497 = vsel %vm2489, 2147483648, %v2342
  %v2498 = vsel %vm2490, 2147483648, %v2343
  %v2499 = vand.u32 %v2491, 65535
  %v2500 = vshra.s32 %v2491, 16
  %v2501 = vcvt.s32.f32 %v2499
  %v2502 = vcvt.s32.f32 %v2500
  %2503 = vmax.xlane.f32.xlu0 %v2502
  %v2504 = vpop.xlane.xlu0 %2503
  %vm2505 = vcmp.eq.f32.partialorder %v2502, %v2504
  %v2506 = vsel %vm2505, %v2501, -inf
  %2507 = vmax.xlane.f32.xlu0 %v2506
  %v2508 = vpop.xlane.xlu0 %2507
  %v2509 = vcvt.f32.s32 %v2508
  %v2510 = vcvt.f32.s32 %v2504
  %v2511 = vshll.u32 %v2510, 16
  %v2512 = vadd.s32 %v2511, %v2509
  %v2513 = vand.u32 %v2492, 65535
  %v2514 = vshra.s32 %v2492, 16
  %v2515 = vcvt.s32.f32 %v2513
  %v2516 = vcvt.s32.f32 %v2514
  %2517 = vmax.xlane.f32.xlu0 %v2516
  %v2518 = vpop.xlane.xlu0 %2517
  %vm2519 = vcmp.eq.f32.partialorder %v2516, %v2518
  %v2520 = vsel %vm2519, %v2515, -inf
  %2521 = vmax.xlane.f32.xlu0 %v2520
  %v2522 = vpop.xlane.xlu0 %2521
  %v2523 = vcvt.f32.s32 %v2522
  %v2524 = vcvt.f32.s32 %v2518
  %v2525 = vshll.u32 %v2524, 16
  %v2526 = vadd.s32 %v2525, %v2523
  %v2527 = vand.u32 %v2493, 65535
  %v2528 = vshra.s32 %v2493, 16
  %v2529 = vcvt.s32.f32 %v2527
  %v2530 = vcvt.s32.f32 %v2528
  %2531 = vmax.xlane.f32.xlu0 %v2530
  %v2532 = vpop.xlane.xlu0 %2531
  %vm2533 = vcmp.eq.f32.partialorder %v2530, %v2532
  %v2534 = vsel %vm2533, %v2529, -inf
  %2535 = vmax.xlane.f32.xlu0 %v2534
  %v2536 = vpop.xlane.xlu0 %2535
  %v2537 = vcvt.f32.s32 %v2536
  %v2538 = vcvt.f32.s32 %v2532
  %v2539 = vshll.u32 %v2538, 16
  %v2540 = vadd.s32 %v2539, %v2537
  %v2541 = vand.u32 %v2494, 65535
  %v2542 = vshra.s32 %v2494, 16
  %v2543 = vcvt.s32.f32 %v2541
  %v2544 = vcvt.s32.f32 %v2542
  %2545 = vmax.xlane.f32.xlu0 %v2544
  %v2546 = vpop.xlane.xlu0 %2545
  %vm2547 = vcmp.eq.f32.partialorder %v2544, %v2546
  %v2548 = vsel %vm2547, %v2543, -inf
  %2549 = vmax.xlane.f32.xlu0 %v2548
  %v2550 = vpop.xlane.xlu0 %2549
  %v2551 = vcvt.f32.s32 %v2550
  %v2552 = vcvt.f32.s32 %v2546
  %v2553 = vshll.u32 %v2552, 16
  %v2554 = vadd.s32 %v2553, %v2551
  %v2555 = vand.u32 %v2495, 65535
  %v2556 = vshra.s32 %v2495, 16
  %v2557 = vcvt.s32.f32 %v2555
  %v2558 = vcvt.s32.f32 %v2556
  %2559 = vmax.xlane.f32.xlu0 %v2558
  %v2560 = vpop.xlane.xlu0 %2559
  %vm2561 = vcmp.eq.f32.partialorder %v2558, %v2560
  %v2562 = vsel %vm2561, %v2557, -inf
  %2563 = vmax.xlane.f32.xlu0 %v2562
  %v2564 = vpop.xlane.xlu0 %2563
  %v2565 = vcvt.f32.s32 %v2564
  %v2566 = vcvt.f32.s32 %v2560
  %v2567 = vshll.u32 %v2566, 16
  %v2568 = vadd.s32 %v2567, %v2565
  %v2569 = vand.u32 %v2496, 65535
  %v2570 = vshra.s32 %v2496, 16
  %v2571 = vcvt.s32.f32 %v2569
  %v2572 = vcvt.s32.f32 %v2570
  %2573 = vmax.xlane.f32.xlu0 %v2572
  %v2574 = vpop.xlane.xlu0 %2573
  %vm2575 = vcmp.eq.f32.partialorder %v2572, %v2574
  %v2576 = vsel %vm2575, %v2571, -inf
  %2577 = vmax.xlane.f32.xlu0 %v2576
  %v2578 = vpop.xlane.xlu0 %2577
  %v2579 = vcvt.f32.s32 %v2578
  %v2580 = vcvt.f32.s32 %v2574
  %v2581 = vshll.u32 %v2580, 16
  %v2582 = vadd.s32 %v2581, %v2579
  %v2583 = vand.u32 %v2497, 65535
  %v2584 = vshra.s32 %v2497, 16
  %v2585 = vcvt.s32.f32 %v2583
  %v2586 = vcvt.s32.f32 %v2584
  %2587 = vmax.xlane.f32.xlu0 %v2586
  %v2588 = vpop.xlane.xlu0 %2587
  %vm2589 = vcmp.eq.f32.partialorder %v2586, %v2588
  %v2590 = vsel %vm2589, %v2585, -inf
  %2591 = vmax.xlane.f32.xlu0 %v2590
  %v2592 = vpop.xlane.xlu0 %2591
  %v2593 = vcvt.f32.s32 %v2592
  %v2594 = vcvt.f32.s32 %v2588
  %v2595 = vshll.u32 %v2594, 16
  %v2596 = vadd.s32 %v2595, %v2593
  %v2597 = vand.u32 %v2498, 65535
  %v2598 = vshra.s32 %v2498, 16
  %v2599 = vcvt.s32.f32 %v2597
  %v2600 = vcvt.s32.f32 %v2598
  %2601 = vmax.xlane.f32.xlu0 %v2600
  %v2602 = vpop.xlane.xlu0 %2601
  %vm2603 = vcmp.eq.f32.partialorder %v2600, %v2602
  %v2604 = vsel %vm2603, %v2599, -inf
  %2605 = vmax.xlane.f32.xlu0 %v2604
  %v2606 = vpop.xlane.xlu0 %2605
  %v2607 = vcvt.f32.s32 %v2606
  %v2608 = vcvt.f32.s32 %v2602
  %v2609 = vshll.u32 %v2608, 16
  %v2610 = vadd.s32 %v2609, %v2607
  %vm2611 = vcmp.gt.s32.totalorder %v2512, %v2568
  %v2612 = vsel %vm2611, %v2512, %v2568
  %vm2613 = vcmp.gt.s32.totalorder %v2526, %v2582
  %v2614 = vsel %vm2613, %v2526, %v2582
  %vm2615 = vcmp.gt.s32.totalorder %v2540, %v2596
  %v2616 = vsel %vm2615, %v2540, %v2596
  %vm2617 = vcmp.gt.s32.totalorder %v2554, %v2610
  %v2618 = vsel %vm2617, %v2554, %v2610
  %vm2619 = vcmp.gt.s32.totalorder %v2612, %v2614
  %v2620 = vsel %vm2619, %v2612, %v2614
  %vm2621 = vcmp.gt.s32.totalorder %v2616, %v2618
  %v2622 = vsel %vm2621, %v2616, %v2618
  %vm2623 = vcmp.gt.s32.totalorder %v2620, %v2622
  %v2624 = vsel %vm2623, %v2620, %v2622
  %v2625 = vrot.slane %v2624, 4
  %vm2626 = vcmp.gt.s32.totalorder %v2624, %v2625
  %v2627 = vsel %vm2626, %v2624, %v2625
  %v2628 = vrot.slane %v2627, 2
  %vm2629 = vcmp.gt.s32.totalorder %v2627, %v2628
  %v2630 = vsel %vm2629, %v2627, %v2628
  %v2631 = vrot.slane %v2630, 1
  %vm2632 = vcmp.gt.s32.totalorder %v2630, %v2631
  %v2633 = vsel %vm2632, %v2630, %v2631
  %v2634 = vand.u32 %v2633, 8191
  %v2635 = vsub.s32 8191, %v2634
  %vm2636 = vcmp.eq.s32.totalorder %v30, 15
  %v2637 = vsel %vm2636, %v2635, %v2482
  %vm2638 = vcmp.eq.s32.totalorder %v30, %v2635
  %vm2639 = vcmp.eq.s32.totalorder %v31, %v2635
  %vm2640 = vcmp.eq.s32.totalorder %v32, %v2635
  %vm2641 = vcmp.eq.s32.totalorder %v33, %v2635
  %vm2642 = vcmp.eq.s32.totalorder %v34, %v2635
  %vm2643 = vcmp.eq.s32.totalorder %v35, %v2635
  %vm2644 = vcmp.eq.s32.totalorder %v36, %v2635
  %vm2645 = vcmp.eq.s32.totalorder %v37, %v2635
  %v2646 = vsel %vm2638, 2147483648, %v2491
  %v2647 = vsel %vm2639, 2147483648, %v2492
  %v2648 = vsel %vm2640, 2147483648, %v2493
  %v2649 = vsel %vm2641, 2147483648, %v2494
  %v2650 = vsel %vm2642, 2147483648, %v2495
  %v2651 = vsel %vm2643, 2147483648, %v2496
  %v2652 = vsel %vm2644, 2147483648, %v2497
  %v2653 = vsel %vm2645, 2147483648, %v2498
  %v2654 = vand.u32 %v2646, 65535
  %v2655 = vshra.s32 %v2646, 16
  %v2656 = vcvt.s32.f32 %v2654
  %v2657 = vcvt.s32.f32 %v2655
  %2658 = vmax.xlane.f32.xlu0 %v2657
  %v2659 = vpop.xlane.xlu0 %2658
  %vm2660 = vcmp.eq.f32.partialorder %v2657, %v2659
  %v2661 = vsel %vm2660, %v2656, -inf
  %2662 = vmax.xlane.f32.xlu0 %v2661
  %v2663 = vpop.xlane.xlu0 %2662
  %v2664 = vcvt.f32.s32 %v2663
  %v2665 = vcvt.f32.s32 %v2659
  %v2666 = vshll.u32 %v2665, 16
  %v2667 = vadd.s32 %v2666, %v2664
  %v2668 = vand.u32 %v2647, 65535
  %v2669 = vshra.s32 %v2647, 16
  %v2670 = vcvt.s32.f32 %v2668
  %v2671 = vcvt.s32.f32 %v2669
  %2672 = vmax.xlane.f32.xlu0 %v2671
  %v2673 = vpop.xlane.xlu0 %2672
  %vm2674 = vcmp.eq.f32.partialorder %v2671, %v2673
  %v2675 = vsel %vm2674, %v2670, -inf
  %2676 = vmax.xlane.f32.xlu0 %v2675
  %v2677 = vpop.xlane.xlu0 %2676
  %v2678 = vcvt.f32.s32 %v2677
  %v2679 = vcvt.f32.s32 %v2673
  %v2680 = vshll.u32 %v2679, 16
  %v2681 = vadd.s32 %v2680, %v2678
  %v2682 = vand.u32 %v2648, 65535
  %v2683 = vshra.s32 %v2648, 16
  %v2684 = vcvt.s32.f32 %v2682
  %v2685 = vcvt.s32.f32 %v2683
  %2686 = vmax.xlane.f32.xlu0 %v2685
  %v2687 = vpop.xlane.xlu0 %2686
  %vm2688 = vcmp.eq.f32.partialorder %v2685, %v2687
  %v2689 = vsel %vm2688, %v2684, -inf
  %2690 = vmax.xlane.f32.xlu0 %v2689
  %v2691 = vpop.xlane.xlu0 %2690
  %v2692 = vcvt.f32.s32 %v2691
  %v2693 = vcvt.f32.s32 %v2687
  %v2694 = vshll.u32 %v2693, 16
  %v2695 = vadd.s32 %v2694, %v2692
  %v2696 = vand.u32 %v2649, 65535
  %v2697 = vshra.s32 %v2649, 16
  %v2698 = vcvt.s32.f32 %v2696
  %v2699 = vcvt.s32.f32 %v2697
  %2700 = vmax.xlane.f32.xlu0 %v2699
  %v2701 = vpop.xlane.xlu0 %2700
  %vm2702 = vcmp.eq.f32.partialorder %v2699, %v2701
  %v2703 = vsel %vm2702, %v2698, -inf
  %2704 = vmax.xlane.f32.xlu0 %v2703
  %v2705 = vpop.xlane.xlu0 %2704
  %v2706 = vcvt.f32.s32 %v2705
  %v2707 = vcvt.f32.s32 %v2701
  %v2708 = vshll.u32 %v2707, 16
  %v2709 = vadd.s32 %v2708, %v2706
  %v2710 = vand.u32 %v2650, 65535
  %v2711 = vshra.s32 %v2650, 16
  %v2712 = vcvt.s32.f32 %v2710
  %v2713 = vcvt.s32.f32 %v2711
  %2714 = vmax.xlane.f32.xlu0 %v2713
  %v2715 = vpop.xlane.xlu0 %2714
  %vm2716 = vcmp.eq.f32.partialorder %v2713, %v2715
  %v2717 = vsel %vm2716, %v2712, -inf
  %2718 = vmax.xlane.f32.xlu0 %v2717
  %v2719 = vpop.xlane.xlu0 %2718
  %v2720 = vcvt.f32.s32 %v2719
  %v2721 = vcvt.f32.s32 %v2715
  %v2722 = vshll.u32 %v2721, 16
  %v2723 = vadd.s32 %v2722, %v2720
  %v2724 = vand.u32 %v2651, 65535
  %v2725 = vshra.s32 %v2651, 16
  %v2726 = vcvt.s32.f32 %v2724
  %v2727 = vcvt.s32.f32 %v2725
  %2728 = vmax.xlane.f32.xlu0 %v2727
  %v2729 = vpop.xlane.xlu0 %2728
  %vm2730 = vcmp.eq.f32.partialorder %v2727, %v2729
  %v2731 = vsel %vm2730, %v2726, -inf
  %2732 = vmax.xlane.f32.xlu0 %v2731
  %v2733 = vpop.xlane.xlu0 %2732
  %v2734 = vcvt.f32.s32 %v2733
  %v2735 = vcvt.f32.s32 %v2729
  %v2736 = vshll.u32 %v2735, 16
  %v2737 = vadd.s32 %v2736, %v2734
  %v2738 = vand.u32 %v2652, 65535
  %v2739 = vshra.s32 %v2652, 16
  %v2740 = vcvt.s32.f32 %v2738
  %v2741 = vcvt.s32.f32 %v2739
  %2742 = vmax.xlane.f32.xlu0 %v2741
  %v2743 = vpop.xlane.xlu0 %2742
  %vm2744 = vcmp.eq.f32.partialorder %v2741, %v2743
  %v2745 = vsel %vm2744, %v2740, -inf
  %2746 = vmax.xlane.f32.xlu0 %v2745
  %v2747 = vpop.xlane.xlu0 %2746
  %v2748 = vcvt.f32.s32 %v2747
  %v2749 = vcvt.f32.s32 %v2743
  %v2750 = vshll.u32 %v2749, 16
  %v2751 = vadd.s32 %v2750, %v2748
  %v2752 = vand.u32 %v2653, 65535
  %v2753 = vshra.s32 %v2653, 16
  %v2754 = vcvt.s32.f32 %v2752
  %v2755 = vcvt.s32.f32 %v2753
  %2756 = vmax.xlane.f32.xlu0 %v2755
  %v2757 = vpop.xlane.xlu0 %2756
  %vm2758 = vcmp.eq.f32.partialorder %v2755, %v2757
  %v2759 = vsel %vm2758, %v2754, -inf
  %2760 = vmax.xlane.f32.xlu0 %v2759
  %v2761 = vpop.xlane.xlu0 %2760
  %v2762 = vcvt.f32.s32 %v2761
  %v2763 = vcvt.f32.s32 %v2757
  %v2764 = vshll.u32 %v2763, 16
  %v2765 = vadd.s32 %v2764, %v2762
  %vm2766 = vcmp.gt.s32.totalorder %v2667, %v2723
  %v2767 = vsel %vm2766, %v2667, %v2723
  %vm2768 = vcmp.gt.s32.totalorder %v2681, %v2737
  %v2769 = vsel %vm2768, %v2681, %v2737
  %vm2770 = vcmp.gt.s32.totalorder %v2695, %v2751
  %v2771 = vsel %vm2770, %v2695, %v2751
  %vm2772 = vcmp.gt.s32.totalorder %v2709, %v2765
  %v2773 = vsel %vm2772, %v2709, %v2765
  %vm2774 = vcmp.gt.s32.totalorder %v2767, %v2769
  %v2775 = vsel %vm2774, %v2767, %v2769
  %vm2776 = vcmp.gt.s32.totalorder %v2771, %v2773
  %v2777 = vsel %vm2776, %v2771, %v2773
  %vm2778 = vcmp.gt.s32.totalorder %v2775, %v2777
  %v2779 = vsel %vm2778, %v2775, %v2777
  %v2780 = vrot.slane %v2779, 4
  %vm2781 = vcmp.gt.s32.totalorder %v2779, %v2780
  %v2782 = vsel %vm2781, %v2779, %v2780
  %v2783 = vrot.slane %v2782, 2
  %vm2784 = vcmp.gt.s32.totalorder %v2782, %v2783
  %v2785 = vsel %vm2784, %v2782, %v2783
  %v2786 = vrot.slane %v2785, 1
  %vm2787 = vcmp.gt.s32.totalorder %v2785, %v2786
  %v2788 = vsel %vm2787, %v2785, %v2786
  %v2789 = vand.u32 %v2788, 8191
  %v2790 = vsub.s32 8191, %v2789
  %vm2791 = vcmp.eq.s32.totalorder %v30, 16
  %v2792 = vsel %vm2791, %v2790, %v2637
  %vm2793 = vcmp.eq.s32.totalorder %v30, %v2790
  %vm2794 = vcmp.eq.s32.totalorder %v31, %v2790
  %vm2795 = vcmp.eq.s32.totalorder %v32, %v2790
  %vm2796 = vcmp.eq.s32.totalorder %v33, %v2790
  %vm2797 = vcmp.eq.s32.totalorder %v34, %v2790
  %vm2798 = vcmp.eq.s32.totalorder %v35, %v2790
  %vm2799 = vcmp.eq.s32.totalorder %v36, %v2790
  %vm2800 = vcmp.eq.s32.totalorder %v37, %v2790
  %v2801 = vsel %vm2793, 2147483648, %v2646
  %v2802 = vsel %vm2794, 2147483648, %v2647
  %v2803 = vsel %vm2795, 2147483648, %v2648
  %v2804 = vsel %vm2796, 2147483648, %v2649
  %v2805 = vsel %vm2797, 2147483648, %v2650
  %v2806 = vsel %vm2798, 2147483648, %v2651
  %v2807 = vsel %vm2799, 2147483648, %v2652
  %v2808 = vsel %vm2800, 2147483648, %v2653
  %v2809 = vand.u32 %v2801, 65535
  %v2810 = vshra.s32 %v2801, 16
  %v2811 = vcvt.s32.f32 %v2809
  %v2812 = vcvt.s32.f32 %v2810
  %2813 = vmax.xlane.f32.xlu0 %v2812
  %v2814 = vpop.xlane.xlu0 %2813
  %vm2815 = vcmp.eq.f32.partialorder %v2812, %v2814
  %v2816 = vsel %vm2815, %v2811, -inf
  %2817 = vmax.xlane.f32.xlu0 %v2816
  %v2818 = vpop.xlane.xlu0 %2817
  %v2819 = vcvt.f32.s32 %v2818
  %v2820 = vcvt.f32.s32 %v2814
  %v2821 = vshll.u32 %v2820, 16
  %v2822 = vadd.s32 %v2821, %v2819
  %v2823 = vand.u32 %v2802, 65535
  %v2824 = vshra.s32 %v2802, 16
  %v2825 = vcvt.s32.f32 %v2823
  %v2826 = vcvt.s32.f32 %v2824
  %2827 = vmax.xlane.f32.xlu0 %v2826
  %v2828 = vpop.xlane.xlu0 %2827
  %vm2829 = vcmp.eq.f32.partialorder %v2826, %v2828
  %v2830 = vsel %vm2829, %v2825, -inf
  %2831 = vmax.xlane.f32.xlu0 %v2830
  %v2832 = vpop.xlane.xlu0 %2831
  %v2833 = vcvt.f32.s32 %v2832
  %v2834 = vcvt.f32.s32 %v2828
  %v2835 = vshll.u32 %v2834, 16
  %v2836 = vadd.s32 %v2835, %v2833
  %v2837 = vand.u32 %v2803, 65535
  %v2838 = vshra.s32 %v2803, 16
  %v2839 = vcvt.s32.f32 %v2837
  %v2840 = vcvt.s32.f32 %v2838
  %2841 = vmax.xlane.f32.xlu0 %v2840
  %v2842 = vpop.xlane.xlu0 %2841
  %vm2843 = vcmp.eq.f32.partialorder %v2840, %v2842
  %v2844 = vsel %vm2843, %v2839, -inf
  %2845 = vmax.xlane.f32.xlu0 %v2844
  %v2846 = vpop.xlane.xlu0 %2845
  %v2847 = vcvt.f32.s32 %v2846
  %v2848 = vcvt.f32.s32 %v2842
  %v2849 = vshll.u32 %v2848, 16
  %v2850 = vadd.s32 %v2849, %v2847
  %v2851 = vand.u32 %v2804, 65535
  %v2852 = vshra.s32 %v2804, 16
  %v2853 = vcvt.s32.f32 %v2851
  %v2854 = vcvt.s32.f32 %v2852
  %2855 = vmax.xlane.f32.xlu0 %v2854
  %v2856 = vpop.xlane.xlu0 %2855
  %vm2857 = vcmp.eq.f32.partialorder %v2854, %v2856
  %v2858 = vsel %vm2857, %v2853, -inf
  %2859 = vmax.xlane.f32.xlu0 %v2858
  %v2860 = vpop.xlane.xlu0 %2859
  %v2861 = vcvt.f32.s32 %v2860
  %v2862 = vcvt.f32.s32 %v2856
  %v2863 = vshll.u32 %v2862, 16
  %v2864 = vadd.s32 %v2863, %v2861
  %v2865 = vand.u32 %v2805, 65535
  %v2866 = vshra.s32 %v2805, 16
  %v2867 = vcvt.s32.f32 %v2865
  %v2868 = vcvt.s32.f32 %v2866
  %2869 = vmax.xlane.f32.xlu0 %v2868
  %v2870 = vpop.xlane.xlu0 %2869
  %vm2871 = vcmp.eq.f32.partialorder %v2868, %v2870
  %v2872 = vsel %vm2871, %v2867, -inf
  %2873 = vmax.xlane.f32.xlu0 %v2872
  %v2874 = vpop.xlane.xlu0 %2873
  %v2875 = vcvt.f32.s32 %v2874
  %v2876 = vcvt.f32.s32 %v2870
  %v2877 = vshll.u32 %v2876, 16
  %v2878 = vadd.s32 %v2877, %v2875
  %v2879 = vand.u32 %v2806, 65535
  %v2880 = vshra.s32 %v2806, 16
  %v2881 = vcvt.s32.f32 %v2879
  %v2882 = vcvt.s32.f32 %v2880
  %2883 = vmax.xlane.f32.xlu0 %v2882
  %v2884 = vpop.xlane.xlu0 %2883
  %vm2885 = vcmp.eq.f32.partialorder %v2882, %v2884
  %v2886 = vsel %vm2885, %v2881, -inf
  %2887 = vmax.xlane.f32.xlu0 %v2886
  %v2888 = vpop.xlane.xlu0 %2887
  %v2889 = vcvt.f32.s32 %v2888
  %v2890 = vcvt.f32.s32 %v2884
  %v2891 = vshll.u32 %v2890, 16
  %v2892 = vadd.s32 %v2891, %v2889
  %v2893 = vand.u32 %v2807, 65535
  %v2894 = vshra.s32 %v2807, 16
  %v2895 = vcvt.s32.f32 %v2893
  %v2896 = vcvt.s32.f32 %v2894
  %2897 = vmax.xlane.f32.xlu0 %v2896
  %v2898 = vpop.xlane.xlu0 %2897
  %vm2899 = vcmp.eq.f32.partialorder %v2896, %v2898
  %v2900 = vsel %vm2899, %v2895, -inf
  %2901 = vmax.xlane.f32.xlu0 %v2900
  %v2902 = vpop.xlane.xlu0 %2901
  %v2903 = vcvt.f32.s32 %v2902
  %v2904 = vcvt.f32.s32 %v2898
  %v2905 = vshll.u32 %v2904, 16
  %v2906 = vadd.s32 %v2905, %v2903
  %v2907 = vand.u32 %v2808, 65535
  %v2908 = vshra.s32 %v2808, 16
  %v2909 = vcvt.s32.f32 %v2907
  %v2910 = vcvt.s32.f32 %v2908
  %2911 = vmax.xlane.f32.xlu0 %v2910
  %v2912 = vpop.xlane.xlu0 %2911
  %vm2913 = vcmp.eq.f32.partialorder %v2910, %v2912
  %v2914 = vsel %vm2913, %v2909, -inf
  %2915 = vmax.xlane.f32.xlu0 %v2914
  %v2916 = vpop.xlane.xlu0 %2915
  %v2917 = vcvt.f32.s32 %v2916
  %v2918 = vcvt.f32.s32 %v2912
  %v2919 = vshll.u32 %v2918, 16
  %v2920 = vadd.s32 %v2919, %v2917
  %vm2921 = vcmp.gt.s32.totalorder %v2822, %v2878
  %v2922 = vsel %vm2921, %v2822, %v2878
  %vm2923 = vcmp.gt.s32.totalorder %v2836, %v2892
  %v2924 = vsel %vm2923, %v2836, %v2892
  %vm2925 = vcmp.gt.s32.totalorder %v2850, %v2906
  %v2926 = vsel %vm2925, %v2850, %v2906
  %vm2927 = vcmp.gt.s32.totalorder %v2864, %v2920
  %v2928 = vsel %vm2927, %v2864, %v2920
  %vm2929 = vcmp.gt.s32.totalorder %v2922, %v2924
  %v2930 = vsel %vm2929, %v2922, %v2924
  %vm2931 = vcmp.gt.s32.totalorder %v2926, %v2928
  %v2932 = vsel %vm2931, %v2926, %v2928
  %vm2933 = vcmp.gt.s32.totalorder %v2930, %v2932
  %v2934 = vsel %vm2933, %v2930, %v2932
  %v2935 = vrot.slane %v2934, 4
  %vm2936 = vcmp.gt.s32.totalorder %v2934, %v2935
  %v2937 = vsel %vm2936, %v2934, %v2935
  %v2938 = vrot.slane %v2937, 2
  %vm2939 = vcmp.gt.s32.totalorder %v2937, %v2938
  %v2940 = vsel %vm2939, %v2937, %v2938
  %v2941 = vrot.slane %v2940, 1
  %vm2942 = vcmp.gt.s32.totalorder %v2940, %v2941
  %v2943 = vsel %vm2942, %v2940, %v2941
  %v2944 = vand.u32 %v2943, 8191
  %v2945 = vsub.s32 8191, %v2944
  %vm2946 = vcmp.eq.s32.totalorder %v30, 17
  %v2947 = vsel %vm2946, %v2945, %v2792
  %vm2948 = vcmp.eq.s32.totalorder %v30, %v2945
  %vm2949 = vcmp.eq.s32.totalorder %v31, %v2945
  %vm2950 = vcmp.eq.s32.totalorder %v32, %v2945
  %vm2951 = vcmp.eq.s32.totalorder %v33, %v2945
  %vm2952 = vcmp.eq.s32.totalorder %v34, %v2945
  %vm2953 = vcmp.eq.s32.totalorder %v35, %v2945
  %vm2954 = vcmp.eq.s32.totalorder %v36, %v2945
  %vm2955 = vcmp.eq.s32.totalorder %v37, %v2945
  %v2956 = vsel %vm2948, 2147483648, %v2801
  %v2957 = vsel %vm2949, 2147483648, %v2802
  %v2958 = vsel %vm2950, 2147483648, %v2803
  %v2959 = vsel %vm2951, 2147483648, %v2804
  %v2960 = vsel %vm2952, 2147483648, %v2805
  %v2961 = vsel %vm2953, 2147483648, %v2806
  %v2962 = vsel %vm2954, 2147483648, %v2807
  %v2963 = vsel %vm2955, 2147483648, %v2808
  %v2964 = vand.u32 %v2956, 65535
  %v2965 = vshra.s32 %v2956, 16
  %v2966 = vcvt.s32.f32 %v2964
  %v2967 = vcvt.s32.f32 %v2965
  %2968 = vmax.xlane.f32.xlu0 %v2967
  %v2969 = vpop.xlane.xlu0 %2968
  %vm2970 = vcmp.eq.f32.partialorder %v2967, %v2969
  %v2971 = vsel %vm2970, %v2966, -inf
  %2972 = vmax.xlane.f32.xlu0 %v2971
  %v2973 = vpop.xlane.xlu0 %2972
  %v2974 = vcvt.f32.s32 %v2973
  %v2975 = vcvt.f32.s32 %v2969
  %v2976 = vshll.u32 %v2975, 16
  %v2977 = vadd.s32 %v2976, %v2974
  %v2978 = vand.u32 %v2957, 65535
  %v2979 = vshra.s32 %v2957, 16
  %v2980 = vcvt.s32.f32 %v2978
  %v2981 = vcvt.s32.f32 %v2979
  %2982 = vmax.xlane.f32.xlu0 %v2981
  %v2983 = vpop.xlane.xlu0 %2982
  %vm2984 = vcmp.eq.f32.partialorder %v2981, %v2983
  %v2985 = vsel %vm2984, %v2980, -inf
  %2986 = vmax.xlane.f32.xlu0 %v2985
  %v2987 = vpop.xlane.xlu0 %2986
  %v2988 = vcvt.f32.s32 %v2987
  %v2989 = vcvt.f32.s32 %v2983
  %v2990 = vshll.u32 %v2989, 16
  %v2991 = vadd.s32 %v2990, %v2988
  %v2992 = vand.u32 %v2958, 65535
  %v2993 = vshra.s32 %v2958, 16
  %v2994 = vcvt.s32.f32 %v2992
  %v2995 = vcvt.s32.f32 %v2993
  %2996 = vmax.xlane.f32.xlu0 %v2995
  %v2997 = vpop.xlane.xlu0 %2996
  %vm2998 = vcmp.eq.f32.partialorder %v2995, %v2997
  %v2999 = vsel %vm2998, %v2994, -inf
  %3000 = vmax.xlane.f32.xlu0 %v2999
  %v3001 = vpop.xlane.xlu0 %3000
  %v3002 = vcvt.f32.s32 %v3001
  %v3003 = vcvt.f32.s32 %v2997
  %v3004 = vshll.u32 %v3003, 16
  %v3005 = vadd.s32 %v3004, %v3002
  %v3006 = vand.u32 %v2959, 65535
  %v3007 = vshra.s32 %v2959, 16
  %v3008 = vcvt.s32.f32 %v3006
  %v3009 = vcvt.s32.f32 %v3007
  %3010 = vmax.xlane.f32.xlu0 %v3009
  %v3011 = vpop.xlane.xlu0 %3010
  %vm3012 = vcmp.eq.f32.partialorder %v3009, %v3011
  %v3013 = vsel %vm3012, %v3008, -inf
  %3014 = vmax.xlane.f32.xlu0 %v3013
  %v3015 = vpop.xlane.xlu0 %3014
  %v3016 = vcvt.f32.s32 %v3015
  %v3017 = vcvt.f32.s32 %v3011
  %v3018 = vshll.u32 %v3017, 16
  %v3019 = vadd.s32 %v3018, %v3016
  %v3020 = vand.u32 %v2960, 65535
  %v3021 = vshra.s32 %v2960, 16
  %v3022 = vcvt.s32.f32 %v3020
  %v3023 = vcvt.s32.f32 %v3021
  %3024 = vmax.xlane.f32.xlu0 %v3023
  %v3025 = vpop.xlane.xlu0 %3024
  %vm3026 = vcmp.eq.f32.partialorder %v3023, %v3025
  %v3027 = vsel %vm3026, %v3022, -inf
  %3028 = vmax.xlane.f32.xlu0 %v3027
  %v3029 = vpop.xlane.xlu0 %3028
  %v3030 = vcvt.f32.s32 %v3029
  %v3031 = vcvt.f32.s32 %v3025
  %v3032 = vshll.u32 %v3031, 16
  %v3033 = vadd.s32 %v3032, %v3030
  %v3034 = vand.u32 %v2961, 65535
  %v3035 = vshra.s32 %v2961, 16
  %v3036 = vcvt.s32.f32 %v3034
  %v3037 = vcvt.s32.f32 %v3035
  %3038 = vmax.xlane.f32.xlu0 %v3037
  %v3039 = vpop.xlane.xlu0 %3038
  %vm3040 = vcmp.eq.f32.partialorder %v3037, %v3039
  %v3041 = vsel %vm3040, %v3036, -inf
  %3042 = vmax.xlane.f32.xlu0 %v3041
  %v3043 = vpop.xlane.xlu0 %3042
  %v3044 = vcvt.f32.s32 %v3043
  %v3045 = vcvt.f32.s32 %v3039
  %v3046 = vshll.u32 %v3045, 16
  %v3047 = vadd.s32 %v3046, %v3044
  %v3048 = vand.u32 %v2962, 65535
  %v3049 = vshra.s32 %v2962, 16
  %v3050 = vcvt.s32.f32 %v3048
  %v3051 = vcvt.s32.f32 %v3049
  %3052 = vmax.xlane.f32.xlu0 %v3051
  %v3053 = vpop.xlane.xlu0 %3052
  %vm3054 = vcmp.eq.f32.partialorder %v3051, %v3053
  %v3055 = vsel %vm3054, %v3050, -inf
  %3056 = vmax.xlane.f32.xlu0 %v3055
  %v3057 = vpop.xlane.xlu0 %3056
  %v3058 = vcvt.f32.s32 %v3057
  %v3059 = vcvt.f32.s32 %v3053
  %v3060 = vshll.u32 %v3059, 16
  %v3061 = vadd.s32 %v3060, %v3058
  %v3062 = vand.u32 %v2963, 65535
  %v3063 = vshra.s32 %v2963, 16
  %v3064 = vcvt.s32.f32 %v3062
  %v3065 = vcvt.s32.f32 %v3063
  %3066 = vmax.xlane.f32.xlu0 %v3065
  %v3067 = vpop.xlane.xlu0 %3066
  %vm3068 = vcmp.eq.f32.partialorder %v3065, %v3067
  %v3069 = vsel %vm3068, %v3064, -inf
  %3070 = vmax.xlane.f32.xlu0 %v3069
  %v3071 = vpop.xlane.xlu0 %3070
  %v3072 = vcvt.f32.s32 %v3071
  %v3073 = vcvt.f32.s32 %v3067
  %v3074 = vshll.u32 %v3073, 16
  %v3075 = vadd.s32 %v3074, %v3072
  %vm3076 = vcmp.gt.s32.totalorder %v2977, %v3033
  %v3077 = vsel %vm3076, %v2977, %v3033
  %vm3078 = vcmp.gt.s32.totalorder %v2991, %v3047
  %v3079 = vsel %vm3078, %v2991, %v3047
  %vm3080 = vcmp.gt.s32.totalorder %v3005, %v3061
  %v3081 = vsel %vm3080, %v3005, %v3061
  %vm3082 = vcmp.gt.s32.totalorder %v3019, %v3075
  %v3083 = vsel %vm3082, %v3019, %v3075
  %vm3084 = vcmp.gt.s32.totalorder %v3077, %v3079
  %v3085 = vsel %vm3084, %v3077, %v3079
  %vm3086 = vcmp.gt.s32.totalorder %v3081, %v3083
  %v3087 = vsel %vm3086, %v3081, %v3083
  %vm3088 = vcmp.gt.s32.totalorder %v3085, %v3087
  %v3089 = vsel %vm3088, %v3085, %v3087
  %v3090 = vrot.slane %v3089, 4
  %vm3091 = vcmp.gt.s32.totalorder %v3089, %v3090
  %v3092 = vsel %vm3091, %v3089, %v3090
  %v3093 = vrot.slane %v3092, 2
  %vm3094 = vcmp.gt.s32.totalorder %v3092, %v3093
  %v3095 = vsel %vm3094, %v3092, %v3093
  %v3096 = vrot.slane %v3095, 1
  %vm3097 = vcmp.gt.s32.totalorder %v3095, %v3096
  %v3098 = vsel %vm3097, %v3095, %v3096
  %v3099 = vand.u32 %v3098, 8191
  %v3100 = vsub.s32 8191, %v3099
  %vm3101 = vcmp.eq.s32.totalorder %v30, 18
  %v3102 = vsel %vm3101, %v3100, %v2947
  %vm3103 = vcmp.eq.s32.totalorder %v30, %v3100
  %vm3104 = vcmp.eq.s32.totalorder %v31, %v3100
  %vm3105 = vcmp.eq.s32.totalorder %v32, %v3100
  %vm3106 = vcmp.eq.s32.totalorder %v33, %v3100
  %vm3107 = vcmp.eq.s32.totalorder %v34, %v3100
  %vm3108 = vcmp.eq.s32.totalorder %v35, %v3100
  %vm3109 = vcmp.eq.s32.totalorder %v36, %v3100
  %vm3110 = vcmp.eq.s32.totalorder %v37, %v3100
  %v3111 = vsel %vm3103, 2147483648, %v2956
  %v3112 = vsel %vm3104, 2147483648, %v2957
  %v3113 = vsel %vm3105, 2147483648, %v2958
  %v3114 = vsel %vm3106, 2147483648, %v2959
  %v3115 = vsel %vm3107, 2147483648, %v2960
  %v3116 = vsel %vm3108, 2147483648, %v2961
  %v3117 = vsel %vm3109, 2147483648, %v2962
  %v3118 = vsel %vm3110, 2147483648, %v2963
  %v3119 = vand.u32 %v3111, 65535
  %v3120 = vshra.s32 %v3111, 16
  %v3121 = vcvt.s32.f32 %v3119
  %v3122 = vcvt.s32.f32 %v3120
  %3123 = vmax.xlane.f32.xlu0 %v3122
  %v3124 = vpop.xlane.xlu0 %3123
  %vm3125 = vcmp.eq.f32.partialorder %v3122, %v3124
  %v3126 = vsel %vm3125, %v3121, -inf
  %3127 = vmax.xlane.f32.xlu0 %v3126
  %v3128 = vpop.xlane.xlu0 %3127
  %v3129 = vcvt.f32.s32 %v3128
  %v3130 = vcvt.f32.s32 %v3124
  %v3131 = vshll.u32 %v3130, 16
  %v3132 = vadd.s32 %v3131, %v3129
  %v3133 = vand.u32 %v3112, 65535
  %v3134 = vshra.s32 %v3112, 16
  %v3135 = vcvt.s32.f32 %v3133
  %v3136 = vcvt.s32.f32 %v3134
  %3137 = vmax.xlane.f32.xlu0 %v3136
  %v3138 = vpop.xlane.xlu0 %3137
  %vm3139 = vcmp.eq.f32.partialorder %v3136, %v3138
  %v3140 = vsel %vm3139, %v3135, -inf
  %3141 = vmax.xlane.f32.xlu0 %v3140
  %v3142 = vpop.xlane.xlu0 %3141
  %v3143 = vcvt.f32.s32 %v3142
  %v3144 = vcvt.f32.s32 %v3138
  %v3145 = vshll.u32 %v3144, 16
  %v3146 = vadd.s32 %v3145, %v3143
  %v3147 = vand.u32 %v3113, 65535
  %v3148 = vshra.s32 %v3113, 16
  %v3149 = vcvt.s32.f32 %v3147
  %v3150 = vcvt.s32.f32 %v3148
  %3151 = vmax.xlane.f32.xlu0 %v3150
  %v3152 = vpop.xlane.xlu0 %3151
  %vm3153 = vcmp.eq.f32.partialorder %v3150, %v3152
  %v3154 = vsel %vm3153, %v3149, -inf
  %3155 = vmax.xlane.f32.xlu0 %v3154
  %v3156 = vpop.xlane.xlu0 %3155
  %v3157 = vcvt.f32.s32 %v3156
  %v3158 = vcvt.f32.s32 %v3152
  %v3159 = vshll.u32 %v3158, 16
  %v3160 = vadd.s32 %v3159, %v3157
  %v3161 = vand.u32 %v3114, 65535
  %v3162 = vshra.s32 %v3114, 16
  %v3163 = vcvt.s32.f32 %v3161
  %v3164 = vcvt.s32.f32 %v3162
  %3165 = vmax.xlane.f32.xlu0 %v3164
  %v3166 = vpop.xlane.xlu0 %3165
  %vm3167 = vcmp.eq.f32.partialorder %v3164, %v3166
  %v3168 = vsel %vm3167, %v3163, -inf
  %3169 = vmax.xlane.f32.xlu0 %v3168
  %v3170 = vpop.xlane.xlu0 %3169
  %v3171 = vcvt.f32.s32 %v3170
  %v3172 = vcvt.f32.s32 %v3166
  %v3173 = vshll.u32 %v3172, 16
  %v3174 = vadd.s32 %v3173, %v3171
  %v3175 = vand.u32 %v3115, 65535
  %v3176 = vshra.s32 %v3115, 16
  %v3177 = vcvt.s32.f32 %v3175
  %v3178 = vcvt.s32.f32 %v3176
  %3179 = vmax.xlane.f32.xlu0 %v3178
  %v3180 = vpop.xlane.xlu0 %3179
  %vm3181 = vcmp.eq.f32.partialorder %v3178, %v3180
  %v3182 = vsel %vm3181, %v3177, -inf
  %3183 = vmax.xlane.f32.xlu0 %v3182
  %v3184 = vpop.xlane.xlu0 %3183
  %v3185 = vcvt.f32.s32 %v3184
  %v3186 = vcvt.f32.s32 %v3180
  %v3187 = vshll.u32 %v3186, 16
  %v3188 = vadd.s32 %v3187, %v3185
  %v3189 = vand.u32 %v3116, 65535
  %v3190 = vshra.s32 %v3116, 16
  %v3191 = vcvt.s32.f32 %v3189
  %v3192 = vcvt.s32.f32 %v3190
  %3193 = vmax.xlane.f32.xlu0 %v3192
  %v3194 = vpop.xlane.xlu0 %3193
  %vm3195 = vcmp.eq.f32.partialorder %v3192, %v3194
  %v3196 = vsel %vm3195, %v3191, -inf
  %3197 = vmax.xlane.f32.xlu0 %v3196
  %v3198 = vpop.xlane.xlu0 %3197
  %v3199 = vcvt.f32.s32 %v3198
  %v3200 = vcvt.f32.s32 %v3194
  %v3201 = vshll.u32 %v3200, 16
  %v3202 = vadd.s32 %v3201, %v3199
  %v3203 = vand.u32 %v3117, 65535
  %v3204 = vshra.s32 %v3117, 16
  %v3205 = vcvt.s32.f32 %v3203
  %v3206 = vcvt.s32.f32 %v3204
  %3207 = vmax.xlane.f32.xlu0 %v3206
  %v3208 = vpop.xlane.xlu0 %3207
  %vm3209 = vcmp.eq.f32.partialorder %v3206, %v3208
  %v3210 = vsel %vm3209, %v3205, -inf
  %3211 = vmax.xlane.f32.xlu0 %v3210
  %v3212 = vpop.xlane.xlu0 %3211
  %v3213 = vcvt.f32.s32 %v3212
  %v3214 = vcvt.f32.s32 %v3208
  %v3215 = vshll.u32 %v3214, 16
  %v3216 = vadd.s32 %v3215, %v3213
  %v3217 = vand.u32 %v3118, 65535
  %v3218 = vshra.s32 %v3118, 16
  %v3219 = vcvt.s32.f32 %v3217
  %v3220 = vcvt.s32.f32 %v3218
  %3221 = vmax.xlane.f32.xlu0 %v3220
  %v3222 = vpop.xlane.xlu0 %3221
  %vm3223 = vcmp.eq.f32.partialorder %v3220, %v3222
  %v3224 = vsel %vm3223, %v3219, -inf
  %3225 = vmax.xlane.f32.xlu0 %v3224
  %v3226 = vpop.xlane.xlu0 %3225
  %v3227 = vcvt.f32.s32 %v3226
  %v3228 = vcvt.f32.s32 %v3222
  %v3229 = vshll.u32 %v3228, 16
  %v3230 = vadd.s32 %v3229, %v3227
  %vm3231 = vcmp.gt.s32.totalorder %v3132, %v3188
  %v3232 = vsel %vm3231, %v3132, %v3188
  %vm3233 = vcmp.gt.s32.totalorder %v3146, %v3202
  %v3234 = vsel %vm3233, %v3146, %v3202
  %vm3235 = vcmp.gt.s32.totalorder %v3160, %v3216
  %v3236 = vsel %vm3235, %v3160, %v3216
  %vm3237 = vcmp.gt.s32.totalorder %v3174, %v3230
  %v3238 = vsel %vm3237, %v3174, %v3230
  %vm3239 = vcmp.gt.s32.totalorder %v3232, %v3234
  %v3240 = vsel %vm3239, %v3232, %v3234
  %vm3241 = vcmp.gt.s32.totalorder %v3236, %v3238
  %v3242 = vsel %vm3241, %v3236, %v3238
  %vm3243 = vcmp.gt.s32.totalorder %v3240, %v3242
  %v3244 = vsel %vm3243, %v3240, %v3242
  %v3245 = vrot.slane %v3244, 4
  %vm3246 = vcmp.gt.s32.totalorder %v3244, %v3245
  %v3247 = vsel %vm3246, %v3244, %v3245
  %v3248 = vrot.slane %v3247, 2
  %vm3249 = vcmp.gt.s32.totalorder %v3247, %v3248
  %v3250 = vsel %vm3249, %v3247, %v3248
  %v3251 = vrot.slane %v3250, 1
  %vm3252 = vcmp.gt.s32.totalorder %v3250, %v3251
  %v3253 = vsel %vm3252, %v3250, %v3251
  %v3254 = vand.u32 %v3253, 8191
  %v3255 = vsub.s32 8191, %v3254
  %vm3256 = vcmp.eq.s32.totalorder %v30, 19
  %v3257 = vsel %vm3256, %v3255, %v3102
  %vm3258 = vcmp.eq.s32.totalorder %v30, %v3255
  %vm3259 = vcmp.eq.s32.totalorder %v31, %v3255
  %vm3260 = vcmp.eq.s32.totalorder %v32, %v3255
  %vm3261 = vcmp.eq.s32.totalorder %v33, %v3255
  %vm3262 = vcmp.eq.s32.totalorder %v34, %v3255
  %vm3263 = vcmp.eq.s32.totalorder %v35, %v3255
  %vm3264 = vcmp.eq.s32.totalorder %v36, %v3255
  %vm3265 = vcmp.eq.s32.totalorder %v37, %v3255
  %v3266 = vsel %vm3258, 2147483648, %v3111
  %v3267 = vsel %vm3259, 2147483648, %v3112
  %v3268 = vsel %vm3260, 2147483648, %v3113
  %v3269 = vsel %vm3261, 2147483648, %v3114
  %v3270 = vsel %vm3262, 2147483648, %v3115
  %v3271 = vsel %vm3263, 2147483648, %v3116
  %v3272 = vsel %vm3264, 2147483648, %v3117
  %v3273 = vsel %vm3265, 2147483648, %v3118
  %v3274 = vand.u32 %v3266, 65535
  %v3275 = vshra.s32 %v3266, 16
  %v3276 = vcvt.s32.f32 %v3274
  %v3277 = vcvt.s32.f32 %v3275
  %3278 = vmax.xlane.f32.xlu0 %v3277
  %v3279 = vpop.xlane.xlu0 %3278
  %vm3280 = vcmp.eq.f32.partialorder %v3277, %v3279
  %v3281 = vsel %vm3280, %v3276, -inf
  %3282 = vmax.xlane.f32.xlu0 %v3281
  %v3283 = vpop.xlane.xlu0 %3282
  %v3284 = vcvt.f32.s32 %v3283
  %v3285 = vcvt.f32.s32 %v3279
  %v3286 = vshll.u32 %v3285, 16
  %v3287 = vadd.s32 %v3286, %v3284
  %v3288 = vand.u32 %v3267, 65535
  %v3289 = vshra.s32 %v3267, 16
  %v3290 = vcvt.s32.f32 %v3288
  %v3291 = vcvt.s32.f32 %v3289
  %3292 = vmax.xlane.f32.xlu0 %v3291
  %v3293 = vpop.xlane.xlu0 %3292
  %vm3294 = vcmp.eq.f32.partialorder %v3291, %v3293
  %v3295 = vsel %vm3294, %v3290, -inf
  %3296 = vmax.xlane.f32.xlu0 %v3295
  %v3297 = vpop.xlane.xlu0 %3296
  %v3298 = vcvt.f32.s32 %v3297
  %v3299 = vcvt.f32.s32 %v3293
  %v3300 = vshll.u32 %v3299, 16
  %v3301 = vadd.s32 %v3300, %v3298
  %v3302 = vand.u32 %v3268, 65535
  %v3303 = vshra.s32 %v3268, 16
  %v3304 = vcvt.s32.f32 %v3302
  %v3305 = vcvt.s32.f32 %v3303
  %3306 = vmax.xlane.f32.xlu0 %v3305
  %v3307 = vpop.xlane.xlu0 %3306
  %vm3308 = vcmp.eq.f32.partialorder %v3305, %v3307
  %v3309 = vsel %vm3308, %v3304, -inf
  %3310 = vmax.xlane.f32.xlu0 %v3309
  %v3311 = vpop.xlane.xlu0 %3310
  %v3312 = vcvt.f32.s32 %v3311
  %v3313 = vcvt.f32.s32 %v3307
  %v3314 = vshll.u32 %v3313, 16
  %v3315 = vadd.s32 %v3314, %v3312
  %v3316 = vand.u32 %v3269, 65535
  %v3317 = vshra.s32 %v3269, 16
  %v3318 = vcvt.s32.f32 %v3316
  %v3319 = vcvt.s32.f32 %v3317
  %3320 = vmax.xlane.f32.xlu0 %v3319
  %v3321 = vpop.xlane.xlu0 %3320
  %vm3322 = vcmp.eq.f32.partialorder %v3319, %v3321
  %v3323 = vsel %vm3322, %v3318, -inf
  %3324 = vmax.xlane.f32.xlu0 %v3323
  %v3325 = vpop.xlane.xlu0 %3324
  %v3326 = vcvt.f32.s32 %v3325
  %v3327 = vcvt.f32.s32 %v3321
  %v3328 = vshll.u32 %v3327, 16
  %v3329 = vadd.s32 %v3328, %v3326
  %v3330 = vand.u32 %v3270, 65535
  %v3331 = vshra.s32 %v3270, 16
  %v3332 = vcvt.s32.f32 %v3330
  %v3333 = vcvt.s32.f32 %v3331
  %3334 = vmax.xlane.f32.xlu0 %v3333
  %v3335 = vpop.xlane.xlu0 %3334
  %vm3336 = vcmp.eq.f32.partialorder %v3333, %v3335
  %v3337 = vsel %vm3336, %v3332, -inf
  %3338 = vmax.xlane.f32.xlu0 %v3337
  %v3339 = vpop.xlane.xlu0 %3338
  %v3340 = vcvt.f32.s32 %v3339
  %v3341 = vcvt.f32.s32 %v3335
  %v3342 = vshll.u32 %v3341, 16
  %v3343 = vadd.s32 %v3342, %v3340
  %v3344 = vand.u32 %v3271, 65535
  %v3345 = vshra.s32 %v3271, 16
  %v3346 = vcvt.s32.f32 %v3344
  %v3347 = vcvt.s32.f32 %v3345
  %3348 = vmax.xlane.f32.xlu0 %v3347
  %v3349 = vpop.xlane.xlu0 %3348
  %vm3350 = vcmp.eq.f32.partialorder %v3347, %v3349
  %v3351 = vsel %vm3350, %v3346, -inf
  %3352 = vmax.xlane.f32.xlu0 %v3351
  %v3353 = vpop.xlane.xlu0 %3352
  %v3354 = vcvt.f32.s32 %v3353
  %v3355 = vcvt.f32.s32 %v3349
  %v3356 = vshll.u32 %v3355, 16
  %v3357 = vadd.s32 %v3356, %v3354
  %v3358 = vand.u32 %v3272, 65535
  %v3359 = vshra.s32 %v3272, 16
  %v3360 = vcvt.s32.f32 %v3358
  %v3361 = vcvt.s32.f32 %v3359
  %3362 = vmax.xlane.f32.xlu0 %v3361
  %v3363 = vpop.xlane.xlu0 %3362
  %vm3364 = vcmp.eq.f32.partialorder %v3361, %v3363
  %v3365 = vsel %vm3364, %v3360, -inf
  %3366 = vmax.xlane.f32.xlu0 %v3365
  %v3367 = vpop.xlane.xlu0 %3366
  %v3368 = vcvt.f32.s32 %v3367
  %v3369 = vcvt.f32.s32 %v3363
  %v3370 = vshll.u32 %v3369, 16
  %v3371 = vadd.s32 %v3370, %v3368
  %v3372 = vand.u32 %v3273, 65535
  %v3373 = vshra.s32 %v3273, 16
  %v3374 = vcvt.s32.f32 %v3372
  %v3375 = vcvt.s32.f32 %v3373
  %3376 = vmax.xlane.f32.xlu0 %v3375
  %v3377 = vpop.xlane.xlu0 %3376
  %vm3378 = vcmp.eq.f32.partialorder %v3375, %v3377
  %v3379 = vsel %vm3378, %v3374, -inf
  %3380 = vmax.xlane.f32.xlu0 %v3379
  %v3381 = vpop.xlane.xlu0 %3380
  %v3382 = vcvt.f32.s32 %v3381
  %v3383 = vcvt.f32.s32 %v3377
  %v3384 = vshll.u32 %v3383, 16
  %v3385 = vadd.s32 %v3384, %v3382
  %vm3386 = vcmp.gt.s32.totalorder %v3287, %v3343
  %v3387 = vsel %vm3386, %v3287, %v3343
  %vm3388 = vcmp.gt.s32.totalorder %v3301, %v3357
  %v3389 = vsel %vm3388, %v3301, %v3357
  %vm3390 = vcmp.gt.s32.totalorder %v3315, %v3371
  %v3391 = vsel %vm3390, %v3315, %v3371
  %vm3392 = vcmp.gt.s32.totalorder %v3329, %v3385
  %v3393 = vsel %vm3392, %v3329, %v3385
  %vm3394 = vcmp.gt.s32.totalorder %v3387, %v3389
  %v3395 = vsel %vm3394, %v3387, %v3389
  %vm3396 = vcmp.gt.s32.totalorder %v3391, %v3393
  %v3397 = vsel %vm3396, %v3391, %v3393
  %vm3398 = vcmp.gt.s32.totalorder %v3395, %v3397
  %v3399 = vsel %vm3398, %v3395, %v3397
  %v3400 = vrot.slane %v3399, 4
  %vm3401 = vcmp.gt.s32.totalorder %v3399, %v3400
  %v3402 = vsel %vm3401, %v3399, %v3400
  %v3403 = vrot.slane %v3402, 2
  %vm3404 = vcmp.gt.s32.totalorder %v3402, %v3403
  %v3405 = vsel %vm3404, %v3402, %v3403
  %v3406 = vrot.slane %v3405, 1
  %vm3407 = vcmp.gt.s32.totalorder %v3405, %v3406
  %v3408 = vsel %vm3407, %v3405, %v3406
  %v3409 = vand.u32 %v3408, 8191
  %v3410 = vsub.s32 8191, %v3409
  %vm3411 = vcmp.eq.s32.totalorder %v30, 20
  %v3412 = vsel %vm3411, %v3410, %v3257
  %vm3413 = vcmp.eq.s32.totalorder %v30, %v3410
  %vm3414 = vcmp.eq.s32.totalorder %v31, %v3410
  %vm3415 = vcmp.eq.s32.totalorder %v32, %v3410
  %vm3416 = vcmp.eq.s32.totalorder %v33, %v3410
  %vm3417 = vcmp.eq.s32.totalorder %v34, %v3410
  %vm3418 = vcmp.eq.s32.totalorder %v35, %v3410
  %vm3419 = vcmp.eq.s32.totalorder %v36, %v3410
  %vm3420 = vcmp.eq.s32.totalorder %v37, %v3410
  %v3421 = vsel %vm3413, 2147483648, %v3266
  %v3422 = vsel %vm3414, 2147483648, %v3267
  %v3423 = vsel %vm3415, 2147483648, %v3268
  %v3424 = vsel %vm3416, 2147483648, %v3269
  %v3425 = vsel %vm3417, 2147483648, %v3270
  %v3426 = vsel %vm3418, 2147483648, %v3271
  %v3427 = vsel %vm3419, 2147483648, %v3272
  %v3428 = vsel %vm3420, 2147483648, %v3273
  %v3429 = vand.u32 %v3421, 65535
  %v3430 = vshra.s32 %v3421, 16
  %v3431 = vcvt.s32.f32 %v3429
  %v3432 = vcvt.s32.f32 %v3430
  %3433 = vmax.xlane.f32.xlu0 %v3432
  %v3434 = vpop.xlane.xlu0 %3433
  %vm3435 = vcmp.eq.f32.partialorder %v3432, %v3434
  %v3436 = vsel %vm3435, %v3431, -inf
  %3437 = vmax.xlane.f32.xlu0 %v3436
  %v3438 = vpop.xlane.xlu0 %3437
  %v3439 = vcvt.f32.s32 %v3438
  %v3440 = vcvt.f32.s32 %v3434
  %v3441 = vshll.u32 %v3440, 16
  %v3442 = vadd.s32 %v3441, %v3439
  %v3443 = vand.u32 %v3422, 65535
  %v3444 = vshra.s32 %v3422, 16
  %v3445 = vcvt.s32.f32 %v3443
  %v3446 = vcvt.s32.f32 %v3444
  %3447 = vmax.xlane.f32.xlu0 %v3446
  %v3448 = vpop.xlane.xlu0 %3447
  %vm3449 = vcmp.eq.f32.partialorder %v3446, %v3448
  %v3450 = vsel %vm3449, %v3445, -inf
  %3451 = vmax.xlane.f32.xlu0 %v3450
  %v3452 = vpop.xlane.xlu0 %3451
  %v3453 = vcvt.f32.s32 %v3452
  %v3454 = vcvt.f32.s32 %v3448
  %v3455 = vshll.u32 %v3454, 16
  %v3456 = vadd.s32 %v3455, %v3453
  %v3457 = vand.u32 %v3423, 65535
  %v3458 = vshra.s32 %v3423, 16
  %v3459 = vcvt.s32.f32 %v3457
  %v3460 = vcvt.s32.f32 %v3458
  %3461 = vmax.xlane.f32.xlu0 %v3460
  %v3462 = vpop.xlane.xlu0 %3461
  %vm3463 = vcmp.eq.f32.partialorder %v3460, %v3462
  %v3464 = vsel %vm3463, %v3459, -inf
  %3465 = vmax.xlane.f32.xlu0 %v3464
  %v3466 = vpop.xlane.xlu0 %3465
  %v3467 = vcvt.f32.s32 %v3466
  %v3468 = vcvt.f32.s32 %v3462
  %v3469 = vshll.u32 %v3468, 16
  %v3470 = vadd.s32 %v3469, %v3467
  %v3471 = vand.u32 %v3424, 65535
  %v3472 = vshra.s32 %v3424, 16
  %v3473 = vcvt.s32.f32 %v3471
  %v3474 = vcvt.s32.f32 %v3472
  %3475 = vmax.xlane.f32.xlu0 %v3474
  %v3476 = vpop.xlane.xlu0 %3475
  %vm3477 = vcmp.eq.f32.partialorder %v3474, %v3476
  %v3478 = vsel %vm3477, %v3473, -inf
  %3479 = vmax.xlane.f32.xlu0 %v3478
  %v3480 = vpop.xlane.xlu0 %3479
  %v3481 = vcvt.f32.s32 %v3480
  %v3482 = vcvt.f32.s32 %v3476
  %v3483 = vshll.u32 %v3482, 16
  %v3484 = vadd.s32 %v3483, %v3481
  %v3485 = vand.u32 %v3425, 65535
  %v3486 = vshra.s32 %v3425, 16
  %v3487 = vcvt.s32.f32 %v3485
  %v3488 = vcvt.s32.f32 %v3486
  %3489 = vmax.xlane.f32.xlu0 %v3488
  %v3490 = vpop.xlane.xlu0 %3489
  %vm3491 = vcmp.eq.f32.partialorder %v3488, %v3490
  %v3492 = vsel %vm3491, %v3487, -inf
  %3493 = vmax.xlane.f32.xlu0 %v3492
  %v3494 = vpop.xlane.xlu0 %3493
  %v3495 = vcvt.f32.s32 %v3494
  %v3496 = vcvt.f32.s32 %v3490
  %v3497 = vshll.u32 %v3496, 16
  %v3498 = vadd.s32 %v3497, %v3495
  %v3499 = vand.u32 %v3426, 65535
  %v3500 = vshra.s32 %v3426, 16
  %v3501 = vcvt.s32.f32 %v3499
  %v3502 = vcvt.s32.f32 %v3500
  %3503 = vmax.xlane.f32.xlu0 %v3502
  %v3504 = vpop.xlane.xlu0 %3503
  %vm3505 = vcmp.eq.f32.partialorder %v3502, %v3504
  %v3506 = vsel %vm3505, %v3501, -inf
  %3507 = vmax.xlane.f32.xlu0 %v3506
  %v3508 = vpop.xlane.xlu0 %3507
  %v3509 = vcvt.f32.s32 %v3508
  %v3510 = vcvt.f32.s32 %v3504
  %v3511 = vshll.u32 %v3510, 16
  %v3512 = vadd.s32 %v3511, %v3509
  %v3513 = vand.u32 %v3427, 65535
  %v3514 = vshra.s32 %v3427, 16
  %v3515 = vcvt.s32.f32 %v3513
  %v3516 = vcvt.s32.f32 %v3514
  %3517 = vmax.xlane.f32.xlu0 %v3516
  %v3518 = vpop.xlane.xlu0 %3517
  %vm3519 = vcmp.eq.f32.partialorder %v3516, %v3518
  %v3520 = vsel %vm3519, %v3515, -inf
  %3521 = vmax.xlane.f32.xlu0 %v3520
  %v3522 = vpop.xlane.xlu0 %3521
  %v3523 = vcvt.f32.s32 %v3522
  %v3524 = vcvt.f32.s32 %v3518
  %v3525 = vshll.u32 %v3524, 16
  %v3526 = vadd.s32 %v3525, %v3523
  %v3527 = vand.u32 %v3428, 65535
  %v3528 = vshra.s32 %v3428, 16
  %v3529 = vcvt.s32.f32 %v3527
  %v3530 = vcvt.s32.f32 %v3528
  %3531 = vmax.xlane.f32.xlu0 %v3530
  %v3532 = vpop.xlane.xlu0 %3531
  %vm3533 = vcmp.eq.f32.partialorder %v3530, %v3532
  %v3534 = vsel %vm3533, %v3529, -inf
  %3535 = vmax.xlane.f32.xlu0 %v3534
  %v3536 = vpop.xlane.xlu0 %3535
  %v3537 = vcvt.f32.s32 %v3536
  %v3538 = vcvt.f32.s32 %v3532
  %v3539 = vshll.u32 %v3538, 16
  %v3540 = vadd.s32 %v3539, %v3537
  %vm3541 = vcmp.gt.s32.totalorder %v3442, %v3498
  %v3542 = vsel %vm3541, %v3442, %v3498
  %vm3543 = vcmp.gt.s32.totalorder %v3456, %v3512
  %v3544 = vsel %vm3543, %v3456, %v3512
  %vm3545 = vcmp.gt.s32.totalorder %v3470, %v3526
  %v3546 = vsel %vm3545, %v3470, %v3526
  %vm3547 = vcmp.gt.s32.totalorder %v3484, %v3540
  %v3548 = vsel %vm3547, %v3484, %v3540
  %vm3549 = vcmp.gt.s32.totalorder %v3542, %v3544
  %v3550 = vsel %vm3549, %v3542, %v3544
  %vm3551 = vcmp.gt.s32.totalorder %v3546, %v3548
  %v3552 = vsel %vm3551, %v3546, %v3548
  %vm3553 = vcmp.gt.s32.totalorder %v3550, %v3552
  %v3554 = vsel %vm3553, %v3550, %v3552
  %v3555 = vrot.slane %v3554, 4
  %vm3556 = vcmp.gt.s32.totalorder %v3554, %v3555
  %v3557 = vsel %vm3556, %v3554, %v3555
  %v3558 = vrot.slane %v3557, 2
  %vm3559 = vcmp.gt.s32.totalorder %v3557, %v3558
  %v3560 = vsel %vm3559, %v3557, %v3558
  %v3561 = vrot.slane %v3560, 1
  %vm3562 = vcmp.gt.s32.totalorder %v3560, %v3561
  %v3563 = vsel %vm3562, %v3560, %v3561
  %v3564 = vand.u32 %v3563, 8191
  %v3565 = vsub.s32 8191, %v3564
  %vm3566 = vcmp.eq.s32.totalorder %v30, 21
  %v3567 = vsel %vm3566, %v3565, %v3412
  %vm3568 = vcmp.eq.s32.totalorder %v30, %v3565
  %vm3569 = vcmp.eq.s32.totalorder %v31, %v3565
  %vm3570 = vcmp.eq.s32.totalorder %v32, %v3565
  %vm3571 = vcmp.eq.s32.totalorder %v33, %v3565
  %vm3572 = vcmp.eq.s32.totalorder %v34, %v3565
  %vm3573 = vcmp.eq.s32.totalorder %v35, %v3565
  %vm3574 = vcmp.eq.s32.totalorder %v36, %v3565
  %vm3575 = vcmp.eq.s32.totalorder %v37, %v3565
  %v3576 = vsel %vm3568, 2147483648, %v3421
  %v3577 = vsel %vm3569, 2147483648, %v3422
  %v3578 = vsel %vm3570, 2147483648, %v3423
  %v3579 = vsel %vm3571, 2147483648, %v3424
  %v3580 = vsel %vm3572, 2147483648, %v3425
  %v3581 = vsel %vm3573, 2147483648, %v3426
  %v3582 = vsel %vm3574, 2147483648, %v3427
  %v3583 = vsel %vm3575, 2147483648, %v3428
  %v3584 = vand.u32 %v3576, 65535
  %v3585 = vshra.s32 %v3576, 16
  %v3586 = vcvt.s32.f32 %v3584
  %v3587 = vcvt.s32.f32 %v3585
  %3588 = vmax.xlane.f32.xlu0 %v3587
  %v3589 = vpop.xlane.xlu0 %3588
  %vm3590 = vcmp.eq.f32.partialorder %v3587, %v3589
  %v3591 = vsel %vm3590, %v3586, -inf
  %3592 = vmax.xlane.f32.xlu0 %v3591
  %v3593 = vpop.xlane.xlu0 %3592
  %v3594 = vcvt.f32.s32 %v3593
  %v3595 = vcvt.f32.s32 %v3589
  %v3596 = vshll.u32 %v3595, 16
  %v3597 = vadd.s32 %v3596, %v3594
  %v3598 = vand.u32 %v3577, 65535
  %v3599 = vshra.s32 %v3577, 16
  %v3600 = vcvt.s32.f32 %v3598
  %v3601 = vcvt.s32.f32 %v3599
  %3602 = vmax.xlane.f32.xlu0 %v3601
  %v3603 = vpop.xlane.xlu0 %3602
  %vm3604 = vcmp.eq.f32.partialorder %v3601, %v3603
  %v3605 = vsel %vm3604, %v3600, -inf
  %3606 = vmax.xlane.f32.xlu0 %v3605
  %v3607 = vpop.xlane.xlu0 %3606
  %v3608 = vcvt.f32.s32 %v3607
  %v3609 = vcvt.f32.s32 %v3603
  %v3610 = vshll.u32 %v3609, 16
  %v3611 = vadd.s32 %v3610, %v3608
  %v3612 = vand.u32 %v3578, 65535
  %v3613 = vshra.s32 %v3578, 16
  %v3614 = vcvt.s32.f32 %v3612
  %v3615 = vcvt.s32.f32 %v3613
  %3616 = vmax.xlane.f32.xlu0 %v3615
  %v3617 = vpop.xlane.xlu0 %3616
  %vm3618 = vcmp.eq.f32.partialorder %v3615, %v3617
  %v3619 = vsel %vm3618, %v3614, -inf
  %3620 = vmax.xlane.f32.xlu0 %v3619
  %v3621 = vpop.xlane.xlu0 %3620
  %v3622 = vcvt.f32.s32 %v3621
  %v3623 = vcvt.f32.s32 %v3617
  %v3624 = vshll.u32 %v3623, 16
  %v3625 = vadd.s32 %v3624, %v3622
  %v3626 = vand.u32 %v3579, 65535
  %v3627 = vshra.s32 %v3579, 16
  %v3628 = vcvt.s32.f32 %v3626
  %v3629 = vcvt.s32.f32 %v3627
  %3630 = vmax.xlane.f32.xlu0 %v3629
  %v3631 = vpop.xlane.xlu0 %3630
  %vm3632 = vcmp.eq.f32.partialorder %v3629, %v3631
  %v3633 = vsel %vm3632, %v3628, -inf
  %3634 = vmax.xlane.f32.xlu0 %v3633
  %v3635 = vpop.xlane.xlu0 %3634
  %v3636 = vcvt.f32.s32 %v3635
  %v3637 = vcvt.f32.s32 %v3631
  %v3638 = vshll.u32 %v3637, 16
  %v3639 = vadd.s32 %v3638, %v3636
  %v3640 = vand.u32 %v3580, 65535
  %v3641 = vshra.s32 %v3580, 16
  %v3642 = vcvt.s32.f32 %v3640
  %v3643 = vcvt.s32.f32 %v3641
  %3644 = vmax.xlane.f32.xlu0 %v3643
  %v3645 = vpop.xlane.xlu0 %3644
  %vm3646 = vcmp.eq.f32.partialorder %v3643, %v3645
  %v3647 = vsel %vm3646, %v3642, -inf
  %3648 = vmax.xlane.f32.xlu0 %v3647
  %v3649 = vpop.xlane.xlu0 %3648
  %v3650 = vcvt.f32.s32 %v3649
  %v3651 = vcvt.f32.s32 %v3645
  %v3652 = vshll.u32 %v3651, 16
  %v3653 = vadd.s32 %v3652, %v3650
  %v3654 = vand.u32 %v3581, 65535
  %v3655 = vshra.s32 %v3581, 16
  %v3656 = vcvt.s32.f32 %v3654
  %v3657 = vcvt.s32.f32 %v3655
  %3658 = vmax.xlane.f32.xlu0 %v3657
  %v3659 = vpop.xlane.xlu0 %3658
  %vm3660 = vcmp.eq.f32.partialorder %v3657, %v3659
  %v3661 = vsel %vm3660, %v3656, -inf
  %3662 = vmax.xlane.f32.xlu0 %v3661
  %v3663 = vpop.xlane.xlu0 %3662
  %v3664 = vcvt.f32.s32 %v3663
  %v3665 = vcvt.f32.s32 %v3659
  %v3666 = vshll.u32 %v3665, 16
  %v3667 = vadd.s32 %v3666, %v3664
  %v3668 = vand.u32 %v3582, 65535
  %v3669 = vshra.s32 %v3582, 16
  %v3670 = vcvt.s32.f32 %v3668
  %v3671 = vcvt.s32.f32 %v3669
  %3672 = vmax.xlane.f32.xlu0 %v3671
  %v3673 = vpop.xlane.xlu0 %3672
  %vm3674 = vcmp.eq.f32.partialorder %v3671, %v3673
  %v3675 = vsel %vm3674, %v3670, -inf
  %3676 = vmax.xlane.f32.xlu0 %v3675
  %v3677 = vpop.xlane.xlu0 %3676
  %v3678 = vcvt.f32.s32 %v3677
  %v3679 = vcvt.f32.s32 %v3673
  %v3680 = vshll.u32 %v3679, 16
  %v3681 = vadd.s32 %v3680, %v3678
  %v3682 = vand.u32 %v3583, 65535
  %v3683 = vshra.s32 %v3583, 16
  %v3684 = vcvt.s32.f32 %v3682
  %v3685 = vcvt.s32.f32 %v3683
  %3686 = vmax.xlane.f32.xlu0 %v3685
  %v3687 = vpop.xlane.xlu0 %3686
  %vm3688 = vcmp.eq.f32.partialorder %v3685, %v3687
  %v3689 = vsel %vm3688, %v3684, -inf
  %3690 = vmax.xlane.f32.xlu0 %v3689
  %v3691 = vpop.xlane.xlu0 %3690
  %v3692 = vcvt.f32.s32 %v3691
  %v3693 = vcvt.f32.s32 %v3687
  %v3694 = vshll.u32 %v3693, 16
  %v3695 = vadd.s32 %v3694, %v3692
  %vm3696 = vcmp.gt.s32.totalorder %v3597, %v3653
  %v3697 = vsel %vm3696, %v3597, %v3653
  %vm3698 = vcmp.gt.s32.totalorder %v3611, %v3667
  %v3699 = vsel %vm3698, %v3611, %v3667
  %vm3700 = vcmp.gt.s32.totalorder %v3625, %v3681
  %v3701 = vsel %vm3700, %v3625, %v3681
  %vm3702 = vcmp.gt.s32.totalorder %v3639, %v3695
  %v3703 = vsel %vm3702, %v3639, %v3695
  %vm3704 = vcmp.gt.s32.totalorder %v3697, %v3699
  %v3705 = vsel %vm3704, %v3697, %v3699
  %vm3706 = vcmp.gt.s32.totalorder %v3701, %v3703
  %v3707 = vsel %vm3706, %v3701, %v3703
  %vm3708 = vcmp.gt.s32.totalorder %v3705, %v3707
  %v3709 = vsel %vm3708, %v3705, %v3707
  %v3710 = vrot.slane %v3709, 4
  %vm3711 = vcmp.gt.s32.totalorder %v3709, %v3710
  %v3712 = vsel %vm3711, %v3709, %v3710
  %v3713 = vrot.slane %v3712, 2
  %vm3714 = vcmp.gt.s32.totalorder %v3712, %v3713
  %v3715 = vsel %vm3714, %v3712, %v3713
  %v3716 = vrot.slane %v3715, 1
  %vm3717 = vcmp.gt.s32.totalorder %v3715, %v3716
  %v3718 = vsel %vm3717, %v3715, %v3716
  %v3719 = vand.u32 %v3718, 8191
  %v3720 = vsub.s32 8191, %v3719
  %vm3721 = vcmp.eq.s32.totalorder %v30, 22
  %v3722 = vsel %vm3721, %v3720, %v3567
  %vm3723 = vcmp.eq.s32.totalorder %v30, %v3720
  %vm3724 = vcmp.eq.s32.totalorder %v31, %v3720
  %vm3725 = vcmp.eq.s32.totalorder %v32, %v3720
  %vm3726 = vcmp.eq.s32.totalorder %v33, %v3720
  %vm3727 = vcmp.eq.s32.totalorder %v34, %v3720
  %vm3728 = vcmp.eq.s32.totalorder %v35, %v3720
  %vm3729 = vcmp.eq.s32.totalorder %v36, %v3720
  %vm3730 = vcmp.eq.s32.totalorder %v37, %v3720
  %v3731 = vsel %vm3723, 2147483648, %v3576
  %v3732 = vsel %vm3724, 2147483648, %v3577
  %v3733 = vsel %vm3725, 2147483648, %v3578
  %v3734 = vsel %vm3726, 2147483648, %v3579
  %v3735 = vsel %vm3727, 2147483648, %v3580
  %v3736 = vsel %vm3728, 2147483648, %v3581
  %v3737 = vsel %vm3729, 2147483648, %v3582
  %v3738 = vsel %vm3730, 2147483648, %v3583
  %v3739 = vand.u32 %v3731, 65535
  %v3740 = vshra.s32 %v3731, 16
  %v3741 = vcvt.s32.f32 %v3739
  %v3742 = vcvt.s32.f32 %v3740
  %3743 = vmax.xlane.f32.xlu0 %v3742
  %v3744 = vpop.xlane.xlu0 %3743
  %vm3745 = vcmp.eq.f32.partialorder %v3742, %v3744
  %v3746 = vsel %vm3745, %v3741, -inf
  %3747 = vmax.xlane.f32.xlu0 %v3746
  %v3748 = vpop.xlane.xlu0 %3747
  %v3749 = vcvt.f32.s32 %v3748
  %v3750 = vcvt.f32.s32 %v3744
  %v3751 = vshll.u32 %v3750, 16
  %v3752 = vadd.s32 %v3751, %v3749
  %v3753 = vand.u32 %v3732, 65535
  %v3754 = vshra.s32 %v3732, 16
  %v3755 = vcvt.s32.f32 %v3753
  %v3756 = vcvt.s32.f32 %v3754
  %3757 = vmax.xlane.f32.xlu0 %v3756
  %v3758 = vpop.xlane.xlu0 %3757
  %vm3759 = vcmp.eq.f32.partialorder %v3756, %v3758
  %v3760 = vsel %vm3759, %v3755, -inf
  %3761 = vmax.xlane.f32.xlu0 %v3760
  %v3762 = vpop.xlane.xlu0 %3761
  %v3763 = vcvt.f32.s32 %v3762
  %v3764 = vcvt.f32.s32 %v3758
  %v3765 = vshll.u32 %v3764, 16
  %v3766 = vadd.s32 %v3765, %v3763
  %v3767 = vand.u32 %v3733, 65535
  %v3768 = vshra.s32 %v3733, 16
  %v3769 = vcvt.s32.f32 %v3767
  %v3770 = vcvt.s32.f32 %v3768
  %3771 = vmax.xlane.f32.xlu0 %v3770
  %v3772 = vpop.xlane.xlu0 %3771
  %vm3773 = vcmp.eq.f32.partialorder %v3770, %v3772
  %v3774 = vsel %vm3773, %v3769, -inf
  %3775 = vmax.xlane.f32.xlu0 %v3774
  %v3776 = vpop.xlane.xlu0 %3775
  %v3777 = vcvt.f32.s32 %v3776
  %v3778 = vcvt.f32.s32 %v3772
  %v3779 = vshll.u32 %v3778, 16
  %v3780 = vadd.s32 %v3779, %v3777
  %v3781 = vand.u32 %v3734, 65535
  %v3782 = vshra.s32 %v3734, 16
  %v3783 = vcvt.s32.f32 %v3781
  %v3784 = vcvt.s32.f32 %v3782
  %3785 = vmax.xlane.f32.xlu0 %v3784
  %v3786 = vpop.xlane.xlu0 %3785
  %vm3787 = vcmp.eq.f32.partialorder %v3784, %v3786
  %v3788 = vsel %vm3787, %v3783, -inf
  %3789 = vmax.xlane.f32.xlu0 %v3788
  %v3790 = vpop.xlane.xlu0 %3789
  %v3791 = vcvt.f32.s32 %v3790
  %v3792 = vcvt.f32.s32 %v3786
  %v3793 = vshll.u32 %v3792, 16
  %v3794 = vadd.s32 %v3793, %v3791
  %v3795 = vand.u32 %v3735, 65535
  %v3796 = vshra.s32 %v3735, 16
  %v3797 = vcvt.s32.f32 %v3795
  %v3798 = vcvt.s32.f32 %v3796
  %3799 = vmax.xlane.f32.xlu0 %v3798
  %v3800 = vpop.xlane.xlu0 %3799
  %vm3801 = vcmp.eq.f32.partialorder %v3798, %v3800
  %v3802 = vsel %vm3801, %v3797, -inf
  %3803 = vmax.xlane.f32.xlu0 %v3802
  %v3804 = vpop.xlane.xlu0 %3803
  %v3805 = vcvt.f32.s32 %v3804
  %v3806 = vcvt.f32.s32 %v3800
  %v3807 = vshll.u32 %v3806, 16
  %v3808 = vadd.s32 %v3807, %v3805
  %v3809 = vand.u32 %v3736, 65535
  %v3810 = vshra.s32 %v3736, 16
  %v3811 = vcvt.s32.f32 %v3809
  %v3812 = vcvt.s32.f32 %v3810
  %3813 = vmax.xlane.f32.xlu0 %v3812
  %v3814 = vpop.xlane.xlu0 %3813
  %vm3815 = vcmp.eq.f32.partialorder %v3812, %v3814
  %v3816 = vsel %vm3815, %v3811, -inf
  %3817 = vmax.xlane.f32.xlu0 %v3816
  %v3818 = vpop.xlane.xlu0 %3817
  %v3819 = vcvt.f32.s32 %v3818
  %v3820 = vcvt.f32.s32 %v3814
  %v3821 = vshll.u32 %v3820, 16
  %v3822 = vadd.s32 %v3821, %v3819
  %v3823 = vand.u32 %v3737, 65535
  %v3824 = vshra.s32 %v3737, 16
  %v3825 = vcvt.s32.f32 %v3823
  %v3826 = vcvt.s32.f32 %v3824
  %3827 = vmax.xlane.f32.xlu0 %v3826
  %v3828 = vpop.xlane.xlu0 %3827
  %vm3829 = vcmp.eq.f32.partialorder %v3826, %v3828
  %v3830 = vsel %vm3829, %v3825, -inf
  %3831 = vmax.xlane.f32.xlu0 %v3830
  %v3832 = vpop.xlane.xlu0 %3831
  %v3833 = vcvt.f32.s32 %v3832
  %v3834 = vcvt.f32.s32 %v3828
  %v3835 = vshll.u32 %v3834, 16
  %v3836 = vadd.s32 %v3835, %v3833
  %v3837 = vand.u32 %v3738, 65535
  %v3838 = vshra.s32 %v3738, 16
  %v3839 = vcvt.s32.f32 %v3837
  %v3840 = vcvt.s32.f32 %v3838
  %3841 = vmax.xlane.f32.xlu0 %v3840
  %v3842 = vpop.xlane.xlu0 %3841
  %vm3843 = vcmp.eq.f32.partialorder %v3840, %v3842
  %v3844 = vsel %vm3843, %v3839, -inf
  %3845 = vmax.xlane.f32.xlu0 %v3844
  %v3846 = vpop.xlane.xlu0 %3845
  %v3847 = vcvt.f32.s32 %v3846
  %v3848 = vcvt.f32.s32 %v3842
  %v3849 = vshll.u32 %v3848, 16
  %v3850 = vadd.s32 %v3849, %v3847
  %vm3851 = vcmp.gt.s32.totalorder %v3752, %v3808
  %v3852 = vsel %vm3851, %v3752, %v3808
  %vm3853 = vcmp.gt.s32.totalorder %v3766, %v3822
  %v3854 = vsel %vm3853, %v3766, %v3822
  %vm3855 = vcmp.gt.s32.totalorder %v3780, %v3836
  %v3856 = vsel %vm3855, %v3780, %v3836
  %vm3857 = vcmp.gt.s32.totalorder %v3794, %v3850
  %v3858 = vsel %vm3857, %v3794, %v3850
  %vm3859 = vcmp.gt.s32.totalorder %v3852, %v3854
  %v3860 = vsel %vm3859, %v3852, %v3854
  %vm3861 = vcmp.gt.s32.totalorder %v3856, %v3858
  %v3862 = vsel %vm3861, %v3856, %v3858
  %vm3863 = vcmp.gt.s32.totalorder %v3860, %v3862
  %v3864 = vsel %vm3863, %v3860, %v3862
  %v3865 = vrot.slane %v3864, 4
  %vm3866 = vcmp.gt.s32.totalorder %v3864, %v3865
  %v3867 = vsel %vm3866, %v3864, %v3865
  %v3868 = vrot.slane %v3867, 2
  %vm3869 = vcmp.gt.s32.totalorder %v3867, %v3868
  %v3870 = vsel %vm3869, %v3867, %v3868
  %v3871 = vrot.slane %v3870, 1
  %vm3872 = vcmp.gt.s32.totalorder %v3870, %v3871
  %v3873 = vsel %vm3872, %v3870, %v3871
  %v3874 = vand.u32 %v3873, 8191
  %v3875 = vsub.s32 8191, %v3874
  %vm3876 = vcmp.eq.s32.totalorder %v30, 23
  %v3877 = vsel %vm3876, %v3875, %v3722
  %vm3878 = vcmp.eq.s32.totalorder %v30, %v3875
  %vm3879 = vcmp.eq.s32.totalorder %v31, %v3875
  %vm3880 = vcmp.eq.s32.totalorder %v32, %v3875
  %vm3881 = vcmp.eq.s32.totalorder %v33, %v3875
  %vm3882 = vcmp.eq.s32.totalorder %v34, %v3875
  %vm3883 = vcmp.eq.s32.totalorder %v35, %v3875
  %vm3884 = vcmp.eq.s32.totalorder %v36, %v3875
  %vm3885 = vcmp.eq.s32.totalorder %v37, %v3875
  %v3886 = vsel %vm3878, 2147483648, %v3731
  %v3887 = vsel %vm3879, 2147483648, %v3732
  %v3888 = vsel %vm3880, 2147483648, %v3733
  %v3889 = vsel %vm3881, 2147483648, %v3734
  %v3890 = vsel %vm3882, 2147483648, %v3735
  %v3891 = vsel %vm3883, 2147483648, %v3736
  %v3892 = vsel %vm3884, 2147483648, %v3737
  %v3893 = vsel %vm3885, 2147483648, %v3738
  %v3894 = vand.u32 %v3886, 65535
  %v3895 = vshra.s32 %v3886, 16
  %v3896 = vcvt.s32.f32 %v3894
  %v3897 = vcvt.s32.f32 %v3895
  %3898 = vmax.xlane.f32.xlu0 %v3897
  %v3899 = vpop.xlane.xlu0 %3898
  %vm3900 = vcmp.eq.f32.partialorder %v3897, %v3899
  %v3901 = vsel %vm3900, %v3896, -inf
  %3902 = vmax.xlane.f32.xlu0 %v3901
  %v3903 = vpop.xlane.xlu0 %3902
  %v3904 = vcvt.f32.s32 %v3903
  %v3905 = vcvt.f32.s32 %v3899
  %v3906 = vshll.u32 %v3905, 16
  %v3907 = vadd.s32 %v3906, %v3904
  %v3908 = vand.u32 %v3887, 65535
  %v3909 = vshra.s32 %v3887, 16
  %v3910 = vcvt.s32.f32 %v3908
  %v3911 = vcvt.s32.f32 %v3909
  %3912 = vmax.xlane.f32.xlu0 %v3911
  %v3913 = vpop.xlane.xlu0 %3912
  %vm3914 = vcmp.eq.f32.partialorder %v3911, %v3913
  %v3915 = vsel %vm3914, %v3910, -inf
  %3916 = vmax.xlane.f32.xlu0 %v3915
  %v3917 = vpop.xlane.xlu0 %3916
  %v3918 = vcvt.f32.s32 %v3917
  %v3919 = vcvt.f32.s32 %v3913
  %v3920 = vshll.u32 %v3919, 16
  %v3921 = vadd.s32 %v3920, %v3918
  %v3922 = vand.u32 %v3888, 65535
  %v3923 = vshra.s32 %v3888, 16
  %v3924 = vcvt.s32.f32 %v3922
  %v3925 = vcvt.s32.f32 %v3923
  %3926 = vmax.xlane.f32.xlu0 %v3925
  %v3927 = vpop.xlane.xlu0 %3926
  %vm3928 = vcmp.eq.f32.partialorder %v3925, %v3927
  %v3929 = vsel %vm3928, %v3924, -inf
  %3930 = vmax.xlane.f32.xlu0 %v3929
  %v3931 = vpop.xlane.xlu0 %3930
  %v3932 = vcvt.f32.s32 %v3931
  %v3933 = vcvt.f32.s32 %v3927
  %v3934 = vshll.u32 %v3933, 16
  %v3935 = vadd.s32 %v3934, %v3932
  %v3936 = vand.u32 %v3889, 65535
  %v3937 = vshra.s32 %v3889, 16
  %v3938 = vcvt.s32.f32 %v3936
  %v3939 = vcvt.s32.f32 %v3937
  %3940 = vmax.xlane.f32.xlu0 %v3939
  %v3941 = vpop.xlane.xlu0 %3940
  %vm3942 = vcmp.eq.f32.partialorder %v3939, %v3941
  %v3943 = vsel %vm3942, %v3938, -inf
  %3944 = vmax.xlane.f32.xlu0 %v3943
  %v3945 = vpop.xlane.xlu0 %3944
  %v3946 = vcvt.f32.s32 %v3945
  %v3947 = vcvt.f32.s32 %v3941
  %v3948 = vshll.u32 %v3947, 16
  %v3949 = vadd.s32 %v3948, %v3946
  %v3950 = vand.u32 %v3890, 65535
  %v3951 = vshra.s32 %v3890, 16
  %v3952 = vcvt.s32.f32 %v3950
  %v3953 = vcvt.s32.f32 %v3951
  %3954 = vmax.xlane.f32.xlu0 %v3953
  %v3955 = vpop.xlane.xlu0 %3954
  %vm3956 = vcmp.eq.f32.partialorder %v3953, %v3955
  %v3957 = vsel %vm3956, %v3952, -inf
  %3958 = vmax.xlane.f32.xlu0 %v3957
  %v3959 = vpop.xlane.xlu0 %3958
  %v3960 = vcvt.f32.s32 %v3959
  %v3961 = vcvt.f32.s32 %v3955
  %v3962 = vshll.u32 %v3961, 16
  %v3963 = vadd.s32 %v3962, %v3960
  %v3964 = vand.u32 %v3891, 65535
  %v3965 = vshra.s32 %v3891, 16
  %v3966 = vcvt.s32.f32 %v3964
  %v3967 = vcvt.s32.f32 %v3965
  %3968 = vmax.xlane.f32.xlu0 %v3967
  %v3969 = vpop.xlane.xlu0 %3968
  %vm3970 = vcmp.eq.f32.partialorder %v3967, %v3969
  %v3971 = vsel %vm3970, %v3966, -inf
  %3972 = vmax.xlane.f32.xlu0 %v3971
  %v3973 = vpop.xlane.xlu0 %3972
  %v3974 = vcvt.f32.s32 %v3973
  %v3975 = vcvt.f32.s32 %v3969
  %v3976 = vshll.u32 %v3975, 16
  %v3977 = vadd.s32 %v3976, %v3974
  %v3978 = vand.u32 %v3892, 65535
  %v3979 = vshra.s32 %v3892, 16
  %v3980 = vcvt.s32.f32 %v3978
  %v3981 = vcvt.s32.f32 %v3979
  %3982 = vmax.xlane.f32.xlu0 %v3981
  %v3983 = vpop.xlane.xlu0 %3982
  %vm3984 = vcmp.eq.f32.partialorder %v3981, %v3983
  %v3985 = vsel %vm3984, %v3980, -inf
  %3986 = vmax.xlane.f32.xlu0 %v3985
  %v3987 = vpop.xlane.xlu0 %3986
  %v3988 = vcvt.f32.s32 %v3987
  %v3989 = vcvt.f32.s32 %v3983
  %v3990 = vshll.u32 %v3989, 16
  %v3991 = vadd.s32 %v3990, %v3988
  %v3992 = vand.u32 %v3893, 65535
  %v3993 = vshra.s32 %v3893, 16
  %v3994 = vcvt.s32.f32 %v3992
  %v3995 = vcvt.s32.f32 %v3993
  %3996 = vmax.xlane.f32.xlu0 %v3995
  %v3997 = vpop.xlane.xlu0 %3996
  %vm3998 = vcmp.eq.f32.partialorder %v3995, %v3997
  %v3999 = vsel %vm3998, %v3994, -inf
  %4000 = vmax.xlane.f32.xlu0 %v3999
  %v4001 = vpop.xlane.xlu0 %4000
  %v4002 = vcvt.f32.s32 %v4001
  %v4003 = vcvt.f32.s32 %v3997
  %v4004 = vshll.u32 %v4003, 16
  %v4005 = vadd.s32 %v4004, %v4002
  %vm4006 = vcmp.gt.s32.totalorder %v3907, %v3963
  %v4007 = vsel %vm4006, %v3907, %v3963
  %vm4008 = vcmp.gt.s32.totalorder %v3921, %v3977
  %v4009 = vsel %vm4008, %v3921, %v3977
  %vm4010 = vcmp.gt.s32.totalorder %v3935, %v3991
  %v4011 = vsel %vm4010, %v3935, %v3991
  %vm4012 = vcmp.gt.s32.totalorder %v3949, %v4005
  %v4013 = vsel %vm4012, %v3949, %v4005
  %vm4014 = vcmp.gt.s32.totalorder %v4007, %v4009
  %v4015 = vsel %vm4014, %v4007, %v4009
  %vm4016 = vcmp.gt.s32.totalorder %v4011, %v4013
  %v4017 = vsel %vm4016, %v4011, %v4013
  %vm4018 = vcmp.gt.s32.totalorder %v4015, %v4017
  %v4019 = vsel %vm4018, %v4015, %v4017
  %v4020 = vrot.slane %v4019, 4
  %vm4021 = vcmp.gt.s32.totalorder %v4019, %v4020
  %v4022 = vsel %vm4021, %v4019, %v4020
  %v4023 = vrot.slane %v4022, 2
  %vm4024 = vcmp.gt.s32.totalorder %v4022, %v4023
  %v4025 = vsel %vm4024, %v4022, %v4023
  %v4026 = vrot.slane %v4025, 1
  %vm4027 = vcmp.gt.s32.totalorder %v4025, %v4026
  %v4028 = vsel %vm4027, %v4025, %v4026
  %v4029 = vand.u32 %v4028, 8191
  %v4030 = vsub.s32 8191, %v4029
  %vm4031 = vcmp.eq.s32.totalorder %v30, 24
  %v4032 = vsel %vm4031, %v4030, %v3877
  %vm4033 = vcmp.eq.s32.totalorder %v30, %v4030
  %vm4034 = vcmp.eq.s32.totalorder %v31, %v4030
  %vm4035 = vcmp.eq.s32.totalorder %v32, %v4030
  %vm4036 = vcmp.eq.s32.totalorder %v33, %v4030
  %vm4037 = vcmp.eq.s32.totalorder %v34, %v4030
  %vm4038 = vcmp.eq.s32.totalorder %v35, %v4030
  %vm4039 = vcmp.eq.s32.totalorder %v36, %v4030
  %vm4040 = vcmp.eq.s32.totalorder %v37, %v4030
  %v4041 = vsel %vm4033, 2147483648, %v3886
  %v4042 = vsel %vm4034, 2147483648, %v3887
  %v4043 = vsel %vm4035, 2147483648, %v3888
  %v4044 = vsel %vm4036, 2147483648, %v3889
  %v4045 = vsel %vm4037, 2147483648, %v3890
  %v4046 = vsel %vm4038, 2147483648, %v3891
  %v4047 = vsel %vm4039, 2147483648, %v3892
  %v4048 = vsel %vm4040, 2147483648, %v3893
  %v4049 = vand.u32 %v4041, 65535
  %v4050 = vshra.s32 %v4041, 16
  %v4051 = vcvt.s32.f32 %v4049
  %v4052 = vcvt.s32.f32 %v4050
  %4053 = vmax.xlane.f32.xlu0 %v4052
  %v4054 = vpop.xlane.xlu0 %4053
  %vm4055 = vcmp.eq.f32.partialorder %v4052, %v4054
  %v4056 = vsel %vm4055, %v4051, -inf
  %4057 = vmax.xlane.f32.xlu0 %v4056
  %v4058 = vpop.xlane.xlu0 %4057
  %v4059 = vcvt.f32.s32 %v4058
  %v4060 = vcvt.f32.s32 %v4054
  %v4061 = vshll.u32 %v4060, 16
  %v4062 = vadd.s32 %v4061, %v4059
  %v4063 = vand.u32 %v4042, 65535
  %v4064 = vshra.s32 %v4042, 16
  %v4065 = vcvt.s32.f32 %v4063
  %v4066 = vcvt.s32.f32 %v4064
  %4067 = vmax.xlane.f32.xlu0 %v4066
  %v4068 = vpop.xlane.xlu0 %4067
  %vm4069 = vcmp.eq.f32.partialorder %v4066, %v4068
  %v4070 = vsel %vm4069, %v4065, -inf
  %4071 = vmax.xlane.f32.xlu0 %v4070
  %v4072 = vpop.xlane.xlu0 %4071
  %v4073 = vcvt.f32.s32 %v4072
  %v4074 = vcvt.f32.s32 %v4068
  %v4075 = vshll.u32 %v4074, 16
  %v4076 = vadd.s32 %v4075, %v4073
  %v4077 = vand.u32 %v4043, 65535
  %v4078 = vshra.s32 %v4043, 16
  %v4079 = vcvt.s32.f32 %v4077
  %v4080 = vcvt.s32.f32 %v4078
  %4081 = vmax.xlane.f32.xlu0 %v4080
  %v4082 = vpop.xlane.xlu0 %4081
  %vm4083 = vcmp.eq.f32.partialorder %v4080, %v4082
  %v4084 = vsel %vm4083, %v4079, -inf
  %4085 = vmax.xlane.f32.xlu0 %v4084
  %v4086 = vpop.xlane.xlu0 %4085
  %v4087 = vcvt.f32.s32 %v4086
  %v4088 = vcvt.f32.s32 %v4082
  %v4089 = vshll.u32 %v4088, 16
  %v4090 = vadd.s32 %v4089, %v4087
  %v4091 = vand.u32 %v4044, 65535
  %v4092 = vshra.s32 %v4044, 16
  %v4093 = vcvt.s32.f32 %v4091
  %v4094 = vcvt.s32.f32 %v4092
  %4095 = vmax.xlane.f32.xlu0 %v4094
  %v4096 = vpop.xlane.xlu0 %4095
  %vm4097 = vcmp.eq.f32.partialorder %v4094, %v4096
  %v4098 = vsel %vm4097, %v4093, -inf
  %4099 = vmax.xlane.f32.xlu0 %v4098
  %v4100 = vpop.xlane.xlu0 %4099
  %v4101 = vcvt.f32.s32 %v4100
  %v4102 = vcvt.f32.s32 %v4096
  %v4103 = vshll.u32 %v4102, 16
  %v4104 = vadd.s32 %v4103, %v4101
  %v4105 = vand.u32 %v4045, 65535
  %v4106 = vshra.s32 %v4045, 16
  %v4107 = vcvt.s32.f32 %v4105
  %v4108 = vcvt.s32.f32 %v4106
  %4109 = vmax.xlane.f32.xlu0 %v4108
  %v4110 = vpop.xlane.xlu0 %4109
  %vm4111 = vcmp.eq.f32.partialorder %v4108, %v4110
  %v4112 = vsel %vm4111, %v4107, -inf
  %4113 = vmax.xlane.f32.xlu0 %v4112
  %v4114 = vpop.xlane.xlu0 %4113
  %v4115 = vcvt.f32.s32 %v4114
  %v4116 = vcvt.f32.s32 %v4110
  %v4117 = vshll.u32 %v4116, 16
  %v4118 = vadd.s32 %v4117, %v4115
  %v4119 = vand.u32 %v4046, 65535
  %v4120 = vshra.s32 %v4046, 16
  %v4121 = vcvt.s32.f32 %v4119
  %v4122 = vcvt.s32.f32 %v4120
  %4123 = vmax.xlane.f32.xlu0 %v4122
  %v4124 = vpop.xlane.xlu0 %4123
  %vm4125 = vcmp.eq.f32.partialorder %v4122, %v4124
  %v4126 = vsel %vm4125, %v4121, -inf
  %4127 = vmax.xlane.f32.xlu0 %v4126
  %v4128 = vpop.xlane.xlu0 %4127
  %v4129 = vcvt.f32.s32 %v4128
  %v4130 = vcvt.f32.s32 %v4124
  %v4131 = vshll.u32 %v4130, 16
  %v4132 = vadd.s32 %v4131, %v4129
  %v4133 = vand.u32 %v4047, 65535
  %v4134 = vshra.s32 %v4047, 16
  %v4135 = vcvt.s32.f32 %v4133
  %v4136 = vcvt.s32.f32 %v4134
  %4137 = vmax.xlane.f32.xlu0 %v4136
  %v4138 = vpop.xlane.xlu0 %4137
  %vm4139 = vcmp.eq.f32.partialorder %v4136, %v4138
  %v4140 = vsel %vm4139, %v4135, -inf
  %4141 = vmax.xlane.f32.xlu0 %v4140
  %v4142 = vpop.xlane.xlu0 %4141
  %v4143 = vcvt.f32.s32 %v4142
  %v4144 = vcvt.f32.s32 %v4138
  %v4145 = vshll.u32 %v4144, 16
  %v4146 = vadd.s32 %v4145, %v4143
  %v4147 = vand.u32 %v4048, 65535
  %v4148 = vshra.s32 %v4048, 16
  %v4149 = vcvt.s32.f32 %v4147
  %v4150 = vcvt.s32.f32 %v4148
  %4151 = vmax.xlane.f32.xlu0 %v4150
  %v4152 = vpop.xlane.xlu0 %4151
  %vm4153 = vcmp.eq.f32.partialorder %v4150, %v4152
  %v4154 = vsel %vm4153, %v4149, -inf
  %4155 = vmax.xlane.f32.xlu0 %v4154
  %v4156 = vpop.xlane.xlu0 %4155
  %v4157 = vcvt.f32.s32 %v4156
  %v4158 = vcvt.f32.s32 %v4152
  %v4159 = vshll.u32 %v4158, 16
  %v4160 = vadd.s32 %v4159, %v4157
  %vm4161 = vcmp.gt.s32.totalorder %v4062, %v4118
  %v4162 = vsel %vm4161, %v4062, %v4118
  %vm4163 = vcmp.gt.s32.totalorder %v4076, %v4132
  %v4164 = vsel %vm4163, %v4076, %v4132
  %vm4165 = vcmp.gt.s32.totalorder %v4090, %v4146
  %v4166 = vsel %vm4165, %v4090, %v4146
  %vm4167 = vcmp.gt.s32.totalorder %v4104, %v4160
  %v4168 = vsel %vm4167, %v4104, %v4160
  %vm4169 = vcmp.gt.s32.totalorder %v4162, %v4164
  %v4170 = vsel %vm4169, %v4162, %v4164
  %vm4171 = vcmp.gt.s32.totalorder %v4166, %v4168
  %v4172 = vsel %vm4171, %v4166, %v4168
  %vm4173 = vcmp.gt.s32.totalorder %v4170, %v4172
  %v4174 = vsel %vm4173, %v4170, %v4172
  %v4175 = vrot.slane %v4174, 4
  %vm4176 = vcmp.gt.s32.totalorder %v4174, %v4175
  %v4177 = vsel %vm4176, %v4174, %v4175
  %v4178 = vrot.slane %v4177, 2
  %vm4179 = vcmp.gt.s32.totalorder %v4177, %v4178
  %v4180 = vsel %vm4179, %v4177, %v4178
  %v4181 = vrot.slane %v4180, 1
  %vm4182 = vcmp.gt.s32.totalorder %v4180, %v4181
  %v4183 = vsel %vm4182, %v4180, %v4181
  %v4184 = vand.u32 %v4183, 8191
  %v4185 = vsub.s32 8191, %v4184
  %vm4186 = vcmp.eq.s32.totalorder %v30, 25
  %v4187 = vsel %vm4186, %v4185, %v4032
  %vm4188 = vcmp.eq.s32.totalorder %v30, %v4185
  %vm4189 = vcmp.eq.s32.totalorder %v31, %v4185
  %vm4190 = vcmp.eq.s32.totalorder %v32, %v4185
  %vm4191 = vcmp.eq.s32.totalorder %v33, %v4185
  %vm4192 = vcmp.eq.s32.totalorder %v34, %v4185
  %vm4193 = vcmp.eq.s32.totalorder %v35, %v4185
  %vm4194 = vcmp.eq.s32.totalorder %v36, %v4185
  %vm4195 = vcmp.eq.s32.totalorder %v37, %v4185
  %v4196 = vsel %vm4188, 2147483648, %v4041
  %v4197 = vsel %vm4189, 2147483648, %v4042
  %v4198 = vsel %vm4190, 2147483648, %v4043
  %v4199 = vsel %vm4191, 2147483648, %v4044
  %v4200 = vsel %vm4192, 2147483648, %v4045
  %v4201 = vsel %vm4193, 2147483648, %v4046
  %v4202 = vsel %vm4194, 2147483648, %v4047
  %v4203 = vsel %vm4195, 2147483648, %v4048
  %v4204 = vand.u32 %v4196, 65535
  %v4205 = vshra.s32 %v4196, 16
  %v4206 = vcvt.s32.f32 %v4204
  %v4207 = vcvt.s32.f32 %v4205
  %4208 = vmax.xlane.f32.xlu0 %v4207
  %v4209 = vpop.xlane.xlu0 %4208
  %vm4210 = vcmp.eq.f32.partialorder %v4207, %v4209
  %v4211 = vsel %vm4210, %v4206, -inf
  %4212 = vmax.xlane.f32.xlu0 %v4211
  %v4213 = vpop.xlane.xlu0 %4212
  %v4214 = vcvt.f32.s32 %v4213
  %v4215 = vcvt.f32.s32 %v4209
  %v4216 = vshll.u32 %v4215, 16
  %v4217 = vadd.s32 %v4216, %v4214
  %v4218 = vand.u32 %v4197, 65535
  %v4219 = vshra.s32 %v4197, 16
  %v4220 = vcvt.s32.f32 %v4218
  %v4221 = vcvt.s32.f32 %v4219
  %4222 = vmax.xlane.f32.xlu0 %v4221
  %v4223 = vpop.xlane.xlu0 %4222
  %vm4224 = vcmp.eq.f32.partialorder %v4221, %v4223
  %v4225 = vsel %vm4224, %v4220, -inf
  %4226 = vmax.xlane.f32.xlu0 %v4225
  %v4227 = vpop.xlane.xlu0 %4226
  %v4228 = vcvt.f32.s32 %v4227
  %v4229 = vcvt.f32.s32 %v4223
  %v4230 = vshll.u32 %v4229, 16
  %v4231 = vadd.s32 %v4230, %v4228
  %v4232 = vand.u32 %v4198, 65535
  %v4233 = vshra.s32 %v4198, 16
  %v4234 = vcvt.s32.f32 %v4232
  %v4235 = vcvt.s32.f32 %v4233
  %4236 = vmax.xlane.f32.xlu0 %v4235
  %v4237 = vpop.xlane.xlu0 %4236
  %vm4238 = vcmp.eq.f32.partialorder %v4235, %v4237
  %v4239 = vsel %vm4238, %v4234, -inf
  %4240 = vmax.xlane.f32.xlu0 %v4239
  %v4241 = vpop.xlane.xlu0 %4240
  %v4242 = vcvt.f32.s32 %v4241
  %v4243 = vcvt.f32.s32 %v4237
  %v4244 = vshll.u32 %v4243, 16
  %v4245 = vadd.s32 %v4244, %v4242
  %v4246 = vand.u32 %v4199, 65535
  %v4247 = vshra.s32 %v4199, 16
  %v4248 = vcvt.s32.f32 %v4246
  %v4249 = vcvt.s32.f32 %v4247
  %4250 = vmax.xlane.f32.xlu0 %v4249
  %v4251 = vpop.xlane.xlu0 %4250
  %vm4252 = vcmp.eq.f32.partialorder %v4249, %v4251
  %v4253 = vsel %vm4252, %v4248, -inf
  %4254 = vmax.xlane.f32.xlu0 %v4253
  %v4255 = vpop.xlane.xlu0 %4254
  %v4256 = vcvt.f32.s32 %v4255
  %v4257 = vcvt.f32.s32 %v4251
  %v4258 = vshll.u32 %v4257, 16
  %v4259 = vadd.s32 %v4258, %v4256
  %v4260 = vand.u32 %v4200, 65535
  %v4261 = vshra.s32 %v4200, 16
  %v4262 = vcvt.s32.f32 %v4260
  %v4263 = vcvt.s32.f32 %v4261
  %4264 = vmax.xlane.f32.xlu0 %v4263
  %v4265 = vpop.xlane.xlu0 %4264
  %vm4266 = vcmp.eq.f32.partialorder %v4263, %v4265
  %v4267 = vsel %vm4266, %v4262, -inf
  %4268 = vmax.xlane.f32.xlu0 %v4267
  %v4269 = vpop.xlane.xlu0 %4268
  %v4270 = vcvt.f32.s32 %v4269
  %v4271 = vcvt.f32.s32 %v4265
  %v4272 = vshll.u32 %v4271, 16
  %v4273 = vadd.s32 %v4272, %v4270
  %v4274 = vand.u32 %v4201, 65535
  %v4275 = vshra.s32 %v4201, 16
  %v4276 = vcvt.s32.f32 %v4274
  %v4277 = vcvt.s32.f32 %v4275
  %4278 = vmax.xlane.f32.xlu0 %v4277
  %v4279 = vpop.xlane.xlu0 %4278
  %vm4280 = vcmp.eq.f32.partialorder %v4277, %v4279
  %v4281 = vsel %vm4280, %v4276, -inf
  %4282 = vmax.xlane.f32.xlu0 %v4281
  %v4283 = vpop.xlane.xlu0 %4282
  %v4284 = vcvt.f32.s32 %v4283
  %v4285 = vcvt.f32.s32 %v4279
  %v4286 = vshll.u32 %v4285, 16
  %v4287 = vadd.s32 %v4286, %v4284
  %v4288 = vand.u32 %v4202, 65535
  %v4289 = vshra.s32 %v4202, 16
  %v4290 = vcvt.s32.f32 %v4288
  %v4291 = vcvt.s32.f32 %v4289
  %4292 = vmax.xlane.f32.xlu0 %v4291
  %v4293 = vpop.xlane.xlu0 %4292
  %vm4294 = vcmp.eq.f32.partialorder %v4291, %v4293
  %v4295 = vsel %vm4294, %v4290, -inf
  %4296 = vmax.xlane.f32.xlu0 %v4295
  %v4297 = vpop.xlane.xlu0 %4296
  %v4298 = vcvt.f32.s32 %v4297
  %v4299 = vcvt.f32.s32 %v4293
  %v4300 = vshll.u32 %v4299, 16
  %v4301 = vadd.s32 %v4300, %v4298
  %v4302 = vand.u32 %v4203, 65535
  %v4303 = vshra.s32 %v4203, 16
  %v4304 = vcvt.s32.f32 %v4302
  %v4305 = vcvt.s32.f32 %v4303
  %4306 = vmax.xlane.f32.xlu0 %v4305
  %v4307 = vpop.xlane.xlu0 %4306
  %vm4308 = vcmp.eq.f32.partialorder %v4305, %v4307
  %v4309 = vsel %vm4308, %v4304, -inf
  %4310 = vmax.xlane.f32.xlu0 %v4309
  %v4311 = vpop.xlane.xlu0 %4310
  %v4312 = vcvt.f32.s32 %v4311
  %v4313 = vcvt.f32.s32 %v4307
  %v4314 = vshll.u32 %v4313, 16
  %v4315 = vadd.s32 %v4314, %v4312
  %vm4316 = vcmp.gt.s32.totalorder %v4217, %v4273
  %v4317 = vsel %vm4316, %v4217, %v4273
  %vm4318 = vcmp.gt.s32.totalorder %v4231, %v4287
  %v4319 = vsel %vm4318, %v4231, %v4287
  %vm4320 = vcmp.gt.s32.totalorder %v4245, %v4301
  %v4321 = vsel %vm4320, %v4245, %v4301
  %vm4322 = vcmp.gt.s32.totalorder %v4259, %v4315
  %v4323 = vsel %vm4322, %v4259, %v4315
  %vm4324 = vcmp.gt.s32.totalorder %v4317, %v4319
  %v4325 = vsel %vm4324, %v4317, %v4319
  %vm4326 = vcmp.gt.s32.totalorder %v4321, %v4323
  %v4327 = vsel %vm4326, %v4321, %v4323
  %vm4328 = vcmp.gt.s32.totalorder %v4325, %v4327
  %v4329 = vsel %vm4328, %v4325, %v4327
  %v4330 = vrot.slane %v4329, 4
  %vm4331 = vcmp.gt.s32.totalorder %v4329, %v4330
  %v4332 = vsel %vm4331, %v4329, %v4330
  %v4333 = vrot.slane %v4332, 2
  %vm4334 = vcmp.gt.s32.totalorder %v4332, %v4333
  %v4335 = vsel %vm4334, %v4332, %v4333
  %v4336 = vrot.slane %v4335, 1
  %vm4337 = vcmp.gt.s32.totalorder %v4335, %v4336
  %v4338 = vsel %vm4337, %v4335, %v4336
  %v4339 = vand.u32 %v4338, 8191
  %v4340 = vsub.s32 8191, %v4339
  %vm4341 = vcmp.eq.s32.totalorder %v30, 26
  %v4342 = vsel %vm4341, %v4340, %v4187
  %vm4343 = vcmp.eq.s32.totalorder %v30, %v4340
  %vm4344 = vcmp.eq.s32.totalorder %v31, %v4340
  %vm4345 = vcmp.eq.s32.totalorder %v32, %v4340
  %vm4346 = vcmp.eq.s32.totalorder %v33, %v4340
  %vm4347 = vcmp.eq.s32.totalorder %v34, %v4340
  %vm4348 = vcmp.eq.s32.totalorder %v35, %v4340
  %vm4349 = vcmp.eq.s32.totalorder %v36, %v4340
  %vm4350 = vcmp.eq.s32.totalorder %v37, %v4340
  %v4351 = vsel %vm4343, 2147483648, %v4196
  %v4352 = vsel %vm4344, 2147483648, %v4197
  %v4353 = vsel %vm4345, 2147483648, %v4198
  %v4354 = vsel %vm4346, 2147483648, %v4199
  %v4355 = vsel %vm4347, 2147483648, %v4200
  %v4356 = vsel %vm4348, 2147483648, %v4201
  %v4357 = vsel %vm4349, 2147483648, %v4202
  %v4358 = vsel %vm4350, 2147483648, %v4203
  %v4359 = vand.u32 %v4351, 65535
  %v4360 = vshra.s32 %v4351, 16
  %v4361 = vcvt.s32.f32 %v4359
  %v4362 = vcvt.s32.f32 %v4360
  %4363 = vmax.xlane.f32.xlu0 %v4362
  %v4364 = vpop.xlane.xlu0 %4363
  %vm4365 = vcmp.eq.f32.partialorder %v4362, %v4364
  %v4366 = vsel %vm4365, %v4361, -inf
  %4367 = vmax.xlane.f32.xlu0 %v4366
  %v4368 = vpop.xlane.xlu0 %4367
  %v4369 = vcvt.f32.s32 %v4368
  %v4370 = vcvt.f32.s32 %v4364
  %v4371 = vshll.u32 %v4370, 16
  %v4372 = vadd.s32 %v4371, %v4369
  %v4373 = vand.u32 %v4352, 65535
  %v4374 = vshra.s32 %v4352, 16
  %v4375 = vcvt.s32.f32 %v4373
  %v4376 = vcvt.s32.f32 %v4374
  %4377 = vmax.xlane.f32.xlu0 %v4376
  %v4378 = vpop.xlane.xlu0 %4377
  %vm4379 = vcmp.eq.f32.partialorder %v4376, %v4378
  %v4380 = vsel %vm4379, %v4375, -inf
  %4381 = vmax.xlane.f32.xlu0 %v4380
  %v4382 = vpop.xlane.xlu0 %4381
  %v4383 = vcvt.f32.s32 %v4382
  %v4384 = vcvt.f32.s32 %v4378
  %v4385 = vshll.u32 %v4384, 16
  %v4386 = vadd.s32 %v4385, %v4383
  %v4387 = vand.u32 %v4353, 65535
  %v4388 = vshra.s32 %v4353, 16
  %v4389 = vcvt.s32.f32 %v4387
  %v4390 = vcvt.s32.f32 %v4388
  %4391 = vmax.xlane.f32.xlu0 %v4390
  %v4392 = vpop.xlane.xlu0 %4391
  %vm4393 = vcmp.eq.f32.partialorder %v4390, %v4392
  %v4394 = vsel %vm4393, %v4389, -inf
  %4395 = vmax.xlane.f32.xlu0 %v4394
  %v4396 = vpop.xlane.xlu0 %4395
  %v4397 = vcvt.f32.s32 %v4396
  %v4398 = vcvt.f32.s32 %v4392
  %v4399 = vshll.u32 %v4398, 16
  %v4400 = vadd.s32 %v4399, %v4397
  %v4401 = vand.u32 %v4354, 65535
  %v4402 = vshra.s32 %v4354, 16
  %v4403 = vcvt.s32.f32 %v4401
  %v4404 = vcvt.s32.f32 %v4402
  %4405 = vmax.xlane.f32.xlu0 %v4404
  %v4406 = vpop.xlane.xlu0 %4405
  %vm4407 = vcmp.eq.f32.partialorder %v4404, %v4406
  %v4408 = vsel %vm4407, %v4403, -inf
  %4409 = vmax.xlane.f32.xlu0 %v4408
  %v4410 = vpop.xlane.xlu0 %4409
  %v4411 = vcvt.f32.s32 %v4410
  %v4412 = vcvt.f32.s32 %v4406
  %v4413 = vshll.u32 %v4412, 16
  %v4414 = vadd.s32 %v4413, %v4411
  %v4415 = vand.u32 %v4355, 65535
  %v4416 = vshra.s32 %v4355, 16
  %v4417 = vcvt.s32.f32 %v4415
  %v4418 = vcvt.s32.f32 %v4416
  %4419 = vmax.xlane.f32.xlu0 %v4418
  %v4420 = vpop.xlane.xlu0 %4419
  %vm4421 = vcmp.eq.f32.partialorder %v4418, %v4420
  %v4422 = vsel %vm4421, %v4417, -inf
  %4423 = vmax.xlane.f32.xlu0 %v4422
  %v4424 = vpop.xlane.xlu0 %4423
  %v4425 = vcvt.f32.s32 %v4424
  %v4426 = vcvt.f32.s32 %v4420
  %v4427 = vshll.u32 %v4426, 16
  %v4428 = vadd.s32 %v4427, %v4425
  %v4429 = vand.u32 %v4356, 65535
  %v4430 = vshra.s32 %v4356, 16
  %v4431 = vcvt.s32.f32 %v4429
  %v4432 = vcvt.s32.f32 %v4430
  %4433 = vmax.xlane.f32.xlu0 %v4432
  %v4434 = vpop.xlane.xlu0 %4433
  %vm4435 = vcmp.eq.f32.partialorder %v4432, %v4434
  %v4436 = vsel %vm4435, %v4431, -inf
  %4437 = vmax.xlane.f32.xlu0 %v4436
  %v4438 = vpop.xlane.xlu0 %4437
  %v4439 = vcvt.f32.s32 %v4438
  %v4440 = vcvt.f32.s32 %v4434
  %v4441 = vshll.u32 %v4440, 16
  %v4442 = vadd.s32 %v4441, %v4439
  %v4443 = vand.u32 %v4357, 65535
  %v4444 = vshra.s32 %v4357, 16
  %v4445 = vcvt.s32.f32 %v4443
  %v4446 = vcvt.s32.f32 %v4444
  %4447 = vmax.xlane.f32.xlu0 %v4446
  %v4448 = vpop.xlane.xlu0 %4447
  %vm4449 = vcmp.eq.f32.partialorder %v4446, %v4448
  %v4450 = vsel %vm4449, %v4445, -inf
  %4451 = vmax.xlane.f32.xlu0 %v4450
  %v4452 = vpop.xlane.xlu0 %4451
  %v4453 = vcvt.f32.s32 %v4452
  %v4454 = vcvt.f32.s32 %v4448
  %v4455 = vshll.u32 %v4454, 16
  %v4456 = vadd.s32 %v4455, %v4453
  %v4457 = vand.u32 %v4358, 65535
  %v4458 = vshra.s32 %v4358, 16
  %v4459 = vcvt.s32.f32 %v4457
  %v4460 = vcvt.s32.f32 %v4458
  %4461 = vmax.xlane.f32.xlu0 %v4460
  %v4462 = vpop.xlane.xlu0 %4461
  %vm4463 = vcmp.eq.f32.partialorder %v4460, %v4462
  %v4464 = vsel %vm4463, %v4459, -inf
  %4465 = vmax.xlane.f32.xlu0 %v4464
  %v4466 = vpop.xlane.xlu0 %4465
  %v4467 = vcvt.f32.s32 %v4466
  %v4468 = vcvt.f32.s32 %v4462
  %v4469 = vshll.u32 %v4468, 16
  %v4470 = vadd.s32 %v4469, %v4467
  %vm4471 = vcmp.gt.s32.totalorder %v4372, %v4428
  %v4472 = vsel %vm4471, %v4372, %v4428
  %vm4473 = vcmp.gt.s32.totalorder %v4386, %v4442
  %v4474 = vsel %vm4473, %v4386, %v4442
  %vm4475 = vcmp.gt.s32.totalorder %v4400, %v4456
  %v4476 = vsel %vm4475, %v4400, %v4456
  %vm4477 = vcmp.gt.s32.totalorder %v4414, %v4470
  %v4478 = vsel %vm4477, %v4414, %v4470
  %vm4479 = vcmp.gt.s32.totalorder %v4472, %v4474
  %v4480 = vsel %vm4479, %v4472, %v4474
  %vm4481 = vcmp.gt.s32.totalorder %v4476, %v4478
  %v4482 = vsel %vm4481, %v4476, %v4478
  %vm4483 = vcmp.gt.s32.totalorder %v4480, %v4482
  %v4484 = vsel %vm4483, %v4480, %v4482
  %v4485 = vrot.slane %v4484, 4
  %vm4486 = vcmp.gt.s32.totalorder %v4484, %v4485
  %v4487 = vsel %vm4486, %v4484, %v4485
  %v4488 = vrot.slane %v4487, 2
  %vm4489 = vcmp.gt.s32.totalorder %v4487, %v4488
  %v4490 = vsel %vm4489, %v4487, %v4488
  %v4491 = vrot.slane %v4490, 1
  %vm4492 = vcmp.gt.s32.totalorder %v4490, %v4491
  %v4493 = vsel %vm4492, %v4490, %v4491
  %v4494 = vand.u32 %v4493, 8191
  %v4495 = vsub.s32 8191, %v4494
  %vm4496 = vcmp.eq.s32.totalorder %v30, 27
  %v4497 = vsel %vm4496, %v4495, %v4342
  %vm4498 = vcmp.eq.s32.totalorder %v30, %v4495
  %vm4499 = vcmp.eq.s32.totalorder %v31, %v4495
  %vm4500 = vcmp.eq.s32.totalorder %v32, %v4495
  %vm4501 = vcmp.eq.s32.totalorder %v33, %v4495
  %vm4502 = vcmp.eq.s32.totalorder %v34, %v4495
  %vm4503 = vcmp.eq.s32.totalorder %v35, %v4495
  %vm4504 = vcmp.eq.s32.totalorder %v36, %v4495
  %vm4505 = vcmp.eq.s32.totalorder %v37, %v4495
  %v4506 = vsel %vm4498, 2147483648, %v4351
  %v4507 = vsel %vm4499, 2147483648, %v4352
  %v4508 = vsel %vm4500, 2147483648, %v4353
  %v4509 = vsel %vm4501, 2147483648, %v4354
  %v4510 = vsel %vm4502, 2147483648, %v4355
  %v4511 = vsel %vm4503, 2147483648, %v4356
  %v4512 = vsel %vm4504, 2147483648, %v4357
  %v4513 = vsel %vm4505, 2147483648, %v4358
  %v4514 = vand.u32 %v4506, 65535
  %v4515 = vshra.s32 %v4506, 16
  %v4516 = vcvt.s32.f32 %v4514
  %v4517 = vcvt.s32.f32 %v4515
  %4518 = vmax.xlane.f32.xlu0 %v4517
  %v4519 = vpop.xlane.xlu0 %4518
  %vm4520 = vcmp.eq.f32.partialorder %v4517, %v4519
  %v4521 = vsel %vm4520, %v4516, -inf
  %4522 = vmax.xlane.f32.xlu0 %v4521
  %v4523 = vpop.xlane.xlu0 %4522
  %v4524 = vcvt.f32.s32 %v4523
  %v4525 = vcvt.f32.s32 %v4519
  %v4526 = vshll.u32 %v4525, 16
  %v4527 = vadd.s32 %v4526, %v4524
  %v4528 = vand.u32 %v4507, 65535
  %v4529 = vshra.s32 %v4507, 16
  %v4530 = vcvt.s32.f32 %v4528
  %v4531 = vcvt.s32.f32 %v4529
  %4532 = vmax.xlane.f32.xlu0 %v4531
  %v4533 = vpop.xlane.xlu0 %4532
  %vm4534 = vcmp.eq.f32.partialorder %v4531, %v4533
  %v4535 = vsel %vm4534, %v4530, -inf
  %4536 = vmax.xlane.f32.xlu0 %v4535
  %v4537 = vpop.xlane.xlu0 %4536
  %v4538 = vcvt.f32.s32 %v4537
  %v4539 = vcvt.f32.s32 %v4533
  %v4540 = vshll.u32 %v4539, 16
  %v4541 = vadd.s32 %v4540, %v4538
  %v4542 = vand.u32 %v4508, 65535
  %v4543 = vshra.s32 %v4508, 16
  %v4544 = vcvt.s32.f32 %v4542
  %v4545 = vcvt.s32.f32 %v4543
  %4546 = vmax.xlane.f32.xlu0 %v4545
  %v4547 = vpop.xlane.xlu0 %4546
  %vm4548 = vcmp.eq.f32.partialorder %v4545, %v4547
  %v4549 = vsel %vm4548, %v4544, -inf
  %4550 = vmax.xlane.f32.xlu0 %v4549
  %v4551 = vpop.xlane.xlu0 %4550
  %v4552 = vcvt.f32.s32 %v4551
  %v4553 = vcvt.f32.s32 %v4547
  %v4554 = vshll.u32 %v4553, 16
  %v4555 = vadd.s32 %v4554, %v4552
  %v4556 = vand.u32 %v4509, 65535
  %v4557 = vshra.s32 %v4509, 16
  %v4558 = vcvt.s32.f32 %v4556
  %v4559 = vcvt.s32.f32 %v4557
  %4560 = vmax.xlane.f32.xlu0 %v4559
  %v4561 = vpop.xlane.xlu0 %4560
  %vm4562 = vcmp.eq.f32.partialorder %v4559, %v4561
  %v4563 = vsel %vm4562, %v4558, -inf
  %4564 = vmax.xlane.f32.xlu0 %v4563
  %v4565 = vpop.xlane.xlu0 %4564
  %v4566 = vcvt.f32.s32 %v4565
  %v4567 = vcvt.f32.s32 %v4561
  %v4568 = vshll.u32 %v4567, 16
  %v4569 = vadd.s32 %v4568, %v4566
  %v4570 = vand.u32 %v4510, 65535
  %v4571 = vshra.s32 %v4510, 16
  %v4572 = vcvt.s32.f32 %v4570
  %v4573 = vcvt.s32.f32 %v4571
  %4574 = vmax.xlane.f32.xlu0 %v4573
  %v4575 = vpop.xlane.xlu0 %4574
  %vm4576 = vcmp.eq.f32.partialorder %v4573, %v4575
  %v4577 = vsel %vm4576, %v4572, -inf
  %4578 = vmax.xlane.f32.xlu0 %v4577
  %v4579 = vpop.xlane.xlu0 %4578
  %v4580 = vcvt.f32.s32 %v4579
  %v4581 = vcvt.f32.s32 %v4575
  %v4582 = vshll.u32 %v4581, 16
  %v4583 = vadd.s32 %v4582, %v4580
  %v4584 = vand.u32 %v4511, 65535
  %v4585 = vshra.s32 %v4511, 16
  %v4586 = vcvt.s32.f32 %v4584
  %v4587 = vcvt.s32.f32 %v4585
  %4588 = vmax.xlane.f32.xlu0 %v4587
  %v4589 = vpop.xlane.xlu0 %4588
  %vm4590 = vcmp.eq.f32.partialorder %v4587, %v4589
  %v4591 = vsel %vm4590, %v4586, -inf
  %4592 = vmax.xlane.f32.xlu0 %v4591
  %v4593 = vpop.xlane.xlu0 %4592
  %v4594 = vcvt.f32.s32 %v4593
  %v4595 = vcvt.f32.s32 %v4589
  %v4596 = vshll.u32 %v4595, 16
  %v4597 = vadd.s32 %v4596, %v4594
  %v4598 = vand.u32 %v4512, 65535
  %v4599 = vshra.s32 %v4512, 16
  %v4600 = vcvt.s32.f32 %v4598
  %v4601 = vcvt.s32.f32 %v4599
  %4602 = vmax.xlane.f32.xlu0 %v4601
  %v4603 = vpop.xlane.xlu0 %4602
  %vm4604 = vcmp.eq.f32.partialorder %v4601, %v4603
  %v4605 = vsel %vm4604, %v4600, -inf
  %4606 = vmax.xlane.f32.xlu0 %v4605
  %v4607 = vpop.xlane.xlu0 %4606
  %v4608 = vcvt.f32.s32 %v4607
  %v4609 = vcvt.f32.s32 %v4603
  %v4610 = vshll.u32 %v4609, 16
  %v4611 = vadd.s32 %v4610, %v4608
  %v4612 = vand.u32 %v4513, 65535
  %v4613 = vshra.s32 %v4513, 16
  %v4614 = vcvt.s32.f32 %v4612
  %v4615 = vcvt.s32.f32 %v4613
  %4616 = vmax.xlane.f32.xlu0 %v4615
  %v4617 = vpop.xlane.xlu0 %4616
  %vm4618 = vcmp.eq.f32.partialorder %v4615, %v4617
  %v4619 = vsel %vm4618, %v4614, -inf
  %4620 = vmax.xlane.f32.xlu0 %v4619
  %v4621 = vpop.xlane.xlu0 %4620
  %v4622 = vcvt.f32.s32 %v4621
  %v4623 = vcvt.f32.s32 %v4617
  %v4624 = vshll.u32 %v4623, 16
  %v4625 = vadd.s32 %v4624, %v4622
  %vm4626 = vcmp.gt.s32.totalorder %v4527, %v4583
  %v4627 = vsel %vm4626, %v4527, %v4583
  %vm4628 = vcmp.gt.s32.totalorder %v4541, %v4597
  %v4629 = vsel %vm4628, %v4541, %v4597
  %vm4630 = vcmp.gt.s32.totalorder %v4555, %v4611
  %v4631 = vsel %vm4630, %v4555, %v4611
  %vm4632 = vcmp.gt.s32.totalorder %v4569, %v4625
  %v4633 = vsel %vm4632, %v4569, %v4625
  %vm4634 = vcmp.gt.s32.totalorder %v4627, %v4629
  %v4635 = vsel %vm4634, %v4627, %v4629
  %vm4636 = vcmp.gt.s32.totalorder %v4631, %v4633
  %v4637 = vsel %vm4636, %v4631, %v4633
  %vm4638 = vcmp.gt.s32.totalorder %v4635, %v4637
  %v4639 = vsel %vm4638, %v4635, %v4637
  %v4640 = vrot.slane %v4639, 4
  %vm4641 = vcmp.gt.s32.totalorder %v4639, %v4640
  %v4642 = vsel %vm4641, %v4639, %v4640
  %v4643 = vrot.slane %v4642, 2
  %vm4644 = vcmp.gt.s32.totalorder %v4642, %v4643
  %v4645 = vsel %vm4644, %v4642, %v4643
  %v4646 = vrot.slane %v4645, 1
  %vm4647 = vcmp.gt.s32.totalorder %v4645, %v4646
  %v4648 = vsel %vm4647, %v4645, %v4646
  %v4649 = vand.u32 %v4648, 8191
  %v4650 = vsub.s32 8191, %v4649
  %vm4651 = vcmp.eq.s32.totalorder %v30, 28
  %v4652 = vsel %vm4651, %v4650, %v4497
  %vm4653 = vcmp.eq.s32.totalorder %v30, %v4650
  %vm4654 = vcmp.eq.s32.totalorder %v31, %v4650
  %vm4655 = vcmp.eq.s32.totalorder %v32, %v4650
  %vm4656 = vcmp.eq.s32.totalorder %v33, %v4650
  %vm4657 = vcmp.eq.s32.totalorder %v34, %v4650
  %vm4658 = vcmp.eq.s32.totalorder %v35, %v4650
  %vm4659 = vcmp.eq.s32.totalorder %v36, %v4650
  %vm4660 = vcmp.eq.s32.totalorder %v37, %v4650
  %v4661 = vsel %vm4653, 2147483648, %v4506
  %v4662 = vsel %vm4654, 2147483648, %v4507
  %v4663 = vsel %vm4655, 2147483648, %v4508
  %v4664 = vsel %vm4656, 2147483648, %v4509
  %v4665 = vsel %vm4657, 2147483648, %v4510
  %v4666 = vsel %vm4658, 2147483648, %v4511
  %v4667 = vsel %vm4659, 2147483648, %v4512
  %v4668 = vsel %vm4660, 2147483648, %v4513
  %v4669 = vand.u32 %v4661, 65535
  %v4670 = vshra.s32 %v4661, 16
  %v4671 = vcvt.s32.f32 %v4669
  %v4672 = vcvt.s32.f32 %v4670
  %4673 = vmax.xlane.f32.xlu0 %v4672
  %v4674 = vpop.xlane.xlu0 %4673
  %vm4675 = vcmp.eq.f32.partialorder %v4672, %v4674
  %v4676 = vsel %vm4675, %v4671, -inf
  %4677 = vmax.xlane.f32.xlu0 %v4676
  %v4678 = vpop.xlane.xlu0 %4677
  %v4679 = vcvt.f32.s32 %v4678
  %v4680 = vcvt.f32.s32 %v4674
  %v4681 = vshll.u32 %v4680, 16
  %v4682 = vadd.s32 %v4681, %v4679
  %v4683 = vand.u32 %v4662, 65535
  %v4684 = vshra.s32 %v4662, 16
  %v4685 = vcvt.s32.f32 %v4683
  %v4686 = vcvt.s32.f32 %v4684
  %4687 = vmax.xlane.f32.xlu0 %v4686
  %v4688 = vpop.xlane.xlu0 %4687
  %vm4689 = vcmp.eq.f32.partialorder %v4686, %v4688
  %v4690 = vsel %vm4689, %v4685, -inf
  %4691 = vmax.xlane.f32.xlu0 %v4690
  %v4692 = vpop.xlane.xlu0 %4691
  %v4693 = vcvt.f32.s32 %v4692
  %v4694 = vcvt.f32.s32 %v4688
  %v4695 = vshll.u32 %v4694, 16
  %v4696 = vadd.s32 %v4695, %v4693
  %v4697 = vand.u32 %v4663, 65535
  %v4698 = vshra.s32 %v4663, 16
  %v4699 = vcvt.s32.f32 %v4697
  %v4700 = vcvt.s32.f32 %v4698
  %4701 = vmax.xlane.f32.xlu0 %v4700
  %v4702 = vpop.xlane.xlu0 %4701
  %vm4703 = vcmp.eq.f32.partialorder %v4700, %v4702
  %v4704 = vsel %vm4703, %v4699, -inf
  %4705 = vmax.xlane.f32.xlu0 %v4704
  %v4706 = vpop.xlane.xlu0 %4705
  %v4707 = vcvt.f32.s32 %v4706
  %v4708 = vcvt.f32.s32 %v4702
  %v4709 = vshll.u32 %v4708, 16
  %v4710 = vadd.s32 %v4709, %v4707
  %v4711 = vand.u32 %v4664, 65535
  %v4712 = vshra.s32 %v4664, 16
  %v4713 = vcvt.s32.f32 %v4711
  %v4714 = vcvt.s32.f32 %v4712
  %4715 = vmax.xlane.f32.xlu0 %v4714
  %v4716 = vpop.xlane.xlu0 %4715
  %vm4717 = vcmp.eq.f32.partialorder %v4714, %v4716
  %v4718 = vsel %vm4717, %v4713, -inf
  %4719 = vmax.xlane.f32.xlu0 %v4718
  %v4720 = vpop.xlane.xlu0 %4719
  %v4721 = vcvt.f32.s32 %v4720
  %v4722 = vcvt.f32.s32 %v4716
  %v4723 = vshll.u32 %v4722, 16
  %v4724 = vadd.s32 %v4723, %v4721
  %v4725 = vand.u32 %v4665, 65535
  %v4726 = vshra.s32 %v4665, 16
  %v4727 = vcvt.s32.f32 %v4725
  %v4728 = vcvt.s32.f32 %v4726
  %4729 = vmax.xlane.f32.xlu0 %v4728
  %v4730 = vpop.xlane.xlu0 %4729
  %vm4731 = vcmp.eq.f32.partialorder %v4728, %v4730
  %v4732 = vsel %vm4731, %v4727, -inf
  %4733 = vmax.xlane.f32.xlu0 %v4732
  %v4734 = vpop.xlane.xlu0 %4733
  %v4735 = vcvt.f32.s32 %v4734
  %v4736 = vcvt.f32.s32 %v4730
  %v4737 = vshll.u32 %v4736, 16
  %v4738 = vadd.s32 %v4737, %v4735
  %v4739 = vand.u32 %v4666, 65535
  %v4740 = vshra.s32 %v4666, 16
  %v4741 = vcvt.s32.f32 %v4739
  %v4742 = vcvt.s32.f32 %v4740
  %4743 = vmax.xlane.f32.xlu0 %v4742
  %v4744 = vpop.xlane.xlu0 %4743
  %vm4745 = vcmp.eq.f32.partialorder %v4742, %v4744
  %v4746 = vsel %vm4745, %v4741, -inf
  %4747 = vmax.xlane.f32.xlu0 %v4746
  %v4748 = vpop.xlane.xlu0 %4747
  %v4749 = vcvt.f32.s32 %v4748
  %v4750 = vcvt.f32.s32 %v4744
  %v4751 = vshll.u32 %v4750, 16
  %v4752 = vadd.s32 %v4751, %v4749
  %v4753 = vand.u32 %v4667, 65535
  %v4754 = vshra.s32 %v4667, 16
  %v4755 = vcvt.s32.f32 %v4753
  %v4756 = vcvt.s32.f32 %v4754
  %4757 = vmax.xlane.f32.xlu0 %v4756
  %v4758 = vpop.xlane.xlu0 %4757
  %vm4759 = vcmp.eq.f32.partialorder %v4756, %v4758
  %v4760 = vsel %vm4759, %v4755, -inf
  %4761 = vmax.xlane.f32.xlu0 %v4760
  %v4762 = vpop.xlane.xlu0 %4761
  %v4763 = vcvt.f32.s32 %v4762
  %v4764 = vcvt.f32.s32 %v4758
  %v4765 = vshll.u32 %v4764, 16
  %v4766 = vadd.s32 %v4765, %v4763
  %v4767 = vand.u32 %v4668, 65535
  %v4768 = vshra.s32 %v4668, 16
  %v4769 = vcvt.s32.f32 %v4767
  %v4770 = vcvt.s32.f32 %v4768
  %4771 = vmax.xlane.f32.xlu0 %v4770
  %v4772 = vpop.xlane.xlu0 %4771
  %vm4773 = vcmp.eq.f32.partialorder %v4770, %v4772
  %v4774 = vsel %vm4773, %v4769, -inf
  %4775 = vmax.xlane.f32.xlu0 %v4774
  %v4776 = vpop.xlane.xlu0 %4775
  %v4777 = vcvt.f32.s32 %v4776
  %v4778 = vcvt.f32.s32 %v4772
  %v4779 = vshll.u32 %v4778, 16
  %v4780 = vadd.s32 %v4779, %v4777
  %vm4781 = vcmp.gt.s32.totalorder %v4682, %v4738
  %v4782 = vsel %vm4781, %v4682, %v4738
  %vm4783 = vcmp.gt.s32.totalorder %v4696, %v4752
  %v4784 = vsel %vm4783, %v4696, %v4752
  %vm4785 = vcmp.gt.s32.totalorder %v4710, %v4766
  %v4786 = vsel %vm4785, %v4710, %v4766
  %vm4787 = vcmp.gt.s32.totalorder %v4724, %v4780
  %v4788 = vsel %vm4787, %v4724, %v4780
  %vm4789 = vcmp.gt.s32.totalorder %v4782, %v4784
  %v4790 = vsel %vm4789, %v4782, %v4784
  %vm4791 = vcmp.gt.s32.totalorder %v4786, %v4788
  %v4792 = vsel %vm4791, %v4786, %v4788
  %vm4793 = vcmp.gt.s32.totalorder %v4790, %v4792
  %v4794 = vsel %vm4793, %v4790, %v4792
  %v4795 = vrot.slane %v4794, 4
  %vm4796 = vcmp.gt.s32.totalorder %v4794, %v4795
  %v4797 = vsel %vm4796, %v4794, %v4795
  %v4798 = vrot.slane %v4797, 2
  %vm4799 = vcmp.gt.s32.totalorder %v4797, %v4798
  %v4800 = vsel %vm4799, %v4797, %v4798
  %v4801 = vrot.slane %v4800, 1
  %vm4802 = vcmp.gt.s32.totalorder %v4800, %v4801
  %v4803 = vsel %vm4802, %v4800, %v4801
  %v4804 = vand.u32 %v4803, 8191
  %v4805 = vsub.s32 8191, %v4804
  %vm4806 = vcmp.eq.s32.totalorder %v30, 29
  %v4807 = vsel %vm4806, %v4805, %v4652
  %vm4808 = vcmp.eq.s32.totalorder %v30, %v4805
  %vm4809 = vcmp.eq.s32.totalorder %v31, %v4805
  %vm4810 = vcmp.eq.s32.totalorder %v32, %v4805
  %vm4811 = vcmp.eq.s32.totalorder %v33, %v4805
  %vm4812 = vcmp.eq.s32.totalorder %v34, %v4805
  %vm4813 = vcmp.eq.s32.totalorder %v35, %v4805
  %vm4814 = vcmp.eq.s32.totalorder %v36, %v4805
  %vm4815 = vcmp.eq.s32.totalorder %v37, %v4805
  %v4816 = vsel %vm4808, 2147483648, %v4661
  %v4817 = vsel %vm4809, 2147483648, %v4662
  %v4818 = vsel %vm4810, 2147483648, %v4663
  %v4819 = vsel %vm4811, 2147483648, %v4664
  %v4820 = vsel %vm4812, 2147483648, %v4665
  %v4821 = vsel %vm4813, 2147483648, %v4666
  %v4822 = vsel %vm4814, 2147483648, %v4667
  %v4823 = vsel %vm4815, 2147483648, %v4668
  %v4824 = vand.u32 %v4816, 65535
  %v4825 = vshra.s32 %v4816, 16
  %v4826 = vcvt.s32.f32 %v4824
  %v4827 = vcvt.s32.f32 %v4825
  %4828 = vmax.xlane.f32.xlu0 %v4827
  %v4829 = vpop.xlane.xlu0 %4828
  %vm4830 = vcmp.eq.f32.partialorder %v4827, %v4829
  %v4831 = vsel %vm4830, %v4826, -inf
  %4832 = vmax.xlane.f32.xlu0 %v4831
  %v4833 = vpop.xlane.xlu0 %4832
  %v4834 = vcvt.f32.s32 %v4833
  %v4835 = vcvt.f32.s32 %v4829
  %v4836 = vshll.u32 %v4835, 16
  %v4837 = vadd.s32 %v4836, %v4834
  %v4838 = vand.u32 %v4817, 65535
  %v4839 = vshra.s32 %v4817, 16
  %v4840 = vcvt.s32.f32 %v4838
  %v4841 = vcvt.s32.f32 %v4839
  %4842 = vmax.xlane.f32.xlu0 %v4841
  %v4843 = vpop.xlane.xlu0 %4842
  %vm4844 = vcmp.eq.f32.partialorder %v4841, %v4843
  %v4845 = vsel %vm4844, %v4840, -inf
  %4846 = vmax.xlane.f32.xlu0 %v4845
  %v4847 = vpop.xlane.xlu0 %4846
  %v4848 = vcvt.f32.s32 %v4847
  %v4849 = vcvt.f32.s32 %v4843
  %v4850 = vshll.u32 %v4849, 16
  %v4851 = vadd.s32 %v4850, %v4848
  %v4852 = vand.u32 %v4818, 65535
  %v4853 = vshra.s32 %v4818, 16
  %v4854 = vcvt.s32.f32 %v4852
  %v4855 = vcvt.s32.f32 %v4853
  %4856 = vmax.xlane.f32.xlu0 %v4855
  %v4857 = vpop.xlane.xlu0 %4856
  %vm4858 = vcmp.eq.f32.partialorder %v4855, %v4857
  %v4859 = vsel %vm4858, %v4854, -inf
  %4860 = vmax.xlane.f32.xlu0 %v4859
  %v4861 = vpop.xlane.xlu0 %4860
  %v4862 = vcvt.f32.s32 %v4861
  %v4863 = vcvt.f32.s32 %v4857
  %v4864 = vshll.u32 %v4863, 16
  %v4865 = vadd.s32 %v4864, %v4862
  %v4866 = vand.u32 %v4819, 65535
  %v4867 = vshra.s32 %v4819, 16
  %v4868 = vcvt.s32.f32 %v4866
  %v4869 = vcvt.s32.f32 %v4867
  %4870 = vmax.xlane.f32.xlu0 %v4869
  %v4871 = vpop.xlane.xlu0 %4870
  %vm4872 = vcmp.eq.f32.partialorder %v4869, %v4871
  %v4873 = vsel %vm4872, %v4868, -inf
  %4874 = vmax.xlane.f32.xlu0 %v4873
  %v4875 = vpop.xlane.xlu0 %4874
  %v4876 = vcvt.f32.s32 %v4875
  %v4877 = vcvt.f32.s32 %v4871
  %v4878 = vshll.u32 %v4877, 16
  %v4879 = vadd.s32 %v4878, %v4876
  %v4880 = vand.u32 %v4820, 65535
  %v4881 = vshra.s32 %v4820, 16
  %v4882 = vcvt.s32.f32 %v4880
  %v4883 = vcvt.s32.f32 %v4881
  %4884 = vmax.xlane.f32.xlu0 %v4883
  %v4885 = vpop.xlane.xlu0 %4884
  %vm4886 = vcmp.eq.f32.partialorder %v4883, %v4885
  %v4887 = vsel %vm4886, %v4882, -inf
  %4888 = vmax.xlane.f32.xlu0 %v4887
  %v4889 = vpop.xlane.xlu0 %4888
  %v4890 = vcvt.f32.s32 %v4889
  %v4891 = vcvt.f32.s32 %v4885
  %v4892 = vshll.u32 %v4891, 16
  %v4893 = vadd.s32 %v4892, %v4890
  %v4894 = vand.u32 %v4821, 65535
  %v4895 = vshra.s32 %v4821, 16
  %v4896 = vcvt.s32.f32 %v4894
  %v4897 = vcvt.s32.f32 %v4895
  %4898 = vmax.xlane.f32.xlu0 %v4897
  %v4899 = vpop.xlane.xlu0 %4898
  %vm4900 = vcmp.eq.f32.partialorder %v4897, %v4899
  %v4901 = vsel %vm4900, %v4896, -inf
  %4902 = vmax.xlane.f32.xlu0 %v4901
  %v4903 = vpop.xlane.xlu0 %4902
  %v4904 = vcvt.f32.s32 %v4903
  %v4905 = vcvt.f32.s32 %v4899
  %v4906 = vshll.u32 %v4905, 16
  %v4907 = vadd.s32 %v4906, %v4904
  %v4908 = vand.u32 %v4822, 65535
  %v4909 = vshra.s32 %v4822, 16
  %v4910 = vcvt.s32.f32 %v4908
  %v4911 = vcvt.s32.f32 %v4909
  %4912 = vmax.xlane.f32.xlu0 %v4911
  %v4913 = vpop.xlane.xlu0 %4912
  %vm4914 = vcmp.eq.f32.partialorder %v4911, %v4913
  %v4915 = vsel %vm4914, %v4910, -inf
  %4916 = vmax.xlane.f32.xlu0 %v4915
  %v4917 = vpop.xlane.xlu0 %4916
  %v4918 = vcvt.f32.s32 %v4917
  %v4919 = vcvt.f32.s32 %v4913
  %v4920 = vshll.u32 %v4919, 16
  %v4921 = vadd.s32 %v4920, %v4918
  %v4922 = vand.u32 %v4823, 65535
  %v4923 = vshra.s32 %v4823, 16
  %v4924 = vcvt.s32.f32 %v4922
  %v4925 = vcvt.s32.f32 %v4923
  %4926 = vmax.xlane.f32.xlu0 %v4925
  %v4927 = vpop.xlane.xlu0 %4926
  %vm4928 = vcmp.eq.f32.partialorder %v4925, %v4927
  %v4929 = vsel %vm4928, %v4924, -inf
  %4930 = vmax.xlane.f32.xlu0 %v4929
  %v4931 = vpop.xlane.xlu0 %4930
  %v4932 = vcvt.f32.s32 %v4931
  %v4933 = vcvt.f32.s32 %v4927
  %v4934 = vshll.u32 %v4933, 16
  %v4935 = vadd.s32 %v4934, %v4932
  %vm4936 = vcmp.gt.s32.totalorder %v4837, %v4893
  %v4937 = vsel %vm4936, %v4837, %v4893
  %vm4938 = vcmp.gt.s32.totalorder %v4851, %v4907
  %v4939 = vsel %vm4938, %v4851, %v4907
  %vm4940 = vcmp.gt.s32.totalorder %v4865, %v4921
  %v4941 = vsel %vm4940, %v4865, %v4921
  %vm4942 = vcmp.gt.s32.totalorder %v4879, %v4935
  %v4943 = vsel %vm4942, %v4879, %v4935
  %vm4944 = vcmp.gt.s32.totalorder %v4937, %v4939
  %v4945 = vsel %vm4944, %v4937, %v4939
  %vm4946 = vcmp.gt.s32.totalorder %v4941, %v4943
  %v4947 = vsel %vm4946, %v4941, %v4943
  %vm4948 = vcmp.gt.s32.totalorder %v4945, %v4947
  %v4949 = vsel %vm4948, %v4945, %v4947
  %v4950 = vrot.slane %v4949, 4
  %vm4951 = vcmp.gt.s32.totalorder %v4949, %v4950
  %v4952 = vsel %vm4951, %v4949, %v4950
  %v4953 = vrot.slane %v4952, 2
  %vm4954 = vcmp.gt.s32.totalorder %v4952, %v4953
  %v4955 = vsel %vm4954, %v4952, %v4953
  %v4956 = vrot.slane %v4955, 1
  %vm4957 = vcmp.gt.s32.totalorder %v4955, %v4956
  %v4958 = vsel %vm4957, %v4955, %v4956
  %v4959 = vand.u32 %v4958, 8191
  %v4960 = vsub.s32 8191, %v4959
  %vm4961 = vcmp.eq.s32.totalorder %v30, 30
  %v4962 = vsel %vm4961, %v4960, %v4807
  %vm4963 = vcmp.eq.s32.totalorder %v30, %v4960
  %vm4964 = vcmp.eq.s32.totalorder %v31, %v4960
  %vm4965 = vcmp.eq.s32.totalorder %v32, %v4960
  %vm4966 = vcmp.eq.s32.totalorder %v33, %v4960
  %vm4967 = vcmp.eq.s32.totalorder %v34, %v4960
  %vm4968 = vcmp.eq.s32.totalorder %v35, %v4960
  %vm4969 = vcmp.eq.s32.totalorder %v36, %v4960
  %vm4970 = vcmp.eq.s32.totalorder %v37, %v4960
  %v4971 = vsel %vm4963, 2147483648, %v4816
  %v4972 = vsel %vm4964, 2147483648, %v4817
  %v4973 = vsel %vm4965, 2147483648, %v4818
  %v4974 = vsel %vm4966, 2147483648, %v4819
  %v4975 = vsel %vm4967, 2147483648, %v4820
  %v4976 = vsel %vm4968, 2147483648, %v4821
  %v4977 = vsel %vm4969, 2147483648, %v4822
  %v4978 = vsel %vm4970, 2147483648, %v4823
  %v4979 = vand.u32 %v4971, 65535
  %v4980 = vshra.s32 %v4971, 16
  %v4981 = vcvt.s32.f32 %v4979
  %v4982 = vcvt.s32.f32 %v4980
  %4983 = vmax.xlane.f32.xlu0 %v4982
  %v4984 = vpop.xlane.xlu0 %4983
  %vm4985 = vcmp.eq.f32.partialorder %v4982, %v4984
  %v4986 = vsel %vm4985, %v4981, -inf
  %4987 = vmax.xlane.f32.xlu0 %v4986
  %v4988 = vpop.xlane.xlu0 %4987
  %v4989 = vcvt.f32.s32 %v4988
  %v4990 = vcvt.f32.s32 %v4984
  %v4991 = vshll.u32 %v4990, 16
  %v4992 = vadd.s32 %v4991, %v4989
  %v4993 = vand.u32 %v4972, 65535
  %v4994 = vshra.s32 %v4972, 16
  %v4995 = vcvt.s32.f32 %v4993
  %v4996 = vcvt.s32.f32 %v4994
  %4997 = vmax.xlane.f32.xlu0 %v4996
  %v4998 = vpop.xlane.xlu0 %4997
  %vm4999 = vcmp.eq.f32.partialorder %v4996, %v4998
  %v5000 = vsel %vm4999, %v4995, -inf
  %5001 = vmax.xlane.f32.xlu0 %v5000
  %v5002 = vpop.xlane.xlu0 %5001
  %v5003 = vcvt.f32.s32 %v5002
  %v5004 = vcvt.f32.s32 %v4998
  %v5005 = vshll.u32 %v5004, 16
  %v5006 = vadd.s32 %v5005, %v5003
  %v5007 = vand.u32 %v4973, 65535
  %v5008 = vshra.s32 %v4973, 16
  %v5009 = vcvt.s32.f32 %v5007
  %v5010 = vcvt.s32.f32 %v5008
  %5011 = vmax.xlane.f32.xlu0 %v5010
  %v5012 = vpop.xlane.xlu0 %5011
  %vm5013 = vcmp.eq.f32.partialorder %v5010, %v5012
  %v5014 = vsel %vm5013, %v5009, -inf
  %5015 = vmax.xlane.f32.xlu0 %v5014
  %v5016 = vpop.xlane.xlu0 %5015
  %v5017 = vcvt.f32.s32 %v5016
  %v5018 = vcvt.f32.s32 %v5012
  %v5019 = vshll.u32 %v5018, 16
  %v5020 = vadd.s32 %v5019, %v5017
  %v5021 = vand.u32 %v4974, 65535
  %v5022 = vshra.s32 %v4974, 16
  %v5023 = vcvt.s32.f32 %v5021
  %v5024 = vcvt.s32.f32 %v5022
  %5025 = vmax.xlane.f32.xlu0 %v5024
  %v5026 = vpop.xlane.xlu0 %5025
  %vm5027 = vcmp.eq.f32.partialorder %v5024, %v5026
  %v5028 = vsel %vm5027, %v5023, -inf
  %5029 = vmax.xlane.f32.xlu0 %v5028
  %v5030 = vpop.xlane.xlu0 %5029
  %v5031 = vcvt.f32.s32 %v5030
  %v5032 = vcvt.f32.s32 %v5026
  %v5033 = vshll.u32 %v5032, 16
  %v5034 = vadd.s32 %v5033, %v5031
  %v5035 = vand.u32 %v4975, 65535
  %v5036 = vshra.s32 %v4975, 16
  %v5037 = vcvt.s32.f32 %v5035
  %v5038 = vcvt.s32.f32 %v5036
  %5039 = vmax.xlane.f32.xlu0 %v5038
  %v5040 = vpop.xlane.xlu0 %5039
  %vm5041 = vcmp.eq.f32.partialorder %v5038, %v5040
  %v5042 = vsel %vm5041, %v5037, -inf
  %5043 = vmax.xlane.f32.xlu0 %v5042
  %v5044 = vpop.xlane.xlu0 %5043
  %v5045 = vcvt.f32.s32 %v5044
  %v5046 = vcvt.f32.s32 %v5040
  %v5047 = vshll.u32 %v5046, 16
  %v5048 = vadd.s32 %v5047, %v5045
  %v5049 = vand.u32 %v4976, 65535
  %v5050 = vshra.s32 %v4976, 16
  %v5051 = vcvt.s32.f32 %v5049
  %v5052 = vcvt.s32.f32 %v5050
  %5053 = vmax.xlane.f32.xlu0 %v5052
  %v5054 = vpop.xlane.xlu0 %5053
  %vm5055 = vcmp.eq.f32.partialorder %v5052, %v5054
  %v5056 = vsel %vm5055, %v5051, -inf
  %5057 = vmax.xlane.f32.xlu0 %v5056
  %v5058 = vpop.xlane.xlu0 %5057
  %v5059 = vcvt.f32.s32 %v5058
  %v5060 = vcvt.f32.s32 %v5054
  %v5061 = vshll.u32 %v5060, 16
  %v5062 = vadd.s32 %v5061, %v5059
  %v5063 = vand.u32 %v4977, 65535
  %v5064 = vshra.s32 %v4977, 16
  %v5065 = vcvt.s32.f32 %v5063
  %v5066 = vcvt.s32.f32 %v5064
  %5067 = vmax.xlane.f32.xlu0 %v5066
  %v5068 = vpop.xlane.xlu0 %5067
  %vm5069 = vcmp.eq.f32.partialorder %v5066, %v5068
  %v5070 = vsel %vm5069, %v5065, -inf
  %5071 = vmax.xlane.f32.xlu0 %v5070
  %v5072 = vpop.xlane.xlu0 %5071
  %v5073 = vcvt.f32.s32 %v5072
  %v5074 = vcvt.f32.s32 %v5068
  %v5075 = vshll.u32 %v5074, 16
  %v5076 = vadd.s32 %v5075, %v5073
  %v5077 = vand.u32 %v4978, 65535
  %v5078 = vshra.s32 %v4978, 16
  %v5079 = vcvt.s32.f32 %v5077
  %v5080 = vcvt.s32.f32 %v5078
  %5081 = vmax.xlane.f32.xlu0 %v5080
  %v5082 = vpop.xlane.xlu0 %5081
  %vm5083 = vcmp.eq.f32.partialorder %v5080, %v5082
  %v5084 = vsel %vm5083, %v5079, -inf
  %5085 = vmax.xlane.f32.xlu0 %v5084
  %v5086 = vpop.xlane.xlu0 %5085
  %v5087 = vcvt.f32.s32 %v5086
  %v5088 = vcvt.f32.s32 %v5082
  %v5089 = vshll.u32 %v5088, 16
  %v5090 = vadd.s32 %v5089, %v5087
  %vm5091 = vcmp.gt.s32.totalorder %v4992, %v5048
  %v5092 = vsel %vm5091, %v4992, %v5048
  %vm5093 = vcmp.gt.s32.totalorder %v5006, %v5062
  %v5094 = vsel %vm5093, %v5006, %v5062
  %vm5095 = vcmp.gt.s32.totalorder %v5020, %v5076
  %v5096 = vsel %vm5095, %v5020, %v5076
  %vm5097 = vcmp.gt.s32.totalorder %v5034, %v5090
  %v5098 = vsel %vm5097, %v5034, %v5090
  %vm5099 = vcmp.gt.s32.totalorder %v5092, %v5094
  %v5100 = vsel %vm5099, %v5092, %v5094
  %vm5101 = vcmp.gt.s32.totalorder %v5096, %v5098
  %v5102 = vsel %vm5101, %v5096, %v5098
  %vm5103 = vcmp.gt.s32.totalorder %v5100, %v5102
  %v5104 = vsel %vm5103, %v5100, %v5102
  %v5105 = vrot.slane %v5104, 4
  %vm5106 = vcmp.gt.s32.totalorder %v5104, %v5105
  %v5107 = vsel %vm5106, %v5104, %v5105
  %v5108 = vrot.slane %v5107, 2
  %vm5109 = vcmp.gt.s32.totalorder %v5107, %v5108
  %v5110 = vsel %vm5109, %v5107, %v5108
  %v5111 = vrot.slane %v5110, 1
  %vm5112 = vcmp.gt.s32.totalorder %v5110, %v5111
  %v5113 = vsel %vm5112, %v5110, %v5111
  %v5114 = vand.u32 %v5113, 8191
  %v5115 = vsub.s32 8191, %v5114
  %vm5116 = vcmp.eq.s32.totalorder %v30, 31
  %v5117 = vsel %vm5116, %v5115, %v4962
  %5118 = vst [vmem:[%s2] sm:$0xff] %v5117
  // Predicated region
  $region10: #{sample_transitives.1} parent=0 // pred_check
    _
  $region11: #{sample_transitives.1} parent=0 // pred_check_branch
    %5120 = sbr.rel (0) target = $region13
  $region12: #{sample_transitives.1} parent=0 // pred_region
    _
  $region13: #{sample_transitives.1} parent=0 // pred_fallthru
    _
  // Predicated region
  $region14: #{sample_transitives.1} parent=0 // pred_check
    _
  $region15: #{sample_transitives.1} parent=0 // pred_check_branch
    %5122 = sbr.rel (0) target = $region17
  $region16: #{sample_transitives.1} parent=0 // pred_region
    _
  $region17: #{sample_transitives.1} parent=0 // pred_fallthru
    _

</llo_original>
